<compile_context>
chip_gen: v7x
topology: tpu7x:2x2x1
jax: 0.10.0
libtpu: 0.0.40
codegen_flags: <defaults>
</compile_context>

<pallas_src>
from functools import partial

import jax
import jax.numpy as jnp
from jax.experimental import pallas as pl
from jax.experimental.pallas import tpu as pltpu


def _spatial_attn_kernel(x_ref, wq_ref, bq_ref, wk_ref, bk_ref, wv_ref, bv_ref,
                         mw0_ref, mw1_ref, out_ref, k_scr, v_scr,
                         *, w_img, hw, tq, mm_dtype, exp_dtype):
    f32 = jnp.float32
    qi = pl.program_id(1)

    def mm(a, b):          # (M, K) @ (K, N), f32 accumulation on the MXU
        return jnp.dot(a.astype(mm_dtype), b.astype(mm_dtype),
                       preferred_element_type=f32)

    def mmt(a, b):         # (M, K) x (N, K) -> (M, N): contraction on last dims
        return jax.lax.dot_general(a.astype(mm_dtype), b.astype(mm_dtype),
                                   (((1,), (1,)), ((), ())),
                                   preferred_element_type=f32)

    # ---- K / V projections over the whole image: computed once per batch element --
    @pl.when(qi == 0)
    def _():
        xf = x_ref[0]                                                 # (HW, C)
        # key: Conv2d (3,1), padding (1,0) -> taps at h-1 / h / h+1 (flat stride W)
        k_scr[...] = mm(xf, wk_ref[1]) + bk_ref[...]
        k_scr[pl.ds(w_img, hw - w_img), :] += mm(xf[: hw - w_img, :], wk_ref[0])
        k_scr[pl.ds(0, hw - w_img), :] += mm(xf[w_img:, :], wk_ref[2])
        # value: 1x1 conv == channel matmul (gamma already folded into wv / bv)
        v_scr[...] = mm(xf, wv_ref[...]) + bv_ref[...]

    # ---- Q projection for this query tile: Conv2d (1,3), padding (0,1) ------------
    qoff = pl.multiple_of(qi * tq, 8)
    xq = x_ref[0, pl.ds(qoff, tq), :]                                 # (TQ, C)
    # w-1 / w+1 taps: XLU rolls within the tile.  Wrapped rows and image w-edges are
    # zeroed by the masks (tile edges always land on w == 0 / w == W-1 since tq % W == 0).
    xm = pltpu.roll(xq, shift=1, axis=0) * mw0_ref[...]               # x[h, w-1]
    xp = pltpu.roll(xq, shift=tq - 1, axis=0) * mw1_ref[...]          # x[h, w+1]
    # (optional v5e / small-C optimisation: fuse the three tap matmuls via a lane concat)
    q = mm(xm, wq_ref[0]) + mm(xq, wq_ref[1]) + mm(xp, wq_ref[2]) + bq_ref[...]

    # ---- attention: scores over all HW keys, softmax, weighted sum of values ------
    s = mmt(q, k_scr[...])                                            # (TQ, HW) f32
    m = jnp.max(s, axis=-1, keepdims=True)
    p = jnp.exp((s - m).astype(exp_dtype))                            # bf16 EUP on v6e/v7x
    denom = jnp.sum(p.astype(f32), axis=-1, keepdims=True)
    o = mm(p, v_scr[...]) * pl.reciprocal(denom, approx=True)         # normalise after matmul

    out_ref[0] = xq + o                                               # gamma folded into V


def _pick_tile_rows(h, w, target):
    """Largest whole-image-row query tile: h % th == 0, (th*w) % 8 == 0, th*w <= target."""
    for th in range(h, 0, -1):
        if h % th == 0 and (th * w) % 8 == 0 and th * w <= target:
            return th
    return None


def _vmem_limit_bytes():
    """Generation-aware scoped-VMEM limit (~3/4 of physical; conservative fallback)."""
    try:
        cap = int(pltpu.get_tpu_info().vmem_capacity_bytes)
        if cap <= 0:
            cap = 64 * 1024 * 1024
    except Exception:
        cap = 64 * 1024 * 1024     # safe on every generation (v7x physical is 64 MiB)
    return max(32 * 1024 * 1024, (cap * 3) // 4)


def spatial_attention_pallas(x_nchw, params, *, matmul_dtype=jnp.bfloat16,
                             exp_dtype=None, tile_target=256):
    """Fused SpatialAttentionBlock forward.

    matmul_dtype: MXU operand dtype (bf16 recommended; jnp.float32 = tight debug path).
    exp_dtype:    softmax-exponent dtype; defaults to matmul_dtype.  Pass jnp.float32
                  explicitly on v5e (no bf16 EUP/VPU there).
    tile_target:  max pixels per query-row tile (256 fills the v6e/v7x MXU; 128 on v5e).
    """
    if exp_dtype is None:
        exp_dtype = matmul_dtype

    n, c, h, w = x_nchw.shape
    cq = params["wq"].shape[0]
    hw = h * w

    th = _pick_tile_rows(h, w, tile_target)
    if th is None:
        # whole-image fallback; refuse shapes whose HW x HW score block cannot fit.
        if hw * hw * 4 > 8 * 1024 * 1024:
            raise ValueError(
                f"no 8-aligned query-row tile <= {tile_target} pixels for H={h}, W={w}; "
                "the whole-image fallback would need a flash-style rewrite at this size")
        th = h
    tq = th * w
    n_qt = h // th

    x_rows = jnp.transpose(x_nchw, (0, 2, 3, 1)).reshape(n, hw, c)

    # conv weights -> per-tap channel-matmul layout (tap, Cin, Cout)
    wq_t = jnp.transpose(params["wq"][:, :, 0, :], (2, 1, 0))          # (3, C, Cq)
    wk_t = jnp.transpose(params["wk"][:, :, :, 0], (2, 1, 0))          # (3, C, Cq)
    gamma = jnp.asarray(params["gamma"], jnp.float32).reshape(())
    wv_m = gamma * jnp.transpose(params["wv"][:, :, 0, 0], (1, 0))     # (C, C), gamma folded
    bq = params["bq"].reshape(1, cq)
    bk = params["bk"].reshape(1, cq)
    bv = gamma * params["bv"].reshape(1, c)

    # host-precomputed w-boundary masks for the (1,3) query conv (same for every tile)
    wi = jnp.arange(tq, dtype=jnp.int32) % w
    mw0 = (wi > 0).astype(jnp.float32).reshape(tq, 1)
    mw1 = (wi < w - 1).astype(jnp.float32).reshape(tq, 1)

    kernel = partial(_spatial_attn_kernel, w_img=w, hw=hw, tq=tq,
                     mm_dtype=matmul_dtype, exp_dtype=exp_dtype)

    def full(shape):
        return pl.BlockSpec(shape, lambda b, qi, _s=shape: (0,) * len(_s))

    in_specs = [
        pl.BlockSpec((1, hw, c), lambda b, qi: (b, 0, 0)),   # whole image (resident per b)
        full((3, c, cq)), full((1, cq)),                     # wq taps, bq
        full((3, c, cq)), full((1, cq)),                     # wk taps, bk
        full((c, c)), full((1, c)),                          # wv (gamma-folded), bv
        full((tq, 1)), full((tq, 1)),                        # mw0, mw1
    ]

    out = pl.pallas_call(
        kernel,
        out_shape=jax.ShapeDtypeStruct((n, hw, c), jnp.float32),
        grid=(n, n_qt),
        in_specs=in_specs,
        out_specs=pl.BlockSpec((1, tq, c), lambda b, qi: (b, qi, 0)),
        scratch_shapes=[
            pltpu.VMEM((hw, cq), jnp.float32),   # K rows (persist across query tiles)
            pltpu.VMEM((hw, c), jnp.float32),    # V rows (persist across query tiles)
        ],
        compiler_params=pltpu.CompilerParams(
            dimension_semantics=("parallel", "arbitrary"),
            vmem_limit_bytes=_vmem_limit_bytes()),
    )(x_rows, wq_t, bq, wk_t, bk, wv_m, bv, mw0, mw1)

    return jnp.transpose(out.reshape(n, h, w, c), (0, 3, 1, 2))        # back to NCHW


def init_params(key, in_channels):
    cq = in_channels // 8
    ks = jax.random.split(key, 6)
    nrm = lambda k, s, sc: sc * jax.random.normal(k, s, jnp.float32)
    return dict(
        wq=nrm(ks[0], (cq, in_channels, 1, 3), 0.2),          # torch Conv2d layout (O,I,kh,kw)
        bq=nrm(ks[1], (cq,), 0.1),
        wk=nrm(ks[2], (cq, in_channels, 3, 1), 0.2),
        bk=nrm(ks[3], (cq,), 0.1),
        wv=nrm(ks[4], (in_channels, in_channels, 1, 1), 0.2),
        bv=nrm(ks[5], (in_channels,), 0.1),
        # nn.Parameter(torch.zeros(1)) initialises gamma to 0; use a non-zero value so
        # the attention path is actually exercised by the correctness check.
        gamma=jnp.full((1,), 0.7, jnp.float32),
    )


def spatial_attention_ref(x, params):
    """Pure-JAX reference matching the PyTorch forward."""
    hp = jax.lax.Precision.HIGHEST
    n, c, h, w = x.shape
    cq = params["wq"].shape[0]
    dn = ("NCHW", "OIHW", "NCHW")

    q = jax.lax.conv_general_dilated(x, params["wq"], (1, 1), ((0, 0), (1, 1)),
                                     dimension_numbers=dn, precision=hp)
    q = q + params["bq"].reshape(1, -1, 1, 1)
    k = jax.lax.conv_general_dilated(x, params["wk"], (1, 1), ((1, 1), (0, 0)),
                                     dimension_numbers=dn, precision=hp)
    k = k + params["bk"].reshape(1, -1, 1, 1)
    v = jax.lax.conv_general_dilated(x, params["wv"], (1, 1), ((0, 0), (0, 0)),
                                     dimension_numbers=dn, precision=hp)
    v = v + params["bv"].reshape(1, -1, 1, 1)

    pq = q.reshape(n, cq, h * w).transpose(0, 2, 1)           # (B, HW, Cq)
    pk = k.reshape(n, cq, h * w)                              # (B, Cq, HW)
    aff = jnp.einsum("bic,bcj->bij", pq, pk, precision=hp)    # (B, HW, HW)
    aff = jax.nn.softmax(aff, axis=-1)
    pv = v.reshape(n, c, h * w)                               # (B, C, HW)
    wts = jnp.einsum("bcj,bij->bci", pv, aff, precision=hp).reshape(n, c, h, w)
    return params["gamma"] * wts + x


if __name__ == "__main__":
    N, C, H, W = 2, 16, 16, 16          # in_channels must be >= 8 (C // 8 query/key channels)

    key = jax.random.PRNGKey(0)
    kx, kp = jax.random.split(key)
    x = jax.random.normal(kx, (N, C, H, W), jnp.float32)
    params = init_params(kp, C)

    ref = spatial_attention_ref(x, params)

    # Tight structural/numerical check on the f32 matmul path.
    out_f32 = jax.block_until_ready(
        spatial_attention_pallas(x, params, matmul_dtype=jnp.float32))
    assert out_f32.shape == (N, C, H, W), out_f32.shape
    err_f32 = float(jnp.max(jnp.abs(out_f32 - ref)))
    if not jnp.allclose(out_f32, ref, atol=2e-2, rtol=2e-2):
        raise AssertionError(f"Pallas/JAX mismatch (f32 path), max abs err = {err_f32}")

    # Default performance path (bf16 MXU operands + bf16 softmax exponent).
    out_bf16 = jax.block_until_ready(spatial_attention_pallas(x, params))
    assert out_bf16.shape == (N, C, H, W), out_bf16.shape
    assert bool(jnp.all(jnp.isfinite(out_bf16)))
    err_bf16 = float(jnp.max(jnp.abs(out_bf16 - ref)))
    if not jnp.allclose(out_bf16, ref, atol=5e-1, rtol=0.0):
        raise AssertionError(f"Pallas/JAX mismatch (bf16 path), max abs err = {err_bf16}")

    print("KERNEL_OK")
</pallas_src>

<mosaic_0001>
module attributes {stable_mosaic.version = 11 : i64} {
  func.func @_spatial_attn_kernel(%arg0: i32, %arg1: i32, %arg2: memref<1x256x16xf32, #tpu.memory_space<vmem>>, %arg3: memref<3x16x2xf32, #tpu.memory_space<vmem>>, %arg4: memref<1x2xf32, #tpu.memory_space<vmem>>, %arg5: memref<3x16x2xf32, #tpu.memory_space<vmem>>, %arg6: memref<1x2xf32, #tpu.memory_space<vmem>>, %arg7: memref<16x16xf32, #tpu.memory_space<vmem>>, %arg8: memref<1x16xf32, #tpu.memory_space<vmem>>, %arg9: memref<256x1xf32, #tpu.memory_space<vmem>>, %arg10: memref<256x1xf32, #tpu.memory_space<vmem>>, %arg11: memref<1x256x16xf32, #tpu.memory_space<vmem>>, %arg12: memref<256x2xf32, #tpu.memory_space<vmem>>, %arg13: memref<256x16xf32, #tpu.memory_space<vmem>>) attributes {dimension_semantics = [#tpu.dimension_semantics<parallel>, #tpu.dimension_semantics<arbitrary>], iteration_bounds = array<i64: 2, 1>, scalar_prefetch = 0 : i64, scratch_operands = 2 : i64, tpu.core_type = #tpu.core_type<tc>, window_params = [{transform_indices = @transform_0, window_bounds = array<i64: 1, 256, 16>}, {pipeline_mode = #tpu.pipeline_mode<synchronous>, transform_indices = @transform_1, window_bounds = array<i64: 3, 16, 2>}, {pipeline_mode = #tpu.pipeline_mode<synchronous>, transform_indices = @transform_2, window_bounds = array<i64: 1, 2>}, {pipeline_mode = #tpu.pipeline_mode<synchronous>, transform_indices = @transform_3, window_bounds = array<i64: 3, 16, 2>}, {pipeline_mode = #tpu.pipeline_mode<synchronous>, transform_indices = @transform_4, window_bounds = array<i64: 1, 2>}, {pipeline_mode = #tpu.pipeline_mode<synchronous>, transform_indices = @transform_5, window_bounds = array<i64: 16, 16>}, {pipeline_mode = #tpu.pipeline_mode<synchronous>, transform_indices = @transform_6, window_bounds = array<i64: 1, 16>}, {pipeline_mode = #tpu.pipeline_mode<synchronous>, transform_indices = @transform_7, window_bounds = array<i64: 256, 1>}, {pipeline_mode = #tpu.pipeline_mode<synchronous>, transform_indices = @transform_8, window_bounds = array<i64: 256, 1>}, {transform_indices = @transform_9, window_bounds = array<i64: 1, 256, 16>}]} {
    %c0_i32 = arith.constant 0 : i32
    %0 = arith.cmpi eq, %arg1, %c0_i32 : i32
    %1 = arith.extui %0 : i1 to i32
    %c0_i32_0 = arith.constant 0 : i32
    %2 = arith.cmpi ne, %1, %c0_i32_0 : i32
    scf.if %2 {
      %c0_28 = arith.constant 0 : index
      %c0_29 = arith.constant 0 : index
      %c0_30 = arith.constant 0 : index
      %48 = vector.load %arg2[%c0_28, %c0_29, %c0_30] : memref<1x256x16xf32, #tpu.memory_space<vmem>>, vector<1x256x16xf32>
      %49 = vector.shape_cast %48 : vector<1x256x16xf32> to vector<256x16xf32>
      %c1_31 = arith.constant 1 : index
      %c0_32 = arith.constant 0 : index
      %c0_33 = arith.constant 0 : index
      %50 = vector.load %arg5[%c1_31, %c0_32, %c0_33] : memref<3x16x2xf32, #tpu.memory_space<vmem>>, vector<1x16x2xf32>
      %51 = vector.shape_cast %50 : vector<1x16x2xf32> to vector<16x2xf32>
      %cst_34 = arith.constant dense<0.000000e+00> : vector<256x2xf32>
      %52 = tpu.matmul %49, %51, %cst_34 {dimension_numbers = #tpu.dot_dimension_numbers<[1], [0], [0], [1], [0, 0, 1, 1], [], []>} : vector<256x16xf32>, vector<16x2xf32>, vector<256x2xf32> -> vector<256x2xf32>
      %c0_35 = arith.constant 0 : index
      %c0_36 = arith.constant 0 : index
      %53 = vector.load %arg6[%c0_35, %c0_36] : memref<1x2xf32, #tpu.memory_space<vmem>>, vector<1x2xf32>
      %54 = vector.broadcast %53 : vector<1x2xf32> to vector<256x2xf32>
      %55 = arith.addf %52, %54 : vector<256x2xf32>
      %c0_37 = arith.constant 0 : index
      %c0_38 = arith.constant 0 : index
      %56 = vector.load %arg12[%c0_37, %c0_38] : memref<256x2xf32, #tpu.memory_space<vmem>>, vector<256x2xf32>
      tpu.vector_store %arg12[%c0_37, %c0_38], %55 {strides = array<i32>} : memref<256x2xf32, #tpu.memory_space<vmem>>, vector<256x2xf32>,
      %c16 = arith.constant 16 : index
      %c0_39 = arith.constant 0 : index
      %57 = vector.load %arg12[%c16, %c0_39] : memref<256x2xf32, #tpu.memory_space<vmem>>, vector<240x2xf32>
      %58 = vector.extract_strided_slice %49 {offsets = [0, 0], sizes = [240, 16], strides = [1, 1]} : vector<256x16xf32> to vector<240x16xf32>
      %c0_40 = arith.constant 0 : index
      %c0_41 = arith.constant 0 : index
      %c0_42 = arith.constant 0 : index
      %59 = vector.load %arg5[%c0_40, %c0_41, %c0_42] : memref<3x16x2xf32, #tpu.memory_space<vmem>>, vector<1x16x2xf32>
      %60 = vector.shape_cast %59 : vector<1x16x2xf32> to vector<16x2xf32>
      %cst_43 = arith.constant dense<0.000000e+00> : vector<240x2xf32>
      %61 = tpu.matmul %58, %60, %cst_43 {dimension_numbers = #tpu.dot_dimension_numbers<[1], [0], [0], [1], [0, 0, 1, 1], [], []>} : vector<240x16xf32>, vector<16x2xf32>, vector<240x2xf32> -> vector<240x2xf32>
      %62 = arith.addf %57, %61 : vector<240x2xf32>
      %c16_44 = arith.constant 16 : index
      %c0_45 = arith.constant 0 : index
      %63 = vector.load %arg12[%c16_44, %c0_45] : memref<256x2xf32, #tpu.memory_space<vmem>>, vector<240x2xf32>
      tpu.vector_store %arg12[%c16_44, %c0_45], %62 {strides = array<i32>} : memref<256x2xf32, #tpu.memory_space<vmem>>, vector<240x2xf32>,
      %c0_46 = arith.constant 0 : index
      %c0_47 = arith.constant 0 : index
      %64 = vector.load %arg12[%c0_46, %c0_47] : memref<256x2xf32, #tpu.memory_space<vmem>>, vector<240x2xf32>
      %65 = vector.extract_strided_slice %49 {offsets = [16, 0], sizes = [240, 16], strides = [1, 1]} : vector<256x16xf32> to vector<240x16xf32>
      %c2_48 = arith.constant 2 : index
      %c0_49 = arith.constant 0 : index
      %c0_50 = arith.constant 0 : index
      %66 = vector.load %arg5[%c2_48, %c0_49, %c0_50] : memref<3x16x2xf32, #tpu.memory_space<vmem>>, vector<1x16x2xf32>
      %67 = vector.shape_cast %66 : vector<1x16x2xf32> to vector<16x2xf32>
      %cst_51 = arith.constant dense<0.000000e+00> : vector<240x2xf32>
      %68 = tpu.matmul %65, %67, %cst_51 {dimension_numbers = #tpu.dot_dimension_numbers<[1], [0], [0], [1], [0, 0, 1, 1], [], []>} : vector<240x16xf32>, vector<16x2xf32>, vector<240x2xf32> -> vector<240x2xf32>
      %69 = arith.addf %64, %68 : vector<240x2xf32>
      %c0_52 = arith.constant 0 : index
      %c0_53 = arith.constant 0 : index
      %70 = vector.load %arg12[%c0_52, %c0_53] : memref<256x2xf32, #tpu.memory_space<vmem>>, vector<240x2xf32>
      tpu.vector_store %arg12[%c0_52, %c0_53], %69 {strides = array<i32>} : memref<256x2xf32, #tpu.memory_space<vmem>>, vector<240x2xf32>,
      %c0_54 = arith.constant 0 : index
      %c0_55 = arith.constant 0 : index
      %71 = vector.load %arg7[%c0_54, %c0_55] : memref<16x16xf32, #tpu.memory_space<vmem>>, vector<16x16xf32>
      %cst_56 = arith.constant dense<0.000000e+00> : vector<256x16xf32>
      %72 = tpu.matmul %49, %71, %cst_56 {dimension_numbers = #tpu.dot_dimension_numbers<[1], [0], [0], [1], [0, 0, 1, 1], [], []>} : vector<256x16xf32>, vector<16x16xf32>, vector<256x16xf32> -> vector<256x16xf32>
      %c0_57 = arith.constant 0 : index
      %c0_58 = arith.constant 0 : index
      %73 = vector.load %arg8[%c0_57, %c0_58] : memref<1x16xf32, #tpu.memory_space<vmem>>, vector<1x16xf32>
      %74 = vector.broadcast %73 : vector<1x16xf32> to vector<256x16xf32>
      %75 = arith.addf %72, %74 : vector<256x16xf32>
      %c0_59 = arith.constant 0 : index
      %c0_60 = arith.constant 0 : index
      %76 = vector.load %arg13[%c0_59, %c0_60] : memref<256x16xf32, #tpu.memory_space<vmem>>, vector<256x16xf32>
      tpu.vector_store %arg13[%c0_59, %c0_60], %75 {strides = array<i32>} : memref<256x16xf32, #tpu.memory_space<vmem>>, vector<256x16xf32>,
    } else {
    }
    %c256_i32 = arith.constant 256 : i32
    %3 = arith.muli %arg1, %c256_i32 : i32
    %4 = tpu.assume_multiple %3, 8 : i32
    %c0 = arith.constant 0 : index
    %5 = arith.index_cast %4 : i32 to index
    %c0_1 = arith.constant 0 : index
    %6 = vector.load %arg2[%c0, %5, %c0_1] : memref<1x256x16xf32, #tpu.memory_space<vmem>>, vector<1x256x16xf32>
    %7 = vector.shape_cast %6 : vector<1x256x16xf32> to vector<256x16xf32>
    %c1_i32 = arith.constant 1 : i32
    %8 = tpu.dynamic_rotate %7 by %c1_i32 dim 0 : vector<256x16xf32>, i32 -> vector<256x16xf32>
    %c0_2 = arith.constant 0 : index
    %c0_3 = arith.constant 0 : index
    %9 = vector.load %arg9[%c0_2, %c0_3] : memref<256x1xf32, #tpu.memory_space<vmem>>, vector<256x1xf32>
    %10 = vector.broadcast %9 : vector<256x1xf32> to vector<256x16xf32>
    %11 = arith.mulf %8, %10 : vector<256x16xf32>
    %c255_i32 = arith.constant 255 : i32
    %12 = tpu.dynamic_rotate %7 by %c255_i32 dim 0 : vector<256x16xf32>, i32 -> vector<256x16xf32>
    %c0_4 = arith.constant 0 : index
    %c0_5 = arith.constant 0 : index
    %13 = vector.load %arg10[%c0_4, %c0_5] : memref<256x1xf32, #tpu.memory_space<vmem>>, vector<256x1xf32>
    %14 = vector.broadcast %13 : vector<256x1xf32> to vector<256x16xf32>
    %15 = arith.mulf %12, %14 : vector<256x16xf32>
    %c0_6 = arith.constant 0 : index
    %c0_7 = arith.constant 0 : index
    %c0_8 = arith.constant 0 : index
    %16 = vector.load %arg3[%c0_6, %c0_7, %c0_8] : memref<3x16x2xf32, #tpu.memory_space<vmem>>, vector<1x16x2xf32>
    %17 = vector.shape_cast %16 : vector<1x16x2xf32> to vector<16x2xf32>
    %cst = arith.constant dense<0.000000e+00> : vector<256x2xf32>
    %18 = tpu.matmul %11, %17, %cst {dimension_numbers = #tpu.dot_dimension_numbers<[1], [0], [0], [1], [0, 0, 1, 1], [], []>} : vector<256x16xf32>, vector<16x2xf32>, vector<256x2xf32> -> vector<256x2xf32>
    %c1 = arith.constant 1 : index
    %c0_9 = arith.constant 0 : index
    %c0_10 = arith.constant 0 : index
    %19 = vector.load %arg3[%c1, %c0_9, %c0_10] : memref<3x16x2xf32, #tpu.memory_space<vmem>>, vector<1x16x2xf32>
    %20 = vector.shape_cast %19 : vector<1x16x2xf32> to vector<16x2xf32>
    %cst_11 = arith.constant dense<0.000000e+00> : vector<256x2xf32>
    %21 = tpu.matmul %7, %20, %cst_11 {dimension_numbers = #tpu.dot_dimension_numbers<[1], [0], [0], [1], [0, 0, 1, 1], [], []>} : vector<256x16xf32>, vector<16x2xf32>, vector<256x2xf32> -> vector<256x2xf32>
    %22 = arith.addf %18, %21 : vector<256x2xf32>
    %c2 = arith.constant 2 : index
    %c0_12 = arith.constant 0 : index
    %c0_13 = arith.constant 0 : index
    %23 = vector.load %arg3[%c2, %c0_12, %c0_13] : memref<3x16x2xf32, #tpu.memory_space<vmem>>, vector<1x16x2xf32>
    %24 = vector.shape_cast %23 : vector<1x16x2xf32> to vector<16x2xf32>
    %cst_14 = arith.constant dense<0.000000e+00> : vector<256x2xf32>
    %25 = tpu.matmul %15, %24, %cst_14 {dimension_numbers = #tpu.dot_dimension_numbers<[1], [0], [0], [1], [0, 0, 1, 1], [], []>} : vector<256x16xf32>, vector<16x2xf32>, vector<256x2xf32> -> vector<256x2xf32>
    %26 = arith.addf %22, %25 : vector<256x2xf32>
    %c0_15 = arith.constant 0 : index
    %c0_16 = arith.constant 0 : index
    %27 = vector.load %arg4[%c0_15, %c0_16] : memref<1x2xf32, #tpu.memory_space<vmem>>, vector<1x2xf32>
    %28 = vector.broadcast %27 : vector<1x2xf32> to vector<256x2xf32>
    %29 = arith.addf %26, %28 : vector<256x2xf32>
    %c0_17 = arith.constant 0 : index
    %c0_18 = arith.constant 0 : index
    %30 = vector.load %arg12[%c0_17, %c0_18] : memref<256x2xf32, #tpu.memory_space<vmem>>, vector<256x2xf32>
    %cst_19 = arith.constant dense<0.000000e+00> : vector<256x256xf32>
    %31 = tpu.matmul %29, %30, %cst_19 {dimension_numbers = #tpu.dot_dimension_numbers<[1], [1], [0], [0], [0, 0, 1, 0], [], []>} : vector<256x2xf32>, vector<256x2xf32>, vector<256x256xf32> -> vector<256x256xf32>
    %cst_20 = arith.constant dense<0xFF800000> : vector<256xf32>
    %32 = vector.multi_reduction <maximumf>, %31, %cst_20 [1] : vector<256x256xf32> to vector<256xf32>
    %33 = vector.shape_cast %32 : vector<256xf32> to vector<256x1xf32>
    %34 = vector.broadcast %33 : vector<256x1xf32> to vector<256x256xf32>
    %35 = arith.subf %31, %34 : vector<256x256xf32>
    %36 = math.exp %35 : vector<256x256xf32>
    %cst_21 = arith.constant dense<0.000000e+00> : vector<256xf32>
    %37 = vector.multi_reduction <add>, %36, %cst_21 [1] : vector<256x256xf32> to vector<256xf32>
    %38 = vector.shape_cast %37 : vector<256xf32> to vector<256x1xf32>
    %c0_22 = arith.constant 0 : index
    %c0_23 = arith.constant 0 : index
    %39 = vector.load %arg13[%c0_22, %c0_23] : memref<256x16xf32, #tpu.memory_space<vmem>>, vector<256x16xf32>
    %cst_24 = arith.constant dense<0.000000e+00> : vector<256x16xf32>
    %40 = tpu.matmul %36, %39, %cst_24 {dimension_numbers = #tpu.dot_dimension_numbers<[1], [0], [0], [1], [0, 0, 1, 1], [], []>} : vector<256x256xf32>, vector<256x16xf32>, vector<256x16xf32> -> vector<256x16xf32>
    %41 = tpu.reciprocal %38 {approx = true} : vector<256x1xf32> -> vector<256x1xf32>
    %42 = vector.broadcast %41 : vector<256x1xf32> to vector<256x16xf32>
    %43 = arith.mulf %40, %42 : vector<256x16xf32>
    %44 = arith.addf %7, %43 : vector<256x16xf32>
    %c0_25 = arith.constant 0 : index
    %c0_26 = arith.constant 0 : index
    %c0_27 = arith.constant 0 : index
    %45 = vector.load %arg11[%c0_25, %c0_26, %c0_27] : memref<1x256x16xf32, #tpu.memory_space<vmem>>, vector<1x256x16xf32>
    %46 = vector.shape_cast %45 : vector<1x256x16xf32> to vector<256x16xf32>
    %47 = vector.shape_cast %44 : vector<256x16xf32> to vector<1x256x16xf32>
    tpu.vector_store %arg11[%c0_25, %c0_26, %c0_27], %47 {strides = array<i32>} : memref<1x256x16xf32, #tpu.memory_space<vmem>>, vector<1x256x16xf32>,
    return
  }
  func.func @transform_0(%arg0: i32, %arg1: i32) -> (i32, i32, i32) {
    %c0_i32 = arith.constant 0 : i32
    %c0_i32_0 = arith.constant 0 : i32
    %c0_i32_1 = arith.constant 0 : i32
    return %arg0, %c0_i32, %c0_i32_0 : i32, i32, i32
  }
  func.func @transform_1(%arg0: i32, %arg1: i32) -> (i32, i32, i32) {
    %c0_i32 = arith.constant 0 : i32
    %c0_i32_0 = arith.constant 0 : i32
    %c0_i32_1 = arith.constant 0 : i32
    %c0_i32_2 = arith.constant 0 : i32
    return %c0_i32, %c0_i32_0, %c0_i32_1 : i32, i32, i32
  }
  func.func @transform_2(%arg0: i32, %arg1: i32) -> (i32, i32) {
    %c0_i32 = arith.constant 0 : i32
    %c0_i32_0 = arith.constant 0 : i32
    %c0_i32_1 = arith.constant 0 : i32
    return %c0_i32, %c0_i32_0 : i32, i32
  }
  func.func @transform_3(%arg0: i32, %arg1: i32) -> (i32, i32, i32) {
    %c0_i32 = arith.constant 0 : i32
    %c0_i32_0 = arith.constant 0 : i32
    %c0_i32_1 = arith.constant 0 : i32
    %c0_i32_2 = arith.constant 0 : i32
    return %c0_i32, %c0_i32_0, %c0_i32_1 : i32, i32, i32
  }
  func.func @transform_4(%arg0: i32, %arg1: i32) -> (i32, i32) {
    %c0_i32 = arith.constant 0 : i32
    %c0_i32_0 = arith.constant 0 : i32
    %c0_i32_1 = arith.constant 0 : i32
    return %c0_i32, %c0_i32_0 : i32, i32
  }
  func.func @transform_5(%arg0: i32, %arg1: i32) -> (i32, i32) {
    %c0_i32 = arith.constant 0 : i32
    %c0_i32_0 = arith.constant 0 : i32
    %c0_i32_1 = arith.constant 0 : i32
    return %c0_i32, %c0_i32_0 : i32, i32
  }
  func.func @transform_6(%arg0: i32, %arg1: i32) -> (i32, i32) {
    %c0_i32 = arith.constant 0 : i32
    %c0_i32_0 = arith.constant 0 : i32
    %c0_i32_1 = arith.constant 0 : i32
    return %c0_i32, %c0_i32_0 : i32, i32
  }
  func.func @transform_7(%arg0: i32, %arg1: i32) -> (i32, i32) {
    %c0_i32 = arith.constant 0 : i32
    %c0_i32_0 = arith.constant 0 : i32
    %c0_i32_1 = arith.constant 0 : i32
    return %c0_i32, %c0_i32_0 : i32, i32
  }
  func.func @transform_8(%arg0: i32, %arg1: i32) -> (i32, i32) {
    %c0_i32 = arith.constant 0 : i32
    %c0_i32_0 = arith.constant 0 : i32
    %c0_i32_1 = arith.constant 0 : i32
    return %c0_i32, %c0_i32_0 : i32, i32
  }
  func.func @transform_9(%arg0: i32, %arg1: i32) -> (i32, i32, i32) {
    %c0_i32 = arith.constant 0 : i32
    %c0_i32_0 = arith.constant 0 : i32
    return %arg0, %arg1, %c0_i32 : i32, i32, i32
  }
}

</mosaic_0001>

<llo_original>
// kernel: tpu_custom_call.1
$region0: #{tpu_custom_call.1}
  #allocation0 [shape = 'u32[]', space=smem, size = 0x4, offset = 0x4, fixed_abs, tag = 'smem constant byte address 0x4 - core index']
  #allocation1 [shape = 'u32[144,128]{1,0:T(1,128)}', space=vmem, size = 0x12000, scoped, tag = 'internal scratch']
  #allocation2 [shape = 'f32[256,2]{1,0:T(8,128)}', space=vmem, size = 0x20000, scoped, tag = 'scratch operand']
  #allocation3 [shape = 'f32[256,16]{1,0:T(8,128)}', space=vmem, size = 0x20000, scoped, tag = 'scratch operand']
  %s0 = inlined_call_operand.vmem [shape: f32[2,256,16], index: 0, kind: input, shape index: {}]
  %s1 = inlined_call_operand.vmem [shape: f32[3,16,2], index: 1, kind: input, shape index: {}]
  %s2 = inlined_call_operand.vmem [shape: f32[1,2], index: 2, kind: input, shape index: {}]
  %s3 = inlined_call_operand.vmem [shape: f32[3,16,2], index: 3, kind: input, shape index: {}]
  %s4 = inlined_call_operand.vmem [shape: f32[1,2], index: 4, kind: input, shape index: {}]
  %s5 = inlined_call_operand.vmem [shape: f32[16,16], index: 5, kind: input, shape index: {}]
  %s6 = inlined_call_operand.vmem [shape: f32[1,16], index: 6, kind: input, shape index: {}]
  %s7 = inlined_call_operand.vmem [shape: f32[256,1], index: 7, kind: input, shape index: {}]
  %s8 = inlined_call_operand.vmem [shape: f32[256,1], index: 8, kind: input, shape index: {}]
  %s9 = inlined_call_operand.vmem [shape: f32[2,256,16], index: 9, kind: output, shape index: {}]
  %s10 = sld [smem:[#allocation0]]
  $region73: #{tpu_custom_call.1} parent=0
    _
  %s12 = ssub.s32 1, %s10
  %s13 = scalar_select 0, %s12, %s10
  loop: start=0, step=1, limit=4
  $region2: #{tpu_custom_call.1} parent=0 // loop_pre_header
    _
  $region3: #{tpu_custom_call.1} parent=0 // loop_header
    %s15 = sphi 0, %s19
    %p16 = scmp.ge.s32.totalorder %s15, 4
    %s22 = sphi 0, %s34
    %s23 = sphi 0, %s30
    %s24 = sphi 0, %s22
    %s25 = sphi 0, %s23
    %s26 = sphi 0, %s24
    %s27 = sphi 0, %s25
    %s37 = sphi 0, %s39
    %s40 = sphi 0, %s37
    %s41 = sphi 0, %s40
    %s57 = sphi 0, %s41
    %s61 = sphi 0, %s61
    %s63 = sphi 0, %s61
    %s64 = sphi 0, %s63
    %s78 = sphi 0, %s64
    %s82 = sphi 0, %s82
    %s84 = sphi 0, %s82
    %s85 = sphi 0, %s84
    %s99 = sphi 0, %s85
    %s103 = sphi 0, %s103
    %s105 = sphi 0, %s103
    %s106 = sphi 0, %s105
    %s120 = sphi 0, %s106
    %s124 = sphi 0, %s124
    %s126 = sphi 0, %s124
    %s127 = sphi 0, %s126
    %s141 = sphi 0, %s127
    %s145 = sphi 0, %s145
    %s147 = sphi 0, %s145
    %s148 = sphi 0, %s147
    %s162 = sphi 0, %s148
    %s166 = sphi 0, %s166
    %s168 = sphi 0, %s166
    %s169 = sphi 0, %s168
    %s183 = sphi 0, %s169
    %s187 = sphi 0, %s187
    %s189 = sphi 0, %s187
    %s190 = sphi 0, %s189
    %s204 = sphi 0, %s190
    %s208 = sphi 0, %s208
    %s210 = sphi 0, %s208
    %s211 = sphi 0, %s210
    %s225 = sphi 0, %s211
    %s233 = sphi 0, %s235
    %s236 = sphi 0, %s233
    %s237 = sphi 0, %s236
    %s253 = sphi 0, %s237
  $region4: #{tpu_custom_call.1} parent=0 // loop_header_branch
    %18 = sbr.rel (%p16) target = $region8
  $region5: #{tpu_custom_call.1} parent=0 // loop_body
    %s20 = ssub.s32 %s15, 1
    %s21 = ssub.s32 %s15, 2
    %s28 = sadd.s32 1, %s23
    %p29 = scmp.ge.s32.totalorder %s28, 1
    %s30 = scalar_select %p29, 0, %s28
    %s31 = sadd.s32 1, %s22
    %s32 = scalar_select %p29, %s31, %s22
    %p33 = scmp.ge.s32.totalorder %s32, 2
    %s34 = scalar_select %p33, 0, %s32
    %s35 = ssub.s32 %s22, %s34
    %p36 = scmp.eq.s32.totalorder %s35, 0
    %s38 = sadd.s32 %s37, 1
    %s39 = scalar_select %p36, %s37, %s38
    %p42 = pneg %p36
    %p43 = scmp.eq.s32.totalorder %s15, 1
    %p44 = por %p42, %p43
    %p45 = scmp.ne.s32.totalorder %s37, %s40
    %p46 = scmp.eq.s32.totalorder %s15, 0
    %p47 = por %p45, %p46
    %p48 = scmp.ne.s32.totalorder %s37, %s40
    %p49 = scmp.eq.s32.totalorder %s20, 1
    %p50 = por %p48, %p49
    %p51 = scmp.ne.s32.totalorder %s40, %s41
    %p52 = scmp.eq.s32.totalorder %s20, 0
    %p53 = por %p51, %p52
    %p54 = scmp.ne.s32.totalorder %s40, %s41
    %p55 = scmp.eq.s32.totalorder %s21, 1
    %p56 = por %p54, %p55
    %p58 = scmp.ne.s32.totalorder %s41, %s57
    %p59 = scmp.eq.s32.totalorder %s21, 0
    %p60 = por %p58, %p59
    %s62 = sadd.s32 %s61, 1
    %p65 = scmp.eq.s32.totalorder %s15, 1
    %p66 = scmp.ne.s32.totalorder %s61, %s63
    %p67 = scmp.eq.s32.totalorder %s15, 0
    %p68 = por %p66, %p67
    %p69 = scmp.ne.s32.totalorder %s61, %s63
    %p70 = scmp.eq.s32.totalorder %s20, 1
    %p71 = por %p69, %p70
    %p72 = scmp.ne.s32.totalorder %s63, %s64
    %p73 = scmp.eq.s32.totalorder %s20, 0
    %p74 = por %p72, %p73
    %p75 = scmp.ne.s32.totalorder %s63, %s64
    %p76 = scmp.eq.s32.totalorder %s21, 1
    %p77 = por %p75, %p76
    %p79 = scmp.ne.s32.totalorder %s64, %s78
    %p80 = scmp.eq.s32.totalorder %s21, 0
    %p81 = por %p79, %p80
    %s83 = sadd.s32 %s82, 1
    %p86 = scmp.eq.s32.totalorder %s15, 1
    %p87 = scmp.ne.s32.totalorder %s82, %s84
    %p88 = scmp.eq.s32.totalorder %s15, 0
    %p89 = por %p87, %p88
    %p90 = scmp.ne.s32.totalorder %s82, %s84
    %p91 = scmp.eq.s32.totalorder %s20, 1
    %p92 = por %p90, %p91
    %p93 = scmp.ne.s32.totalorder %s84, %s85
    %p94 = scmp.eq.s32.totalorder %s20, 0
    %p95 = por %p93, %p94
    %p96 = scmp.ne.s32.totalorder %s84, %s85
    %p97 = scmp.eq.s32.totalorder %s21, 1
    %p98 = por %p96, %p97
    %p100 = scmp.ne.s32.totalorder %s85, %s99
    %p101 = scmp.eq.s32.totalorder %s21, 0
    %p102 = por %p100, %p101
    %s104 = sadd.s32 %s103, 1
    %p107 = scmp.eq.s32.totalorder %s15, 1
    %p108 = scmp.ne.s32.totalorder %s103, %s105
    %p109 = scmp.eq.s32.totalorder %s15, 0
    %p110 = por %p108, %p109
    %p111 = scmp.ne.s32.totalorder %s103, %s105
    %p112 = scmp.eq.s32.totalorder %s20, 1
    %p113 = por %p111, %p112
    %p114 = scmp.ne.s32.totalorder %s105, %s106
    %p115 = scmp.eq.s32.totalorder %s20, 0
    %p116 = por %p114, %p115
    %p117 = scmp.ne.s32.totalorder %s105, %s106
    %p118 = scmp.eq.s32.totalorder %s21, 1
    %p119 = por %p117, %p118
    %p121 = scmp.ne.s32.totalorder %s106, %s120
    %p122 = scmp.eq.s32.totalorder %s21, 0
    %p123 = por %p121, %p122
    %s125 = sadd.s32 %s124, 1
    %p128 = scmp.eq.s32.totalorder %s15, 1
    %p129 = scmp.ne.s32.totalorder %s124, %s126
    %p130 = scmp.eq.s32.totalorder %s15, 0
    %p131 = por %p129, %p130
    %p132 = scmp.ne.s32.totalorder %s124, %s126
    %p133 = scmp.eq.s32.totalorder %s20, 1
    %p134 = por %p132, %p133
    %p135 = scmp.ne.s32.totalorder %s126, %s127
    %p136 = scmp.eq.s32.totalorder %s20, 0
    %p137 = por %p135, %p136
    %p138 = scmp.ne.s32.totalorder %s126, %s127
    %p139 = scmp.eq.s32.totalorder %s21, 1
    %p140 = por %p138, %p139
    %p142 = scmp.ne.s32.totalorder %s127, %s141
    %p143 = scmp.eq.s32.totalorder %s21, 0
    %p144 = por %p142, %p143
    %s146 = sadd.s32 %s145, 1
    %p149 = scmp.eq.s32.totalorder %s15, 1
    %p150 = scmp.ne.s32.totalorder %s145, %s147
    %p151 = scmp.eq.s32.totalorder %s15, 0
    %p152 = por %p150, %p151
    %p153 = scmp.ne.s32.totalorder %s145, %s147
    %p154 = scmp.eq.s32.totalorder %s20, 1
    %p155 = por %p153, %p154
    %p156 = scmp.ne.s32.totalorder %s147, %s148
    %p157 = scmp.eq.s32.totalorder %s20, 0
    %p158 = por %p156, %p157
    %p159 = scmp.ne.s32.totalorder %s147, %s148
    %p160 = scmp.eq.s32.totalorder %s21, 1
    %p161 = por %p159, %p160
    %p163 = scmp.ne.s32.totalorder %s148, %s162
    %p164 = scmp.eq.s32.totalorder %s21, 0
    %p165 = por %p163, %p164
    %s167 = sadd.s32 %s166, 1
    %p170 = scmp.eq.s32.totalorder %s15, 1
    %p171 = scmp.ne.s32.totalorder %s166, %s168
    %p172 = scmp.eq.s32.totalorder %s15, 0
    %p173 = por %p171, %p172
    %p174 = scmp.ne.s32.totalorder %s166, %s168
    %p175 = scmp.eq.s32.totalorder %s20, 1
    %p176 = por %p174, %p175
    %p177 = scmp.ne.s32.totalorder %s168, %s169
    %p178 = scmp.eq.s32.totalorder %s20, 0
    %p179 = por %p177, %p178
    %p180 = scmp.ne.s32.totalorder %s168, %s169
    %p181 = scmp.eq.s32.totalorder %s21, 1
    %p182 = por %p180, %p181
    %p184 = scmp.ne.s32.totalorder %s169, %s183
    %p185 = scmp.eq.s32.totalorder %s21, 0
    %p186 = por %p184, %p185
    %s188 = sadd.s32 %s187, 1
    %p191 = scmp.eq.s32.totalorder %s15, 1
    %p192 = scmp.ne.s32.totalorder %s187, %s189
    %p193 = scmp.eq.s32.totalorder %s15, 0
    %p194 = por %p192, %p193
    %p195 = scmp.ne.s32.totalorder %s187, %s189
    %p196 = scmp.eq.s32.totalorder %s20, 1
    %p197 = por %p195, %p196
    %p198 = scmp.ne.s32.totalorder %s189, %s190
    %p199 = scmp.eq.s32.totalorder %s20, 0
    %p200 = por %p198, %p199
    %p201 = scmp.ne.s32.totalorder %s189, %s190
    %p202 = scmp.eq.s32.totalorder %s21, 1
    %p203 = por %p201, %p202
    %p205 = scmp.ne.s32.totalorder %s190, %s204
    %p206 = scmp.eq.s32.totalorder %s21, 0
    %p207 = por %p205, %p206
    %s209 = sadd.s32 %s208, 1
    %p212 = scmp.eq.s32.totalorder %s15, 1
    %p213 = scmp.ne.s32.totalorder %s208, %s210
    %p214 = scmp.eq.s32.totalorder %s15, 0
    %p215 = por %p213, %p214
    %p216 = scmp.ne.s32.totalorder %s208, %s210
    %p217 = scmp.eq.s32.totalorder %s20, 1
    %p218 = por %p216, %p217
    %p219 = scmp.ne.s32.totalorder %s210, %s211
    %p220 = scmp.eq.s32.totalorder %s20, 0
    %p221 = por %p219, %p220
    %p222 = scmp.ne.s32.totalorder %s210, %s211
    %p223 = scmp.eq.s32.totalorder %s21, 1
    %p224 = por %p222, %p223
    %p226 = scmp.ne.s32.totalorder %s211, %s225
    %p227 = scmp.eq.s32.totalorder %s21, 0
    %p228 = por %p226, %p227
    %s229 = ssub.s32 %s22, %s34
    %s230 = ssub.s32 %s23, %s30
    %s231 = sor.u32 %s229, %s230
    %p232 = scmp.eq.s32.totalorder %s231, 0
    %s234 = sadd.s32 %s233, 1
    %s235 = scalar_select %p232, %s233, %s234
    %p238 = pneg %p232
    %p239 = scmp.eq.s32.totalorder %s15, 1
    %p240 = por %p238, %p239
    %p241 = scmp.ne.s32.totalorder %s233, %s236
    %p242 = scmp.eq.s32.totalorder %s15, 0
    %p243 = por %p241, %p242
    %p244 = scmp.ne.s32.totalorder %s233, %s236
    %p245 = scmp.eq.s32.totalorder %s20, 1
    %p246 = por %p244, %p245
    %p247 = scmp.ne.s32.totalorder %s236, %s237
    %p248 = scmp.eq.s32.totalorder %s20, 0
    %p249 = por %p247, %p248
    %p250 = scmp.ne.s32.totalorder %s236, %s237
    %p251 = scmp.eq.s32.totalorder %s21, 1
    %p252 = por %p250, %p251
    %p254 = scmp.ne.s32.totalorder %s237, %s253
    %p255 = scmp.eq.s32.totalorder %s21, 0
    %p256 = por %p254, %p255
    %p257 = scmp.le.s32.totalorder 1, %s15
    %p258 = scmp.lt.s32.totalorder %s15, 3
    %p259 = pnand %p257, %p258
    %p260 = pneg %p259
    // Predicated region
    $region9: #{tpu_custom_call.1} parent=5 // pred_check
      _
    $region10: #{tpu_custom_call.1} parent=5 // pred_check_branch
      %262 = sbr.rel (%p259) target = $region12
    $region11: #{tpu_custom_call.1} parent=5 // pred_region
      %s263 = ssub.s32 %s15, 1
      // Predicated region
      $region13: #{tpu_custom_call.1} parent=11 // pred_check
        %p264 = pneg %p74
      $region14: #{tpu_custom_call.1} parent=11 // pred_check_branch
        %266 = sbr.rel (%p264) target = $region16
      $region15: #{tpu_custom_call.1} parent=11 // pred_region
        _
      $region16: #{tpu_custom_call.1} parent=11 // pred_fallthru
        _
      // Predicated region
      $region17: #{tpu_custom_call.1} parent=11 // pred_check
        %p267 = pneg %p95
      $region18: #{tpu_custom_call.1} parent=11 // pred_check_branch
        %269 = sbr.rel (%p267) target = $region20
      $region19: #{tpu_custom_call.1} parent=11 // pred_region
        _
      $region20: #{tpu_custom_call.1} parent=11 // pred_fallthru
        _
      // Predicated region
      $region21: #{tpu_custom_call.1} parent=11 // pred_check
        %p270 = pneg %p116
      $region22: #{tpu_custom_call.1} parent=11 // pred_check_branch
        %272 = sbr.rel (%p270) target = $region24
      $region23: #{tpu_custom_call.1} parent=11 // pred_region
        _
      $region24: #{tpu_custom_call.1} parent=11 // pred_fallthru
        _
      // Predicated region
      $region25: #{tpu_custom_call.1} parent=11 // pred_check
        %p273 = pneg %p137
      $region26: #{tpu_custom_call.1} parent=11 // pred_check_branch
        %275 = sbr.rel (%p273) target = $region28
      $region27: #{tpu_custom_call.1} parent=11 // pred_region
        _
      $region28: #{tpu_custom_call.1} parent=11 // pred_fallthru
        _
      // Predicated region
      $region29: #{tpu_custom_call.1} parent=11 // pred_check
        %p276 = pneg %p158
      $region30: #{tpu_custom_call.1} parent=11 // pred_check_branch
        %278 = sbr.rel (%p276) target = $region32
      $region31: #{tpu_custom_call.1} parent=11 // pred_region
        _
      $region32: #{tpu_custom_call.1} parent=11 // pred_fallthru
        _
      // Predicated region
      $region33: #{tpu_custom_call.1} parent=11 // pred_check
        %p279 = pneg %p179
      $region34: #{tpu_custom_call.1} parent=11 // pred_check_branch
        %281 = sbr.rel (%p279) target = $region36
      $region35: #{tpu_custom_call.1} parent=11 // pred_region
        _
      $region36: #{tpu_custom_call.1} parent=11 // pred_fallthru
        _
      // Predicated region
      $region37: #{tpu_custom_call.1} parent=11 // pred_check
        %p282 = pneg %p200
      $region38: #{tpu_custom_call.1} parent=11 // pred_check_branch
        %284 = sbr.rel (%p282) target = $region40
      $region39: #{tpu_custom_call.1} parent=11 // pred_region
        _
      $region40: #{tpu_custom_call.1} parent=11 // pred_fallthru
        _
      // Predicated region
      $region41: #{tpu_custom_call.1} parent=11 // pred_check
        %p285 = pneg %p221
      $region42: #{tpu_custom_call.1} parent=11 // pred_check_branch
        %287 = sbr.rel (%p285) target = $region44
      $region43: #{tpu_custom_call.1} parent=11 // pred_region
        _
      $region44: #{tpu_custom_call.1} parent=11 // pred_fallthru
        _
    $region12: #{tpu_custom_call.1} parent=5 // pred_fallthru
      _
    %p288 = scmp.lt.s32.totalorder %s15, 2
    // Predicated region
    $region45: #{tpu_custom_call.1} parent=5 // pred_check
      %p289 = pneg %p288
    $region46: #{tpu_custom_call.1} parent=5 // pred_check_branch
      %291 = sbr.rel (%p289) target = $region48
    $region47: #{tpu_custom_call.1} parent=5 // pred_region
      // Predicated region
      $region49: #{tpu_custom_call.1} parent=47 // pred_check
        %p292 = pneg %p47
      $region50: #{tpu_custom_call.1} parent=47 // pred_check_branch
        %294 = sbr.rel (%p292) target = $region52
      $region51: #{tpu_custom_call.1} parent=47 // pred_region
        %p295 = scmp.lt.s32.totalorder %s22, 1
        %s296 = scalar_select %p295, %s22, 1
        %s297 = smul.addr %s296, 32
        %s298 = smul.addr %s297, 8
        %s299 = scalar_lea.vmem %s0, %s298
      $region52: #{tpu_custom_call.1} parent=47 // pred_fallthru
        _
    $region48: #{tpu_custom_call.1} parent=5 // pred_fallthru
      _
    %p300 = scmp.le.s32.totalorder 1, %s15
    %p301 = scmp.lt.s32.totalorder %s15, 3
    %p302 = pnand %p300, %p301
    %p303 = pneg %p302
    // Predicated region
    $region53: #{tpu_custom_call.1} parent=5 // pred_check
      _
    $region54: #{tpu_custom_call.1} parent=5 // pred_check_branch
      %305 = sbr.rel (%p302) target = $region56
    $region55: #{tpu_custom_call.1} parent=5 // pred_region
      %s306 = ssub.s32 %s15, 1
      %p307 = scmp.lt.s32.totalorder %s24, 1
      %s308 = scalar_select %p307, %s24, 1
      %s309 = smul.addr %s308, 32
      %s310 = smul.addr %s309, 8
      %s311 = scalar_lea.vmem %s0, %s310
      %p312 = pneg %p53
      %p313 = pneg %p50
      %p314 = pneg %p74
      %p315 = pneg %p71
      %p316 = pneg %p95
      %p317 = pneg %p92
      %p318 = pneg %p116
      %p319 = pneg %p113
      %p320 = pneg %p137
      %p321 = pneg %p134
      %p322 = pneg %p158
      %p323 = pneg %p155
      %p324 = pneg %p179
      %p325 = pneg %p176
      %p326 = pneg %p200
      %p327 = pneg %p197
      %p328 = pneg %p221
      %p329 = pneg %p218
      %p330 = pneg %p249
      %p331 = pneg %p246
      %s332 = smul.u32 32, %s25
      %p333 = scmp.lt.s32.totalorder %s24, 1
      %s334 = scalar_select %p333, %s24, 1
      %p335 = scmp.lt.s32.totalorder %s332, 31
      %s336 = scalar_select %p335, %s332, 31
      %s337 = smul.addr %s334, 32
      %s338 = sadd.s32 %s336, %s337
      %s339 = smul.addr %s338, 8
      %s340 = scalar_lea.vmem %s9, %s339
      %p341 = scmp.lt.s32.totalorder %s24, 1
      %s342 = scalar_select %p341, %s24, 1
      %s343 = smul.addr %s342, 32
      %s344 = smul.addr %s343, 8
      %s345 = scalar_lea.vmem %s0, %s344
      %s346 = smul.u32 32, %s25
      %p347 = scmp.lt.s32.totalorder %s24, 1
      %s348 = scalar_select %p347, %s24, 1
      %p349 = scmp.lt.s32.totalorder %s346, 31
      %s350 = scalar_select %p349, %s346, 31
      %s351 = smul.addr %s348, 32
      %s352 = sadd.s32 %s350, %s351
      %s353 = smul.addr %s352, 8
      %s354 = scalar_lea.vmem %s9, %s353
      %s355 = smul.u32 32, %s25
      %p356 = scmp.eq.s32.totalorder %s25, 0
      // Predicated region
      $region57: #{tpu_custom_call.1} parent=55 // pred_check
        %p357 = pneg %p356
      $region58: #{tpu_custom_call.1} parent=55 // pred_check_branch
        %359 = sbr.rel (%p357) target = $region60
      $region59: #{tpu_custom_call.1} parent=55 // pred_region
        %v360 = vld [vmem:[%s345] sm:$0xff]
        %v361 = vld [vmem:[%s345 + $0x8] sm:$0xff]
        %v362 = vld [vmem:[%s345 + $0x10] sm:$0xff]
        %v363 = vld [vmem:[%s345 + $0x18] sm:$0xff]
        %v364 = vld [vmem:[%s345 + $0x20] sm:$0xff]
        %v365 = vld [vmem:[%s345 + $0x28] sm:$0xff]
        %v366 = vld [vmem:[%s345 + $0x30] sm:$0xff]
        %v367 = vld [vmem:[%s345 + $0x38] sm:$0xff]
        %v368 = vld [vmem:[%s345 + $0x40] sm:$0xff]
        %v369 = vld [vmem:[%s345 + $0x48] sm:$0xff]
        %v370 = vld [vmem:[%s345 + $0x50] sm:$0xff]
        %v371 = vld [vmem:[%s345 + $0x58] sm:$0xff]
        %v372 = vld [vmem:[%s345 + $0x60] sm:$0xff]
        %v373 = vld [vmem:[%s345 + $0x68] sm:$0xff]
        %v374 = vld [vmem:[%s345 + $0x70] sm:$0xff]
        %v375 = vld [vmem:[%s345 + $0x78] sm:$0xff]
        %v376 = vld [vmem:[%s345 + $0x80] sm:$0xff]
        %v377 = vld [vmem:[%s345 + $0x88] sm:$0xff]
        %v378 = vld [vmem:[%s345 + $0x90] sm:$0xff]
        %v379 = vld [vmem:[%s345 + $0x98] sm:$0xff]
        %v380 = vld [vmem:[%s345 + $0xa0] sm:$0xff]
        %v381 = vld [vmem:[%s345 + $0xa8] sm:$0xff]
        %v382 = vld [vmem:[%s345 + $0xb0] sm:$0xff]
        %v383 = vld [vmem:[%s345 + $0xb8] sm:$0xff]
        %v384 = vld [vmem:[%s345 + $0xc0] sm:$0xff]
        %v385 = vld [vmem:[%s345 + $0xc8] sm:$0xff]
        %v386 = vld [vmem:[%s345 + $0xd0] sm:$0xff]
        %v387 = vld [vmem:[%s345 + $0xd8] sm:$0xff]
        %v388 = vld [vmem:[%s345 + $0xe0] sm:$0xff]
        %v389 = vld [vmem:[%s345 + $0xe8] sm:$0xff]
        %v390 = vld [vmem:[%s345 + $0xf0] sm:$0xff]
        %v391 = vld [vmem:[%s345 + $0xf8] sm:$0xff]
        %s392 = scalar_lea.vmem %s3, 16
        %v393 = vld [vmem:[%s392] sm:$0xff]
        %v394 = vld [vmem:[%s392 + $0x8] sm:$0xff]
        %v395 = vld [vmem:[%s4] sm:$0x1]
        %v397 = vlaneseq
        %v398 = vshrl.u32 %v397, 7
        %v399 = vsub.s32 0, %v398
        %v400 = vrot.slane %v395, %v399
        %vm402 = vcmask 130048
        %v404 = vsel %vm402, %v360, 0
        %v407 = vsel %vm402, %v361, 0
        %v410 = vsel %vm402, %v362, 0
        %v413 = vsel %vm402, %v363, 0
        %v416 = vsel %vm402, %v364, 0
        %v419 = vsel %vm402, %v365, 0
        %v422 = vsel %vm402, %v366, 0
        %v425 = vsel %vm402, %v367, 0
        %v428 = vsel %vm402, %v368, 0
        %v431 = vsel %vm402, %v369, 0
        %v434 = vsel %vm402, %v370, 0
        %v437 = vsel %vm402, %v371, 0
        %v440 = vsel %vm402, %v372, 0
        %v443 = vsel %vm402, %v373, 0
        %v446 = vsel %vm402, %v374, 0
        %v449 = vsel %vm402, %v375, 0
        %v452 = vsel %vm402, %v376, 0
        %v455 = vsel %vm402, %v377, 0
        %v458 = vsel %vm402, %v378, 0
        %v461 = vsel %vm402, %v379, 0
        %v464 = vsel %vm402, %v380, 0
        %v467 = vsel %vm402, %v381, 0
        %v470 = vsel %vm402, %v382, 0
        %v473 = vsel %vm402, %v383, 0
        %v476 = vsel %vm402, %v384, 0
        %v479 = vsel %vm402, %v385, 0
        %v482 = vsel %vm402, %v386, 0
        %v485 = vsel %vm402, %v387, 0
        %v488 = vsel %vm402, %v388, 0
        %v491 = vsel %vm402, %v389, 0
        %v494 = vsel %vm402, %v390, 0
        %v497 = vsel %vm402, %v391, 0
        %499 = vmatprep.subr.mxu0 0.0
        %500 = vmatpush1.msra.mxu0 %v393
        %501 = vmatprep.subr.mxu0 0.0
        %502 = vmatpush1.msra.mxu0 %v394
        %503 = vmatprep.subr.mxu0 0.0
        %504 = vmatpush1.msra.mxu0 0.0
        %505 = vmatprep.subr.mxu0 0.0
        %506 = vmatpush1.msra.mxu0 0.0
        %507 = vmatprep.subr.mxu0 0.0
        %508 = vmatpush1.msra.mxu0 0.0
        %509 = vmatprep.subr.mxu0 0.0
        %510 = vmatpush1.msra.mxu0 0.0
        %511 = vmatprep.subr.mxu0 0.0
        %512 = vmatpush1.msra.mxu0 0.0
        %513 = vmatprep.subr.mxu0 0.0
        %514 = vmatpush1.msra.mxu0 0.0
        %515 = vmatprep.subr.mxu0 0.0
        %516 = vmatpush1.msra.mxu0 0.0
        %517 = vmatprep.subr.mxu0 0.0
        %518 = vmatpush1.msra.mxu0 0.0
        %519 = vmatprep.subr.mxu0 0.0
        %520 = vmatpush1.msra.mxu0 0.0
        %521 = vmatprep.subr.mxu0 0.0
        %522 = vmatpush1.msra.mxu0 0.0
        %523 = vmatprep.subr.mxu0 0.0
        %524 = vmatpush1.msra.mxu0 0.0
        %525 = vmatprep.subr.mxu0 0.0
        %526 = vmatpush1.msra.mxu0 0.0
        %527 = vmatprep.subr.mxu0 0.0
        %528 = vmatpush1.msra.mxu0 0.0
        %529 = vmatprep.subr.mxu0 0.0
        %530 = vmatpush1.msra.mxu0 0.0
        %531 = vmatprep.subr.mxu0 0.0
        %532 = vmatpush1.msra.mxu0 0.0
        %533 = vmatprep.subr.mxu0 0.0
        %534 = vmatpush1.msra.mxu0 0.0
        %535 = vmatprep.subr.mxu0 0.0
        %536 = vmatpush1.msra.mxu0 0.0
        %537 = vmatprep.subr.mxu0 0.0
        %538 = vmatpush1.msra.mxu0 0.0
        %539 = vmatprep.subr.mxu0 0.0
        %540 = vmatpush1.msra.mxu0 0.0
        %541 = vmatprep.subr.mxu0 0.0
        %542 = vmatpush1.msra.mxu0 0.0
        %543 = vmatprep.subr.mxu0 0.0
        %544 = vmatpush1.msra.mxu0 0.0
        %545 = vmatprep.subr.mxu0 0.0
        %546 = vmatpush1.msra.mxu0 0.0
        %547 = vmatprep.subr.mxu0 0.0
        %548 = vmatpush1.msra.mxu0 0.0
        %549 = vmatprep.subr.mxu0 0.0
        %550 = vmatpush1.msra.mxu0 0.0
        %551 = vmatprep.subr.mxu0 0.0
        %552 = vmatpush1.msra.mxu0 0.0
        %553 = vmatprep.subr.mxu0 0.0
        %554 = vmatpush1.msra.mxu0 0.0
        %555 = vmatprep.subr.mxu0 0.0
        %556 = vmatpush1.msra.mxu0 0.0
        %557 = vmatprep.subr.mxu0 0.0
        %558 = vmatpush1.msra.mxu0 0.0
        %559 = vmatprep.subr.mxu0 0.0
        %560 = vmatpush1.msra.mxu0 0.0
        %561 = vmatprep.subr.mxu0 0.0
        %562 = vmatpush1.msra.mxu0 0.0
        %563 = vmatprep.mubr.f32.mxu0 0.0
        %564 = vmatmul.mubr.f32.gmra.mrb[0].mxu0 %v404
        %v565 = vpop.f32.mrb[0].mxu0
        %v566 = vadd.f32 %v400, %v565
        %v567 = vpop.f32.mrb[0].mxu0
        %568 = vmatprep.mubr.f32.mxu0 0.0
        %569 = vmatmul.mubr.f32.gmra.mrb[0].mxu0 %v407
        %v570 = vpop.f32.mrb[0].mxu0
        %v571 = vadd.f32 %v400, %v570
        %v572 = vpop.f32.mrb[0].mxu0
        %573 = vmatprep.mubr.f32.mxu0 0.0
        %574 = vmatmul.mubr.f32.gmra.mrb[0].mxu0 %v410
        %v575 = vpop.f32.mrb[0].mxu0
        %v576 = vadd.f32 %v400, %v575
        %v577 = vpop.f32.mrb[0].mxu0
        %578 = vmatprep.mubr.f32.mxu0 0.0
        %579 = vmatmul.mubr.f32.gmra.mrb[0].mxu0 %v413
        %v580 = vpop.f32.mrb[0].mxu0
        %v581 = vadd.f32 %v400, %v580
        %v582 = vpop.f32.mrb[0].mxu0
        %583 = vmatprep.mubr.f32.mxu0 0.0
        %584 = vmatmul.mubr.f32.gmra.mrb[0].mxu0 %v416
        %v585 = vpop.f32.mrb[0].mxu0
        %v586 = vadd.f32 %v400, %v585
        %v587 = vpop.f32.mrb[0].mxu0
        %588 = vmatprep.mubr.f32.mxu0 0.0
        %589 = vmatmul.mubr.f32.gmra.mrb[0].mxu0 %v419
        %v590 = vpop.f32.mrb[0].mxu0
        %v591 = vadd.f32 %v400, %v590
        %v592 = vpop.f32.mrb[0].mxu0
        %593 = vmatprep.mubr.f32.mxu0 0.0
        %594 = vmatmul.mubr.f32.gmra.mrb[0].mxu0 %v422
        %v595 = vpop.f32.mrb[0].mxu0
        %v596 = vadd.f32 %v400, %v595
        %v597 = vpop.f32.mrb[0].mxu0
        %598 = vmatprep.mubr.f32.mxu0 0.0
        %599 = vmatmul.mubr.f32.gmra.mrb[0].mxu0 %v425
        %v600 = vpop.f32.mrb[0].mxu0
        %v601 = vadd.f32 %v400, %v600
        %v602 = vpop.f32.mrb[0].mxu0
        %603 = vmatprep.mubr.f32.mxu0 0.0
        %604 = vmatmul.mubr.f32.gmra.mrb[0].mxu0 %v428
        %v605 = vpop.f32.mrb[0].mxu0
        %v606 = vadd.f32 %v400, %v605
        %v607 = vpop.f32.mrb[0].mxu0
        %608 = vmatprep.mubr.f32.mxu0 0.0
        %609 = vmatmul.mubr.f32.gmra.mrb[0].mxu0 %v431
        %v610 = vpop.f32.mrb[0].mxu0
        %v611 = vadd.f32 %v400, %v610
        %v612 = vpop.f32.mrb[0].mxu0
        %613 = vmatprep.mubr.f32.mxu0 0.0
        %614 = vmatmul.mubr.f32.gmra.mrb[0].mxu0 %v434
        %v615 = vpop.f32.mrb[0].mxu0
        %v616 = vadd.f32 %v400, %v615
        %v617 = vpop.f32.mrb[0].mxu0
        %618 = vmatprep.mubr.f32.mxu0 0.0
        %619 = vmatmul.mubr.f32.gmra.mrb[0].mxu0 %v437
        %v620 = vpop.f32.mrb[0].mxu0
        %v621 = vadd.f32 %v400, %v620
        %v622 = vpop.f32.mrb[0].mxu0
        %623 = vmatprep.mubr.f32.mxu0 0.0
        %624 = vmatmul.mubr.f32.gmra.mrb[0].mxu0 %v440
        %v625 = vpop.f32.mrb[0].mxu0
        %v626 = vadd.f32 %v400, %v625
        %v627 = vpop.f32.mrb[0].mxu0
        %628 = vmatprep.mubr.f32.mxu0 0.0
        %629 = vmatmul.mubr.f32.gmra.mrb[0].mxu0 %v443
        %v630 = vpop.f32.mrb[0].mxu0
        %v631 = vadd.f32 %v400, %v630
        %v632 = vpop.f32.mrb[0].mxu0
        %633 = vmatprep.mubr.f32.mxu0 0.0
        %634 = vmatmul.mubr.f32.gmra.mrb[0].mxu0 %v446
        %v635 = vpop.f32.mrb[0].mxu0
        %v636 = vadd.f32 %v400, %v635
        %v637 = vpop.f32.mrb[0].mxu0
        %638 = vmatprep.mubr.f32.mxu0 0.0
        %639 = vmatmul.mubr.f32.gmra.mrb[0].mxu0 %v449
        %v640 = vpop.f32.mrb[0].mxu0
        %v641 = vadd.f32 %v400, %v640
        %v642 = vpop.f32.mrb[0].mxu0
        %643 = vmatprep.mubr.f32.mxu0 0.0
        %644 = vmatmul.mubr.f32.gmra.mrb[0].mxu0 %v452
        %v645 = vpop.f32.mrb[0].mxu0
        %v646 = vadd.f32 %v400, %v645
        %v647 = vpop.f32.mrb[0].mxu0
        %648 = vmatprep.mubr.f32.mxu0 0.0
        %649 = vmatmul.mubr.f32.gmra.mrb[0].mxu0 %v455
        %v650 = vpop.f32.mrb[0].mxu0
        %v651 = vadd.f32 %v400, %v650
        %v652 = vpop.f32.mrb[0].mxu0
        %653 = vmatprep.mubr.f32.mxu0 0.0
        %654 = vmatmul.mubr.f32.gmra.mrb[0].mxu0 %v458
        %v655 = vpop.f32.mrb[0].mxu0
        %v656 = vadd.f32 %v400, %v655
        %v657 = vpop.f32.mrb[0].mxu0
        %658 = vmatprep.mubr.f32.mxu0 0.0
        %659 = vmatmul.mubr.f32.gmra.mrb[0].mxu0 %v461
        %v660 = vpop.f32.mrb[0].mxu0
        %v661 = vadd.f32 %v400, %v660
        %v662 = vpop.f32.mrb[0].mxu0
        %663 = vmatprep.mubr.f32.mxu0 0.0
        %664 = vmatmul.mubr.f32.gmra.mrb[0].mxu0 %v464
        %v665 = vpop.f32.mrb[0].mxu0
        %v666 = vadd.f32 %v400, %v665
        %v667 = vpop.f32.mrb[0].mxu0
        %668 = vmatprep.mubr.f32.mxu0 0.0
        %669 = vmatmul.mubr.f32.gmra.mrb[0].mxu0 %v467
        %v670 = vpop.f32.mrb[0].mxu0
        %v671 = vadd.f32 %v400, %v670
        %v672 = vpop.f32.mrb[0].mxu0
        %673 = vmatprep.mubr.f32.mxu0 0.0
        %674 = vmatmul.mubr.f32.gmra.mrb[0].mxu0 %v470
        %v675 = vpop.f32.mrb[0].mxu0
        %v676 = vadd.f32 %v400, %v675
        %v677 = vpop.f32.mrb[0].mxu0
        %678 = vmatprep.mubr.f32.mxu0 0.0
        %679 = vmatmul.mubr.f32.gmra.mrb[0].mxu0 %v473
        %v680 = vpop.f32.mrb[0].mxu0
        %v681 = vadd.f32 %v400, %v680
        %v682 = vpop.f32.mrb[0].mxu0
        %683 = vmatprep.mubr.f32.mxu0 0.0
        %684 = vmatmul.mubr.f32.gmra.mrb[0].mxu0 %v476
        %v685 = vpop.f32.mrb[0].mxu0
        %v686 = vadd.f32 %v400, %v685
        %v687 = vpop.f32.mrb[0].mxu0
        %688 = vmatprep.mubr.f32.mxu0 0.0
        %689 = vmatmul.mubr.f32.gmra.mrb[0].mxu0 %v479
        %v690 = vpop.f32.mrb[0].mxu0
        %v691 = vadd.f32 %v400, %v690
        %v692 = vpop.f32.mrb[0].mxu0
        %693 = vmatprep.mubr.f32.mxu0 0.0
        %694 = vmatmul.mubr.f32.gmra.mrb[0].mxu0 %v482
        %v695 = vpop.f32.mrb[0].mxu0
        %v696 = vadd.f32 %v400, %v695
        %v697 = vpop.f32.mrb[0].mxu0
        %698 = vmatprep.mubr.f32.mxu0 0.0
        %699 = vmatmul.mubr.f32.gmra.mrb[0].mxu0 %v485
        %v700 = vpop.f32.mrb[0].mxu0
        %v701 = vadd.f32 %v400, %v700
        %v702 = vpop.f32.mrb[0].mxu0
        %703 = vmatprep.mubr.f32.mxu0 0.0
        %704 = vmatmul.mubr.f32.gmra.mrb[0].mxu0 %v488
        %v705 = vpop.f32.mrb[0].mxu0
        %v706 = vadd.f32 %v400, %v705
        %v707 = vpop.f32.mrb[0].mxu0
        %708 = vmatprep.mubr.f32.mxu0 0.0
        %709 = vmatmul.mubr.f32.gmra.mrb[0].mxu0 %v491
        %v710 = vpop.f32.mrb[0].mxu0
        %v711 = vadd.f32 %v400, %v710
        %v712 = vpop.f32.mrb[0].mxu0
        %713 = vmatprep.mubr.f32.mxu0 0.0
        %714 = vmatmul.mubr.f32.gmra.mrb[0].mxu0 %v494
        %v715 = vpop.f32.mrb[0].mxu0
        %v716 = vadd.f32 %v400, %v715
        %v717 = vpop.f32.mrb[0].mxu0
        %718 = vmatprep.mubr.f32.mxu0 0.0
        %719 = vmatmul.mubr.f32.gmra.mrb[0].mxu0 %v497
        %v720 = vpop.f32.mrb[0].mxu0
        %v721 = vadd.f32 %v400, %v720
        %v722 = vpop.f32.mrb[0].mxu0
        %723 = vdwg.mxu0
        %vm724 = vcmask 15360
        %725 = vst.msk [vmem:[#allocation2] sm:$0xff] %vm724, %v566
        %726 = vst.msk [vmem:[#allocation2 + $0x8] sm:$0xff] %vm724, %v571
        %727 = vst.msk [vmem:[#allocation2 + $0x10] sm:$0xff] %vm724, %v576
        %728 = vst.msk [vmem:[#allocation2 + $0x18] sm:$0xff] %vm724, %v581
        %729 = vst.msk [vmem:[#allocation2 + $0x20] sm:$0xff] %vm724, %v586
        %730 = vst.msk [vmem:[#allocation2 + $0x28] sm:$0xff] %vm724, %v591
        %731 = vst.msk [vmem:[#allocation2 + $0x30] sm:$0xff] %vm724, %v596
        %732 = vst.msk [vmem:[#allocation2 + $0x38] sm:$0xff] %vm724, %v601
        %733 = vst.msk [vmem:[#allocation2 + $0x40] sm:$0xff] %vm724, %v606
        %734 = vst.msk [vmem:[#allocation2 + $0x48] sm:$0xff] %vm724, %v611
        %735 = vst.msk [vmem:[#allocation2 + $0x50] sm:$0xff] %vm724, %v616
        %736 = vst.msk [vmem:[#allocation2 + $0x58] sm:$0xff] %vm724, %v621
        %737 = vst.msk [vmem:[#allocation2 + $0x60] sm:$0xff] %vm724, %v626
        %738 = vst.msk [vmem:[#allocation2 + $0x68] sm:$0xff] %vm724, %v631
        %739 = vst.msk [vmem:[#allocation2 + $0x70] sm:$0xff] %vm724, %v636
        %740 = vst.msk [vmem:[#allocation2 + $0x78] sm:$0xff] %vm724, %v641
        %741 = vst.msk [vmem:[#allocation2 + $0x80] sm:$0xff] %vm724, %v646
        %742 = vst.msk [vmem:[#allocation2 + $0x88] sm:$0xff] %vm724, %v651
        %743 = vst.msk [vmem:[#allocation2 + $0x90] sm:$0xff] %vm724, %v656
        %744 = vst.msk [vmem:[#allocation2 + $0x98] sm:$0xff] %vm724, %v661
        %745 = vst.msk [vmem:[#allocation2 + $0xa0] sm:$0xff] %vm724, %v666
        %746 = vst.msk [vmem:[#allocation2 + $0xa8] sm:$0xff] %vm724, %v671
        %747 = vst.msk [vmem:[#allocation2 + $0xb0] sm:$0xff] %vm724, %v676
        %748 = vst.msk [vmem:[#allocation2 + $0xb8] sm:$0xff] %vm724, %v681
        %749 = vst.msk [vmem:[#allocation2 + $0xc0] sm:$0xff] %vm724, %v686
        %750 = vst.msk [vmem:[#allocation2 + $0xc8] sm:$0xff] %vm724, %v691
        %751 = vst.msk [vmem:[#allocation2 + $0xd0] sm:$0xff] %vm724, %v696
        %752 = vst.msk [vmem:[#allocation2 + $0xd8] sm:$0xff] %vm724, %v701
        %753 = vst.msk [vmem:[#allocation2 + $0xe0] sm:$0xff] %vm724, %v706
        %754 = vst.msk [vmem:[#allocation2 + $0xe8] sm:$0xff] %vm724, %v711
        %755 = vst.msk [vmem:[#allocation2 + $0xf0] sm:$0xff] %vm724, %v716
        %756 = vst.msk [vmem:[#allocation2 + $0xf8] sm:$0xff] %vm724, %v721
        %v757 = vld [vmem:[#allocation2 + $0x10] sm:$0xff]
        %v758 = vld [vmem:[#allocation2 + $0x18] sm:$0xff]
        %v759 = vld [vmem:[#allocation2 + $0x20] sm:$0xff]
        %v760 = vld [vmem:[#allocation2 + $0x28] sm:$0xff]
        %v761 = vld [vmem:[#allocation2 + $0x30] sm:$0xff]
        %v762 = vld [vmem:[#allocation2 + $0x38] sm:$0xff]
        %v763 = vld [vmem:[#allocation2 + $0x40] sm:$0xff]
        %v764 = vld [vmem:[#allocation2 + $0x48] sm:$0xff]
        %v765 = vld [vmem:[#allocation2 + $0x50] sm:$0xff]
        %v766 = vld [vmem:[#allocation2 + $0x58] sm:$0xff]
        %v767 = vld [vmem:[#allocation2 + $0x60] sm:$0xff]
        %v768 = vld [vmem:[#allocation2 + $0x68] sm:$0xff]
        %v769 = vld [vmem:[#allocation2 + $0x70] sm:$0xff]
        %v770 = vld [vmem:[#allocation2 + $0x78] sm:$0xff]
        %v771 = vld [vmem:[#allocation2 + $0x80] sm:$0xff]
        %v772 = vld [vmem:[#allocation2 + $0x88] sm:$0xff]
        %v773 = vld [vmem:[#allocation2 + $0x90] sm:$0xff]
        %v774 = vld [vmem:[#allocation2 + $0x98] sm:$0xff]
        %v775 = vld [vmem:[#allocation2 + $0xa0] sm:$0xff]
        %v776 = vld [vmem:[#allocation2 + $0xa8] sm:$0xff]
        %v777 = vld [vmem:[#allocation2 + $0xb0] sm:$0xff]
        %v778 = vld [vmem:[#allocation2 + $0xb8] sm:$0xff]
        %v779 = vld [vmem:[#allocation2 + $0xc0] sm:$0xff]
        %v780 = vld [vmem:[#allocation2 + $0xc8] sm:$0xff]
        %v781 = vld [vmem:[#allocation2 + $0xd0] sm:$0xff]
        %v782 = vld [vmem:[#allocation2 + $0xd8] sm:$0xff]
        %v783 = vld [vmem:[#allocation2 + $0xe0] sm:$0xff]
        %v784 = vld [vmem:[#allocation2 + $0xe8] sm:$0xff]
        %v785 = vld [vmem:[#allocation2 + $0xf0] sm:$0xff]
        %v786 = vld [vmem:[#allocation2 + $0xf8] sm:$0xff]
        %v787 = vld [vmem:[%s3] sm:$0xff]
        %v788 = vld [vmem:[%s3 + $0x8] sm:$0xff]
        %789 = vmatprep.subr.mxu0 0.0
        %790 = vmatpush1.msra.mxu0 %v787
        %791 = vmatprep.subr.mxu0 0.0
        %792 = vmatpush1.msra.mxu0 %v788
        %793 = vmatprep.subr.mxu0 0.0
        %794 = vmatpush1.msra.mxu0 0.0
        %795 = vmatprep.subr.mxu0 0.0
        %796 = vmatpush1.msra.mxu0 0.0
        %797 = vmatprep.subr.mxu0 0.0
        %798 = vmatpush1.msra.mxu0 0.0
        %799 = vmatprep.subr.mxu0 0.0
        %800 = vmatpush1.msra.mxu0 0.0
        %801 = vmatprep.subr.mxu0 0.0
        %802 = vmatpush1.msra.mxu0 0.0
        %803 = vmatprep.subr.mxu0 0.0
        %804 = vmatpush1.msra.mxu0 0.0
        %805 = vmatprep.subr.mxu0 0.0
        %806 = vmatpush1.msra.mxu0 0.0
        %807 = vmatprep.subr.mxu0 0.0
        %808 = vmatpush1.msra.mxu0 0.0
        %809 = vmatprep.subr.mxu0 0.0
        %810 = vmatpush1.msra.mxu0 0.0
        %811 = vmatprep.subr.mxu0 0.0
        %812 = vmatpush1.msra.mxu0 0.0
        %813 = vmatprep.subr.mxu0 0.0
        %814 = vmatpush1.msra.mxu0 0.0
        %815 = vmatprep.subr.mxu0 0.0
        %816 = vmatpush1.msra.mxu0 0.0
        %817 = vmatprep.subr.mxu0 0.0
        %818 = vmatpush1.msra.mxu0 0.0
        %819 = vmatprep.subr.mxu0 0.0
        %820 = vmatpush1.msra.mxu0 0.0
        %821 = vmatprep.subr.mxu0 0.0
        %822 = vmatpush1.msra.mxu0 0.0
        %823 = vmatprep.subr.mxu0 0.0
        %824 = vmatpush1.msra.mxu0 0.0
        %825 = vmatprep.subr.mxu0 0.0
        %826 = vmatpush1.msra.mxu0 0.0
        %827 = vmatprep.subr.mxu0 0.0
        %828 = vmatpush1.msra.mxu0 0.0
        %829 = vmatprep.subr.mxu0 0.0
        %830 = vmatpush1.msra.mxu0 0.0
        %831 = vmatprep.subr.mxu0 0.0
        %832 = vmatpush1.msra.mxu0 0.0
        %833 = vmatprep.subr.mxu0 0.0
        %834 = vmatpush1.msra.mxu0 0.0
        %835 = vmatprep.subr.mxu0 0.0
        %836 = vmatpush1.msra.mxu0 0.0
        %837 = vmatprep.subr.mxu0 0.0
        %838 = vmatpush1.msra.mxu0 0.0
        %839 = vmatprep.subr.mxu0 0.0
        %840 = vmatpush1.msra.mxu0 0.0
        %841 = vmatprep.subr.mxu0 0.0
        %842 = vmatpush1.msra.mxu0 0.0
        %843 = vmatprep.subr.mxu0 0.0
        %844 = vmatpush1.msra.mxu0 0.0
        %845 = vmatprep.subr.mxu0 0.0
        %846 = vmatpush1.msra.mxu0 0.0
        %847 = vmatprep.subr.mxu0 0.0
        %848 = vmatpush1.msra.mxu0 0.0
        %849 = vmatprep.subr.mxu0 0.0
        %850 = vmatpush1.msra.mxu0 0.0
        %851 = vmatprep.subr.mxu0 0.0
        %852 = vmatpush1.msra.mxu0 0.0
        %853 = vmatprep.mubr.f32.mxu0 0.0
        %854 = vmatmul.mubr.f32.gmra.mrb[0].mxu0 %v404
        %v855 = vpop.f32.mrb[0].mxu0
        %v856 = vadd.f32 0.0, %v855
        %v857 = vpop.f32.mrb[0].mxu0
        %858 = vmatprep.mubr.f32.mxu0 0.0
        %859 = vmatmul.mubr.f32.gmra.mrb[0].mxu0 %v407
        %v860 = vpop.f32.mrb[0].mxu0
        %v861 = vadd.f32 0.0, %v860
        %v862 = vpop.f32.mrb[0].mxu0
        %863 = vmatprep.mubr.f32.mxu0 0.0
        %864 = vmatmul.mubr.f32.gmra.mrb[0].mxu0 %v410
        %v865 = vpop.f32.mrb[0].mxu0
        %v866 = vadd.f32 0.0, %v865
        %v867 = vpop.f32.mrb[0].mxu0
        %868 = vmatprep.mubr.f32.mxu0 0.0
        %869 = vmatmul.mubr.f32.gmra.mrb[0].mxu0 %v413
        %v870 = vpop.f32.mrb[0].mxu0
        %v871 = vadd.f32 0.0, %v870
        %v872 = vpop.f32.mrb[0].mxu0
        %873 = vmatprep.mubr.f32.mxu0 0.0
        %874 = vmatmul.mubr.f32.gmra.mrb[0].mxu0 %v416
        %v875 = vpop.f32.mrb[0].mxu0
        %v876 = vadd.f32 0.0, %v875
        %v877 = vpop.f32.mrb[0].mxu0
        %878 = vmatprep.mubr.f32.mxu0 0.0
        %879 = vmatmul.mubr.f32.gmra.mrb[0].mxu0 %v419
        %v880 = vpop.f32.mrb[0].mxu0
        %v881 = vadd.f32 0.0, %v880
        %v882 = vpop.f32.mrb[0].mxu0
        %883 = vmatprep.mubr.f32.mxu0 0.0
        %884 = vmatmul.mubr.f32.gmra.mrb[0].mxu0 %v422
        %v885 = vpop.f32.mrb[0].mxu0
        %v886 = vadd.f32 0.0, %v885
        %v887 = vpop.f32.mrb[0].mxu0
        %888 = vmatprep.mubr.f32.mxu0 0.0
        %889 = vmatmul.mubr.f32.gmra.mrb[0].mxu0 %v425
        %v890 = vpop.f32.mrb[0].mxu0
        %v891 = vadd.f32 0.0, %v890
        %v892 = vpop.f32.mrb[0].mxu0
        %893 = vmatprep.mubr.f32.mxu0 0.0
        %894 = vmatmul.mubr.f32.gmra.mrb[0].mxu0 %v428
        %v895 = vpop.f32.mrb[0].mxu0
        %v896 = vadd.f32 0.0, %v895
        %v897 = vpop.f32.mrb[0].mxu0
        %898 = vmatprep.mubr.f32.mxu0 0.0
        %899 = vmatmul.mubr.f32.gmra.mrb[0].mxu0 %v431
        %v900 = vpop.f32.mrb[0].mxu0
        %v901 = vadd.f32 0.0, %v900
        %v902 = vpop.f32.mrb[0].mxu0
        %903 = vmatprep.mubr.f32.mxu0 0.0
        %904 = vmatmul.mubr.f32.gmra.mrb[0].mxu0 %v434
        %v905 = vpop.f32.mrb[0].mxu0
        %v906 = vadd.f32 0.0, %v905
        %v907 = vpop.f32.mrb[0].mxu0
        %908 = vmatprep.mubr.f32.mxu0 0.0
        %909 = vmatmul.mubr.f32.gmra.mrb[0].mxu0 %v437
        %v910 = vpop.f32.mrb[0].mxu0
        %v911 = vadd.f32 0.0, %v910
        %v912 = vpop.f32.mrb[0].mxu0
        %913 = vmatprep.mubr.f32.mxu0 0.0
        %914 = vmatmul.mubr.f32.gmra.mrb[0].mxu0 %v440
        %v915 = vpop.f32.mrb[0].mxu0
        %v916 = vadd.f32 0.0, %v915
        %v917 = vpop.f32.mrb[0].mxu0
        %918 = vmatprep.mubr.f32.mxu0 0.0
        %919 = vmatmul.mubr.f32.gmra.mrb[0].mxu0 %v443
        %v920 = vpop.f32.mrb[0].mxu0
        %v921 = vadd.f32 0.0, %v920
        %v922 = vpop.f32.mrb[0].mxu0
        %923 = vmatprep.mubr.f32.mxu0 0.0
        %924 = vmatmul.mubr.f32.gmra.mrb[0].mxu0 %v446
        %v925 = vpop.f32.mrb[0].mxu0
        %v926 = vadd.f32 0.0, %v925
        %v927 = vpop.f32.mrb[0].mxu0
        %928 = vmatprep.mubr.f32.mxu0 0.0
        %929 = vmatmul.mubr.f32.gmra.mrb[0].mxu0 %v449
        %v930 = vpop.f32.mrb[0].mxu0
        %v931 = vadd.f32 0.0, %v930
        %v932 = vpop.f32.mrb[0].mxu0
        %933 = vmatprep.mubr.f32.mxu0 0.0
        %934 = vmatmul.mubr.f32.gmra.mrb[0].mxu0 %v452
        %v935 = vpop.f32.mrb[0].mxu0
        %v936 = vadd.f32 0.0, %v935
        %v937 = vpop.f32.mrb[0].mxu0
        %938 = vmatprep.mubr.f32.mxu0 0.0
        %939 = vmatmul.mubr.f32.gmra.mrb[0].mxu0 %v455
        %v940 = vpop.f32.mrb[0].mxu0
        %v941 = vadd.f32 0.0, %v940
        %v942 = vpop.f32.mrb[0].mxu0
        %943 = vmatprep.mubr.f32.mxu0 0.0
        %944 = vmatmul.mubr.f32.gmra.mrb[0].mxu0 %v458
        %v945 = vpop.f32.mrb[0].mxu0
        %v946 = vadd.f32 0.0, %v945
        %v947 = vpop.f32.mrb[0].mxu0
        %948 = vmatprep.mubr.f32.mxu0 0.0
        %949 = vmatmul.mubr.f32.gmra.mrb[0].mxu0 %v461
        %v950 = vpop.f32.mrb[0].mxu0
        %v951 = vadd.f32 0.0, %v950
        %v952 = vpop.f32.mrb[0].mxu0
        %953 = vmatprep.mubr.f32.mxu0 0.0
        %954 = vmatmul.mubr.f32.gmra.mrb[0].mxu0 %v464
        %v955 = vpop.f32.mrb[0].mxu0
        %v956 = vadd.f32 0.0, %v955
        %v957 = vpop.f32.mrb[0].mxu0
        %958 = vmatprep.mubr.f32.mxu0 0.0
        %959 = vmatmul.mubr.f32.gmra.mrb[0].mxu0 %v467
        %v960 = vpop.f32.mrb[0].mxu0
        %v961 = vadd.f32 0.0, %v960
        %v962 = vpop.f32.mrb[0].mxu0
        %963 = vmatprep.mubr.f32.mxu0 0.0
        %964 = vmatmul.mubr.f32.gmra.mrb[0].mxu0 %v470
        %v965 = vpop.f32.mrb[0].mxu0
        %v966 = vadd.f32 0.0, %v965
        %v967 = vpop.f32.mrb[0].mxu0
        %968 = vmatprep.mubr.f32.mxu0 0.0
        %969 = vmatmul.mubr.f32.gmra.mrb[0].mxu0 %v473
        %v970 = vpop.f32.mrb[0].mxu0
        %v971 = vadd.f32 0.0, %v970
        %v972 = vpop.f32.mrb[0].mxu0
        %973 = vmatprep.mubr.f32.mxu0 0.0
        %974 = vmatmul.mubr.f32.gmra.mrb[0].mxu0 %v476
        %v975 = vpop.f32.mrb[0].mxu0
        %v976 = vadd.f32 0.0, %v975
        %v977 = vpop.f32.mrb[0].mxu0
        %978 = vmatprep.mubr.f32.mxu0 0.0
        %979 = vmatmul.mubr.f32.gmra.mrb[0].mxu0 %v479
        %v980 = vpop.f32.mrb[0].mxu0
        %v981 = vadd.f32 0.0, %v980
        %v982 = vpop.f32.mrb[0].mxu0
        %983 = vmatprep.mubr.f32.mxu0 0.0
        %984 = vmatmul.mubr.f32.gmra.mrb[0].mxu0 %v482
        %v985 = vpop.f32.mrb[0].mxu0
        %v986 = vadd.f32 0.0, %v985
        %v987 = vpop.f32.mrb[0].mxu0
        %988 = vmatprep.mubr.f32.mxu0 0.0
        %989 = vmatmul.mubr.f32.gmra.mrb[0].mxu0 %v485
        %v990 = vpop.f32.mrb[0].mxu0
        %v991 = vadd.f32 0.0, %v990
        %v992 = vpop.f32.mrb[0].mxu0
        %993 = vmatprep.mubr.f32.mxu0 0.0
        %994 = vmatmul.mubr.f32.gmra.mrb[0].mxu0 %v488
        %v995 = vpop.f32.mrb[0].mxu0
        %v996 = vadd.f32 0.0, %v995
        %v997 = vpop.f32.mrb[0].mxu0
        %998 = vmatprep.mubr.f32.mxu0 0.0
        %999 = vmatmul.mubr.f32.gmra.mrb[0].mxu0 %v491
        %v1000 = vpop.f32.mrb[0].mxu0
        %v1001 = vadd.f32 0.0, %v1000
        %v1002 = vpop.f32.mrb[0].mxu0
        %1003 = vdwg.mxu0
        %v1004 = vadd.f32 %v757, %v856
        %v1005 = vadd.f32 %v758, %v861
        %v1006 = vadd.f32 %v759, %v866
        %v1007 = vadd.f32 %v760, %v871
        %v1008 = vadd.f32 %v761, %v876
        %v1009 = vadd.f32 %v762, %v881
        %v1010 = vadd.f32 %v763, %v886
        %v1011 = vadd.f32 %v764, %v891
        %v1012 = vadd.f32 %v765, %v896
        %v1013 = vadd.f32 %v766, %v901
        %v1014 = vadd.f32 %v767, %v906
        %v1015 = vadd.f32 %v768, %v911
        %v1016 = vadd.f32 %v769, %v916
        %v1017 = vadd.f32 %v770, %v921
        %v1018 = vadd.f32 %v771, %v926
        %v1019 = vadd.f32 %v772, %v931
        %v1020 = vadd.f32 %v773, %v936
        %v1021 = vadd.f32 %v774, %v941
        %v1022 = vadd.f32 %v775, %v946
        %v1023 = vadd.f32 %v776, %v951
        %v1024 = vadd.f32 %v777, %v956
        %v1025 = vadd.f32 %v778, %v961
        %v1026 = vadd.f32 %v779, %v966
        %v1027 = vadd.f32 %v780, %v971
        %v1028 = vadd.f32 %v781, %v976
        %v1029 = vadd.f32 %v782, %v981
        %v1030 = vadd.f32 %v783, %v986
        %v1031 = vadd.f32 %v784, %v991
        %v1032 = vadd.f32 %v785, %v996
        %v1033 = vadd.f32 %v786, %v1001
        %1034 = vst.msk [vmem:[#allocation2 + $0x10] sm:$0xff] %vm724, %v1004
        %1035 = vst.msk [vmem:[#allocation2 + $0x18] sm:$0xff] %vm724, %v1005
        %1036 = vst.msk [vmem:[#allocation2 + $0x20] sm:$0xff] %vm724, %v1006
        %1037 = vst.msk [vmem:[#allocation2 + $0x28] sm:$0xff] %vm724, %v1007
        %1038 = vst.msk [vmem:[#allocation2 + $0x30] sm:$0xff] %vm724, %v1008
        %1039 = vst.msk [vmem:[#allocation2 + $0x38] sm:$0xff] %vm724, %v1009
        %1040 = vst.msk [vmem:[#allocation2 + $0x40] sm:$0xff] %vm724, %v1010
        %1041 = vst.msk [vmem:[#allocation2 + $0x48] sm:$0xff] %vm724, %v1011
        %1042 = vst.msk [vmem:[#allocation2 + $0x50] sm:$0xff] %vm724, %v1012
        %1043 = vst.msk [vmem:[#allocation2 + $0x58] sm:$0xff] %vm724, %v1013
        %1044 = vst.msk [vmem:[#allocation2 + $0x60] sm:$0xff] %vm724, %v1014
        %1045 = vst.msk [vmem:[#allocation2 + $0x68] sm:$0xff] %vm724, %v1015
        %1046 = vst.msk [vmem:[#allocation2 + $0x70] sm:$0xff] %vm724, %v1016
        %1047 = vst.msk [vmem:[#allocation2 + $0x78] sm:$0xff] %vm724, %v1017
        %1048 = vst.msk [vmem:[#allocation2 + $0x80] sm:$0xff] %vm724, %v1018
        %1049 = vst.msk [vmem:[#allocation2 + $0x88] sm:$0xff] %vm724, %v1019
        %1050 = vst.msk [vmem:[#allocation2 + $0x90] sm:$0xff] %vm724, %v1020
        %1051 = vst.msk [vmem:[#allocation2 + $0x98] sm:$0xff] %vm724, %v1021
        %1052 = vst.msk [vmem:[#allocation2 + $0xa0] sm:$0xff] %vm724, %v1022
        %1053 = vst.msk [vmem:[#allocation2 + $0xa8] sm:$0xff] %vm724, %v1023
        %1054 = vst.msk [vmem:[#allocation2 + $0xb0] sm:$0xff] %vm724, %v1024
        %1055 = vst.msk [vmem:[#allocation2 + $0xb8] sm:$0xff] %vm724, %v1025
        %1056 = vst.msk [vmem:[#allocation2 + $0xc0] sm:$0xff] %vm724, %v1026
        %1057 = vst.msk [vmem:[#allocation2 + $0xc8] sm:$0xff] %vm724, %v1027
        %1058 = vst.msk [vmem:[#allocation2 + $0xd0] sm:$0xff] %vm724, %v1028
        %1059 = vst.msk [vmem:[#allocation2 + $0xd8] sm:$0xff] %vm724, %v1029
        %1060 = vst.msk [vmem:[#allocation2 + $0xe0] sm:$0xff] %vm724, %v1030
        %1061 = vst.msk [vmem:[#allocation2 + $0xe8] sm:$0xff] %vm724, %v1031
        %1062 = vst.msk [vmem:[#allocation2 + $0xf0] sm:$0xff] %vm724, %v1032
        %1063 = vst.msk [vmem:[#allocation2 + $0xf8] sm:$0xff] %vm724, %v1033
        %v1064 = vld [vmem:[#allocation2] sm:$0xff]
        %v1065 = vld [vmem:[#allocation2 + $0x8] sm:$0xff]
        %v1066 = vld [vmem:[#allocation2 + $0x10] sm:$0xff]
        %v1067 = vld [vmem:[#allocation2 + $0x18] sm:$0xff]
        %v1068 = vld [vmem:[#allocation2 + $0x20] sm:$0xff]
        %v1069 = vld [vmem:[#allocation2 + $0x28] sm:$0xff]
        %v1070 = vld [vmem:[#allocation2 + $0x30] sm:$0xff]
        %v1071 = vld [vmem:[#allocation2 + $0x38] sm:$0xff]
        %v1072 = vld [vmem:[#allocation2 + $0x40] sm:$0xff]
        %v1073 = vld [vmem:[#allocation2 + $0x48] sm:$0xff]
        %v1074 = vld [vmem:[#allocation2 + $0x50] sm:$0xff]
        %v1075 = vld [vmem:[#allocation2 + $0x58] sm:$0xff]
        %v1076 = vld [vmem:[#allocation2 + $0x60] sm:$0xff]
        %v1077 = vld [vmem:[#allocation2 + $0x68] sm:$0xff]
        %v1078 = vld [vmem:[#allocation2 + $0x70] sm:$0xff]
        %v1079 = vld [vmem:[#allocation2 + $0x78] sm:$0xff]
        %v1080 = vld [vmem:[#allocation2 + $0x80] sm:$0xff]
        %v1081 = vld [vmem:[#allocation2 + $0x88] sm:$0xff]
        %v1082 = vld [vmem:[#allocation2 + $0x90] sm:$0xff]
        %v1083 = vld [vmem:[#allocation2 + $0x98] sm:$0xff]
        %v1084 = vld [vmem:[#allocation2 + $0xa0] sm:$0xff]
        %v1085 = vld [vmem:[#allocation2 + $0xa8] sm:$0xff]
        %v1086 = vld [vmem:[#allocation2 + $0xb0] sm:$0xff]
        %v1087 = vld [vmem:[#allocation2 + $0xb8] sm:$0xff]
        %v1088 = vld [vmem:[#allocation2 + $0xc0] sm:$0xff]
        %v1089 = vld [vmem:[#allocation2 + $0xc8] sm:$0xff]
        %v1090 = vld [vmem:[#allocation2 + $0xd0] sm:$0xff]
        %v1091 = vld [vmem:[#allocation2 + $0xd8] sm:$0xff]
        %v1092 = vld [vmem:[#allocation2 + $0xe0] sm:$0xff]
        %v1093 = vld [vmem:[#allocation2 + $0xe8] sm:$0xff]
        %s1094 = scalar_lea.vmem %s3, 32
        %v1095 = vld [vmem:[%s1094] sm:$0xff]
        %v1096 = vld [vmem:[%s1094 + $0x8] sm:$0xff]
        %1097 = vmatprep.subr.mxu0 0.0
        %1098 = vmatpush1.msra.mxu0 %v1095
        %1099 = vmatprep.subr.mxu0 0.0
        %1100 = vmatpush1.msra.mxu0 %v1096
        %1101 = vmatprep.subr.mxu0 0.0
        %1102 = vmatpush1.msra.mxu0 0.0
        %1103 = vmatprep.subr.mxu0 0.0
        %1104 = vmatpush1.msra.mxu0 0.0
        %1105 = vmatprep.subr.mxu0 0.0
        %1106 = vmatpush1.msra.mxu0 0.0
        %1107 = vmatprep.subr.mxu0 0.0
        %1108 = vmatpush1.msra.mxu0 0.0
        %1109 = vmatprep.subr.mxu0 0.0
        %1110 = vmatpush1.msra.mxu0 0.0
        %1111 = vmatprep.subr.mxu0 0.0
        %1112 = vmatpush1.msra.mxu0 0.0
        %1113 = vmatprep.subr.mxu0 0.0
        %1114 = vmatpush1.msra.mxu0 0.0
        %1115 = vmatprep.subr.mxu0 0.0
        %1116 = vmatpush1.msra.mxu0 0.0
        %1117 = vmatprep.subr.mxu0 0.0
        %1118 = vmatpush1.msra.mxu0 0.0
        %1119 = vmatprep.subr.mxu0 0.0
        %1120 = vmatpush1.msra.mxu0 0.0
        %1121 = vmatprep.subr.mxu0 0.0
        %1122 = vmatpush1.msra.mxu0 0.0
        %1123 = vmatprep.subr.mxu0 0.0
        %1124 = vmatpush1.msra.mxu0 0.0
        %1125 = vmatprep.subr.mxu0 0.0
        %1126 = vmatpush1.msra.mxu0 0.0
        %1127 = vmatprep.subr.mxu0 0.0
        %1128 = vmatpush1.msra.mxu0 0.0
        %1129 = vmatprep.subr.mxu0 0.0
        %1130 = vmatpush1.msra.mxu0 0.0
        %1131 = vmatprep.subr.mxu0 0.0
        %1132 = vmatpush1.msra.mxu0 0.0
        %1133 = vmatprep.subr.mxu0 0.0
        %1134 = vmatpush1.msra.mxu0 0.0
        %1135 = vmatprep.subr.mxu0 0.0
        %1136 = vmatpush1.msra.mxu0 0.0
        %1137 = vmatprep.subr.mxu0 0.0
        %1138 = vmatpush1.msra.mxu0 0.0
        %1139 = vmatprep.subr.mxu0 0.0
        %1140 = vmatpush1.msra.mxu0 0.0
        %1141 = vmatprep.subr.mxu0 0.0
        %1142 = vmatpush1.msra.mxu0 0.0
        %1143 = vmatprep.subr.mxu0 0.0
        %1144 = vmatpush1.msra.mxu0 0.0
        %1145 = vmatprep.subr.mxu0 0.0
        %1146 = vmatpush1.msra.mxu0 0.0
        %1147 = vmatprep.subr.mxu0 0.0
        %1148 = vmatpush1.msra.mxu0 0.0
        %1149 = vmatprep.subr.mxu0 0.0
        %1150 = vmatpush1.msra.mxu0 0.0
        %1151 = vmatprep.subr.mxu0 0.0
        %1152 = vmatpush1.msra.mxu0 0.0
        %1153 = vmatprep.subr.mxu0 0.0
        %1154 = vmatpush1.msra.mxu0 0.0
        %1155 = vmatprep.subr.mxu0 0.0
        %1156 = vmatpush1.msra.mxu0 0.0
        %1157 = vmatprep.subr.mxu0 0.0
        %1158 = vmatpush1.msra.mxu0 0.0
        %1159 = vmatprep.subr.mxu0 0.0
        %1160 = vmatpush1.msra.mxu0 0.0
        %1161 = vmatprep.mubr.f32.mxu0 0.0
        %1162 = vmatmul.mubr.f32.gmra.mrb[0].mxu0 %v410
        %v1163 = vpop.f32.mrb[0].mxu0
        %v1164 = vadd.f32 0.0, %v1163
        %v1165 = vpop.f32.mrb[0].mxu0
        %1166 = vmatprep.mubr.f32.mxu0 0.0
        %1167 = vmatmul.mubr.f32.gmra.mrb[0].mxu0 %v413
        %v1168 = vpop.f32.mrb[0].mxu0
        %v1169 = vadd.f32 0.0, %v1168
        %v1170 = vpop.f32.mrb[0].mxu0
        %1171 = vmatprep.mubr.f32.mxu0 0.0
        %1172 = vmatmul.mubr.f32.gmra.mrb[0].mxu0 %v416
        %v1173 = vpop.f32.mrb[0].mxu0
        %v1174 = vadd.f32 0.0, %v1173
        %v1175 = vpop.f32.mrb[0].mxu0
        %1176 = vmatprep.mubr.f32.mxu0 0.0
        %1177 = vmatmul.mubr.f32.gmra.mrb[0].mxu0 %v419
        %v1178 = vpop.f32.mrb[0].mxu0
        %v1179 = vadd.f32 0.0, %v1178
        %v1180 = vpop.f32.mrb[0].mxu0
        %1181 = vmatprep.mubr.f32.mxu0 0.0
        %1182 = vmatmul.mubr.f32.gmra.mrb[0].mxu0 %v422
        %v1183 = vpop.f32.mrb[0].mxu0
        %v1184 = vadd.f32 0.0, %v1183
        %v1185 = vpop.f32.mrb[0].mxu0
        %1186 = vmatprep.mubr.f32.mxu0 0.0
        %1187 = vmatmul.mubr.f32.gmra.mrb[0].mxu0 %v425
        %v1188 = vpop.f32.mrb[0].mxu0
        %v1189 = vadd.f32 0.0, %v1188
        %v1190 = vpop.f32.mrb[0].mxu0
        %1191 = vmatprep.mubr.f32.mxu0 0.0
        %1192 = vmatmul.mubr.f32.gmra.mrb[0].mxu0 %v428
        %v1193 = vpop.f32.mrb[0].mxu0
        %v1194 = vadd.f32 0.0, %v1193
        %v1195 = vpop.f32.mrb[0].mxu0
        %1196 = vmatprep.mubr.f32.mxu0 0.0
        %1197 = vmatmul.mubr.f32.gmra.mrb[0].mxu0 %v431
        %v1198 = vpop.f32.mrb[0].mxu0
        %v1199 = vadd.f32 0.0, %v1198
        %v1200 = vpop.f32.mrb[0].mxu0
        %1201 = vmatprep.mubr.f32.mxu0 0.0
        %1202 = vmatmul.mubr.f32.gmra.mrb[0].mxu0 %v434
        %v1203 = vpop.f32.mrb[0].mxu0
        %v1204 = vadd.f32 0.0, %v1203
        %v1205 = vpop.f32.mrb[0].mxu0
        %1206 = vmatprep.mubr.f32.mxu0 0.0
        %1207 = vmatmul.mubr.f32.gmra.mrb[0].mxu0 %v437
        %v1208 = vpop.f32.mrb[0].mxu0
        %v1209 = vadd.f32 0.0, %v1208
        %v1210 = vpop.f32.mrb[0].mxu0
        %1211 = vmatprep.mubr.f32.mxu0 0.0
        %1212 = vmatmul.mubr.f32.gmra.mrb[0].mxu0 %v440
        %v1213 = vpop.f32.mrb[0].mxu0
        %v1214 = vadd.f32 0.0, %v1213
        %v1215 = vpop.f32.mrb[0].mxu0
        %1216 = vmatprep.mubr.f32.mxu0 0.0
        %1217 = vmatmul.mubr.f32.gmra.mrb[0].mxu0 %v443
        %v1218 = vpop.f32.mrb[0].mxu0
        %v1219 = vadd.f32 0.0, %v1218
        %v1220 = vpop.f32.mrb[0].mxu0
        %1221 = vmatprep.mubr.f32.mxu0 0.0
        %1222 = vmatmul.mubr.f32.gmra.mrb[0].mxu0 %v446
        %v1223 = vpop.f32.mrb[0].mxu0
        %v1224 = vadd.f32 0.0, %v1223
        %v1225 = vpop.f32.mrb[0].mxu0
        %1226 = vmatprep.mubr.f32.mxu0 0.0
        %1227 = vmatmul.mubr.f32.gmra.mrb[0].mxu0 %v449
        %v1228 = vpop.f32.mrb[0].mxu0
        %v1229 = vadd.f32 0.0, %v1228
        %v1230 = vpop.f32.mrb[0].mxu0
        %1231 = vmatprep.mubr.f32.mxu0 0.0
        %1232 = vmatmul.mubr.f32.gmra.mrb[0].mxu0 %v452
        %v1233 = vpop.f32.mrb[0].mxu0
        %v1234 = vadd.f32 0.0, %v1233
        %v1235 = vpop.f32.mrb[0].mxu0
        %1236 = vmatprep.mubr.f32.mxu0 0.0
        %1237 = vmatmul.mubr.f32.gmra.mrb[0].mxu0 %v455
        %v1238 = vpop.f32.mrb[0].mxu0
        %v1239 = vadd.f32 0.0, %v1238
        %v1240 = vpop.f32.mrb[0].mxu0
        %1241 = vmatprep.mubr.f32.mxu0 0.0
        %1242 = vmatmul.mubr.f32.gmra.mrb[0].mxu0 %v458
        %v1243 = vpop.f32.mrb[0].mxu0
        %v1244 = vadd.f32 0.0, %v1243
        %v1245 = vpop.f32.mrb[0].mxu0
        %1246 = vmatprep.mubr.f32.mxu0 0.0
        %1247 = vmatmul.mubr.f32.gmra.mrb[0].mxu0 %v461
        %v1248 = vpop.f32.mrb[0].mxu0
        %v1249 = vadd.f32 0.0, %v1248
        %v1250 = vpop.f32.mrb[0].mxu0
        %1251 = vmatprep.mubr.f32.mxu0 0.0
        %1252 = vmatmul.mubr.f32.gmra.mrb[0].mxu0 %v464
        %v1253 = vpop.f32.mrb[0].mxu0
        %v1254 = vadd.f32 0.0, %v1253
        %v1255 = vpop.f32.mrb[0].mxu0
        %1256 = vmatprep.mubr.f32.mxu0 0.0
        %1257 = vmatmul.mubr.f32.gmra.mrb[0].mxu0 %v467
        %v1258 = vpop.f32.mrb[0].mxu0
        %v1259 = vadd.f32 0.0, %v1258
        %v1260 = vpop.f32.mrb[0].mxu0
        %1261 = vmatprep.mubr.f32.mxu0 0.0
        %1262 = vmatmul.mubr.f32.gmra.mrb[0].mxu0 %v470
        %v1263 = vpop.f32.mrb[0].mxu0
        %v1264 = vadd.f32 0.0, %v1263
        %v1265 = vpop.f32.mrb[0].mxu0
        %1266 = vmatprep.mubr.f32.mxu0 0.0
        %1267 = vmatmul.mubr.f32.gmra.mrb[0].mxu0 %v473
        %v1268 = vpop.f32.mrb[0].mxu0
        %v1269 = vadd.f32 0.0, %v1268
        %v1270 = vpop.f32.mrb[0].mxu0
        %1271 = vmatprep.mubr.f32.mxu0 0.0
        %1272 = vmatmul.mubr.f32.gmra.mrb[0].mxu0 %v476
        %v1273 = vpop.f32.mrb[0].mxu0
        %v1274 = vadd.f32 0.0, %v1273
        %v1275 = vpop.f32.mrb[0].mxu0
        %1276 = vmatprep.mubr.f32.mxu0 0.0
        %1277 = vmatmul.mubr.f32.gmra.mrb[0].mxu0 %v479
        %v1278 = vpop.f32.mrb[0].mxu0
        %v1279 = vadd.f32 0.0, %v1278
        %v1280 = vpop.f32.mrb[0].mxu0
        %1281 = vmatprep.mubr.f32.mxu0 0.0
        %1282 = vmatmul.mubr.f32.gmra.mrb[0].mxu0 %v482
        %v1283 = vpop.f32.mrb[0].mxu0
        %v1284 = vadd.f32 0.0, %v1283
        %v1285 = vpop.f32.mrb[0].mxu0
        %1286 = vmatprep.mubr.f32.mxu0 0.0
        %1287 = vmatmul.mubr.f32.gmra.mrb[0].mxu0 %v485
        %v1288 = vpop.f32.mrb[0].mxu0
        %v1289 = vadd.f32 0.0, %v1288
        %v1290 = vpop.f32.mrb[0].mxu0
        %1291 = vmatprep.mubr.f32.mxu0 0.0
        %1292 = vmatmul.mubr.f32.gmra.mrb[0].mxu0 %v488
        %v1293 = vpop.f32.mrb[0].mxu0
        %v1294 = vadd.f32 0.0, %v1293
        %v1295 = vpop.f32.mrb[0].mxu0
        %1296 = vmatprep.mubr.f32.mxu0 0.0
        %1297 = vmatmul.mubr.f32.gmra.mrb[0].mxu0 %v491
        %v1298 = vpop.f32.mrb[0].mxu0
        %v1299 = vadd.f32 0.0, %v1298
        %v1300 = vpop.f32.mrb[0].mxu0
        %1301 = vmatprep.mubr.f32.mxu0 0.0
        %1302 = vmatmul.mubr.f32.gmra.mrb[0].mxu0 %v494
        %v1303 = vpop.f32.mrb[0].mxu0
        %v1304 = vadd.f32 0.0, %v1303
        %v1305 = vpop.f32.mrb[0].mxu0
        %1306 = vmatprep.mubr.f32.mxu0 0.0
        %1307 = vmatmul.mubr.f32.gmra.mrb[0].mxu0 %v497
        %v1308 = vpop.f32.mrb[0].mxu0
        %v1309 = vadd.f32 0.0, %v1308
        %v1310 = vpop.f32.mrb[0].mxu0
        %1311 = vdwg.mxu0
        %v1312 = vadd.f32 %v1064, %v1164
        %v1313 = vadd.f32 %v1065, %v1169
        %v1314 = vadd.f32 %v1066, %v1174
        %v1315 = vadd.f32 %v1067, %v1179
        %v1316 = vadd.f32 %v1068, %v1184
        %v1317 = vadd.f32 %v1069, %v1189
        %v1318 = vadd.f32 %v1070, %v1194
        %v1319 = vadd.f32 %v1071, %v1199
        %v1320 = vadd.f32 %v1072, %v1204
        %v1321 = vadd.f32 %v1073, %v1209
        %v1322 = vadd.f32 %v1074, %v1214
        %v1323 = vadd.f32 %v1075, %v1219
        %v1324 = vadd.f32 %v1076, %v1224
        %v1325 = vadd.f32 %v1077, %v1229
        %v1326 = vadd.f32 %v1078, %v1234
        %v1327 = vadd.f32 %v1079, %v1239
        %v1328 = vadd.f32 %v1080, %v1244
        %v1329 = vadd.f32 %v1081, %v1249
        %v1330 = vadd.f32 %v1082, %v1254
        %v1331 = vadd.f32 %v1083, %v1259
        %v1332 = vadd.f32 %v1084, %v1264
        %v1333 = vadd.f32 %v1085, %v1269
        %v1334 = vadd.f32 %v1086, %v1274
        %v1335 = vadd.f32 %v1087, %v1279
        %v1336 = vadd.f32 %v1088, %v1284
        %v1337 = vadd.f32 %v1089, %v1289
        %v1338 = vadd.f32 %v1090, %v1294
        %v1339 = vadd.f32 %v1091, %v1299
        %v1340 = vadd.f32 %v1092, %v1304
        %v1341 = vadd.f32 %v1093, %v1309
        %1342 = vst.msk [vmem:[#allocation2] sm:$0xff] %vm724, %v1312
        %1343 = vst.msk [vmem:[#allocation2 + $0x8] sm:$0xff] %vm724, %v1313
        %1344 = vst.msk [vmem:[#allocation2 + $0x10] sm:$0xff] %vm724, %v1314
        %1345 = vst.msk [vmem:[#allocation2 + $0x18] sm:$0xff] %vm724, %v1315
        %1346 = vst.msk [vmem:[#allocation2 + $0x20] sm:$0xff] %vm724, %v1316
        %1347 = vst.msk [vmem:[#allocation2 + $0x28] sm:$0xff] %vm724, %v1317
        %1348 = vst.msk [vmem:[#allocation2 + $0x30] sm:$0xff] %vm724, %v1318
        %1349 = vst.msk [vmem:[#allocation2 + $0x38] sm:$0xff] %vm724, %v1319
        %1350 = vst.msk [vmem:[#allocation2 + $0x40] sm:$0xff] %vm724, %v1320
        %1351 = vst.msk [vmem:[#allocation2 + $0x48] sm:$0xff] %vm724, %v1321
        %1352 = vst.msk [vmem:[#allocation2 + $0x50] sm:$0xff] %vm724, %v1322
        %1353 = vst.msk [vmem:[#allocation2 + $0x58] sm:$0xff] %vm724, %v1323
        %1354 = vst.msk [vmem:[#allocation2 + $0x60] sm:$0xff] %vm724, %v1324
        %1355 = vst.msk [vmem:[#allocation2 + $0x68] sm:$0xff] %vm724, %v1325
        %1356 = vst.msk [vmem:[#allocation2 + $0x70] sm:$0xff] %vm724, %v1326
        %1357 = vst.msk [vmem:[#allocation2 + $0x78] sm:$0xff] %vm724, %v1327
        %1358 = vst.msk [vmem:[#allocation2 + $0x80] sm:$0xff] %vm724, %v1328
        %1359 = vst.msk [vmem:[#allocation2 + $0x88] sm:$0xff] %vm724, %v1329
        %1360 = vst.msk [vmem:[#allocation2 + $0x90] sm:$0xff] %vm724, %v1330
        %1361 = vst.msk [vmem:[#allocation2 + $0x98] sm:$0xff] %vm724, %v1331
        %1362 = vst.msk [vmem:[#allocation2 + $0xa0] sm:$0xff] %vm724, %v1332
        %1363 = vst.msk [vmem:[#allocation2 + $0xa8] sm:$0xff] %vm724, %v1333
        %1364 = vst.msk [vmem:[#allocation2 + $0xb0] sm:$0xff] %vm724, %v1334
        %1365 = vst.msk [vmem:[#allocation2 + $0xb8] sm:$0xff] %vm724, %v1335
        %1366 = vst.msk [vmem:[#allocation2 + $0xc0] sm:$0xff] %vm724, %v1336
        %1367 = vst.msk [vmem:[#allocation2 + $0xc8] sm:$0xff] %vm724, %v1337
        %1368 = vst.msk [vmem:[#allocation2 + $0xd0] sm:$0xff] %vm724, %v1338
        %1369 = vst.msk [vmem:[#allocation2 + $0xd8] sm:$0xff] %vm724, %v1339
        %1370 = vst.msk [vmem:[#allocation2 + $0xe0] sm:$0xff] %vm724, %v1340
        %1371 = vst.msk [vmem:[#allocation2 + $0xe8] sm:$0xff] %vm724, %v1341
        %v1372 = vld [vmem:[%s5] sm:$0xff]
        %v1373 = vld [vmem:[%s5 + $0x8] sm:$0xff]
        %v1374 = vld [vmem:[%s6] sm:$0x1]
        %v1376 = vlaneseq
        %v1377 = vshrl.u32 %v1376, 7
        %v1378 = vsub.s32 0, %v1377
        %v1379 = vrot.slane %v1374, %v1378
        %1381 = vmatprep.subr.mxu0 0.0
        %1382 = vmatpush1.msra.mxu0 %v1372
        %1383 = vmatprep.subr.mxu0 0.0
        %1384 = vmatpush1.msra.mxu0 %v1373
        %1385 = vmatprep.subr.mxu0 0.0
        %1386 = vmatpush1.msra.mxu0 0.0
        %1387 = vmatprep.subr.mxu0 0.0
        %1388 = vmatpush1.msra.mxu0 0.0
        %1389 = vmatprep.subr.mxu0 0.0
        %1390 = vmatpush1.msra.mxu0 0.0
        %1391 = vmatprep.subr.mxu0 0.0
        %1392 = vmatpush1.msra.mxu0 0.0
        %1393 = vmatprep.subr.mxu0 0.0
        %1394 = vmatpush1.msra.mxu0 0.0
        %1395 = vmatprep.subr.mxu0 0.0
        %1396 = vmatpush1.msra.mxu0 0.0
        %1397 = vmatprep.subr.mxu0 0.0
        %1398 = vmatpush1.msra.mxu0 0.0
        %1399 = vmatprep.subr.mxu0 0.0
        %1400 = vmatpush1.msra.mxu0 0.0
        %1401 = vmatprep.subr.mxu0 0.0
        %1402 = vmatpush1.msra.mxu0 0.0
        %1403 = vmatprep.subr.mxu0 0.0
        %1404 = vmatpush1.msra.mxu0 0.0
        %1405 = vmatprep.subr.mxu0 0.0
        %1406 = vmatpush1.msra.mxu0 0.0
        %1407 = vmatprep.subr.mxu0 0.0
        %1408 = vmatpush1.msra.mxu0 0.0
        %1409 = vmatprep.subr.mxu0 0.0
        %1410 = vmatpush1.msra.mxu0 0.0
        %1411 = vmatprep.subr.mxu0 0.0
        %1412 = vmatpush1.msra.mxu0 0.0
        %1413 = vmatprep.subr.mxu0 0.0
        %1414 = vmatpush1.msra.mxu0 0.0
        %1415 = vmatprep.subr.mxu0 0.0
        %1416 = vmatpush1.msra.mxu0 0.0
        %1417 = vmatprep.subr.mxu0 0.0
        %1418 = vmatpush1.msra.mxu0 0.0
        %1419 = vmatprep.subr.mxu0 0.0
        %1420 = vmatpush1.msra.mxu0 0.0
        %1421 = vmatprep.subr.mxu0 0.0
        %1422 = vmatpush1.msra.mxu0 0.0
        %1423 = vmatprep.subr.mxu0 0.0
        %1424 = vmatpush1.msra.mxu0 0.0
        %1425 = vmatprep.subr.mxu0 0.0
        %1426 = vmatpush1.msra.mxu0 0.0
        %1427 = vmatprep.subr.mxu0 0.0
        %1428 = vmatpush1.msra.mxu0 0.0
        %1429 = vmatprep.subr.mxu0 0.0
        %1430 = vmatpush1.msra.mxu0 0.0
        %1431 = vmatprep.subr.mxu0 0.0
        %1432 = vmatpush1.msra.mxu0 0.0
        %1433 = vmatprep.subr.mxu0 0.0
        %1434 = vmatpush1.msra.mxu0 0.0
        %1435 = vmatprep.subr.mxu0 0.0
        %1436 = vmatpush1.msra.mxu0 0.0
        %1437 = vmatprep.subr.mxu0 0.0
        %1438 = vmatpush1.msra.mxu0 0.0
        %1439 = vmatprep.subr.mxu0 0.0
        %1440 = vmatpush1.msra.mxu0 0.0
        %1441 = vmatprep.subr.mxu0 0.0
        %1442 = vmatpush1.msra.mxu0 0.0
        %1443 = vmatprep.subr.mxu0 0.0
        %1444 = vmatpush1.msra.mxu0 0.0
        %1445 = vmatprep.mubr.f32.mxu0 0.0
        %1446 = vmatmul.mubr.f32.gmra.mrb[0].mxu0 %v404
        %v1447 = vpop.f32.mrb[0].mxu0
        %v1448 = vadd.f32 %v1379, %v1447
        %v1449 = vpop.f32.mrb[0].mxu0
        %1450 = vmatprep.mubr.f32.mxu0 0.0
        %1451 = vmatmul.mubr.f32.gmra.mrb[0].mxu0 %v407
        %v1452 = vpop.f32.mrb[0].mxu0
        %v1453 = vadd.f32 %v1379, %v1452
        %v1454 = vpop.f32.mrb[0].mxu0
        %1455 = vmatprep.mubr.f32.mxu0 0.0
        %1456 = vmatmul.mubr.f32.gmra.mrb[0].mxu0 %v410
        %v1457 = vpop.f32.mrb[0].mxu0
        %v1458 = vadd.f32 %v1379, %v1457
        %v1459 = vpop.f32.mrb[0].mxu0
        %1460 = vmatprep.mubr.f32.mxu0 0.0
        %1461 = vmatmul.mubr.f32.gmra.mrb[0].mxu0 %v413
        %v1462 = vpop.f32.mrb[0].mxu0
        %v1463 = vadd.f32 %v1379, %v1462
        %v1464 = vpop.f32.mrb[0].mxu0
        %1465 = vmatprep.mubr.f32.mxu0 0.0
        %1466 = vmatmul.mubr.f32.gmra.mrb[0].mxu0 %v416
        %v1467 = vpop.f32.mrb[0].mxu0
        %v1468 = vadd.f32 %v1379, %v1467
        %v1469 = vpop.f32.mrb[0].mxu0
        %1470 = vmatprep.mubr.f32.mxu0 0.0
        %1471 = vmatmul.mubr.f32.gmra.mrb[0].mxu0 %v419
        %v1472 = vpop.f32.mrb[0].mxu0
        %v1473 = vadd.f32 %v1379, %v1472
        %v1474 = vpop.f32.mrb[0].mxu0
        %1475 = vmatprep.mubr.f32.mxu0 0.0
        %1476 = vmatmul.mubr.f32.gmra.mrb[0].mxu0 %v422
        %v1477 = vpop.f32.mrb[0].mxu0
        %v1478 = vadd.f32 %v1379, %v1477
        %v1479 = vpop.f32.mrb[0].mxu0
        %1480 = vmatprep.mubr.f32.mxu0 0.0
        %1481 = vmatmul.mubr.f32.gmra.mrb[0].mxu0 %v425
        %v1482 = vpop.f32.mrb[0].mxu0
        %v1483 = vadd.f32 %v1379, %v1482
        %v1484 = vpop.f32.mrb[0].mxu0
        %1485 = vmatprep.mubr.f32.mxu0 0.0
        %1486 = vmatmul.mubr.f32.gmra.mrb[0].mxu0 %v428
        %v1487 = vpop.f32.mrb[0].mxu0
        %v1488 = vadd.f32 %v1379, %v1487
        %v1489 = vpop.f32.mrb[0].mxu0
        %1490 = vmatprep.mubr.f32.mxu0 0.0
        %1491 = vmatmul.mubr.f32.gmra.mrb[0].mxu0 %v431
        %v1492 = vpop.f32.mrb[0].mxu0
        %v1493 = vadd.f32 %v1379, %v1492
        %v1494 = vpop.f32.mrb[0].mxu0
        %1495 = vmatprep.mubr.f32.mxu0 0.0
        %1496 = vmatmul.mubr.f32.gmra.mrb[0].mxu0 %v434
        %v1497 = vpop.f32.mrb[0].mxu0
        %v1498 = vadd.f32 %v1379, %v1497
        %v1499 = vpop.f32.mrb[0].mxu0
        %1500 = vmatprep.mubr.f32.mxu0 0.0
        %1501 = vmatmul.mubr.f32.gmra.mrb[0].mxu0 %v437
        %v1502 = vpop.f32.mrb[0].mxu0
        %v1503 = vadd.f32 %v1379, %v1502
        %v1504 = vpop.f32.mrb[0].mxu0
        %1505 = vmatprep.mubr.f32.mxu0 0.0
        %1506 = vmatmul.mubr.f32.gmra.mrb[0].mxu0 %v440
        %v1507 = vpop.f32.mrb[0].mxu0
        %v1508 = vadd.f32 %v1379, %v1507
        %v1509 = vpop.f32.mrb[0].mxu0
        %1510 = vmatprep.mubr.f32.mxu0 0.0
        %1511 = vmatmul.mubr.f32.gmra.mrb[0].mxu0 %v443
        %v1512 = vpop.f32.mrb[0].mxu0
        %v1513 = vadd.f32 %v1379, %v1512
        %v1514 = vpop.f32.mrb[0].mxu0
        %1515 = vmatprep.mubr.f32.mxu0 0.0
        %1516 = vmatmul.mubr.f32.gmra.mrb[0].mxu0 %v446
        %v1517 = vpop.f32.mrb[0].mxu0
        %v1518 = vadd.f32 %v1379, %v1517
        %v1519 = vpop.f32.mrb[0].mxu0
        %1520 = vmatprep.mubr.f32.mxu0 0.0
        %1521 = vmatmul.mubr.f32.gmra.mrb[0].mxu0 %v449
        %v1522 = vpop.f32.mrb[0].mxu0
        %v1523 = vadd.f32 %v1379, %v1522
        %v1524 = vpop.f32.mrb[0].mxu0
        %1525 = vmatprep.mubr.f32.mxu0 0.0
        %1526 = vmatmul.mubr.f32.gmra.mrb[0].mxu0 %v452
        %v1527 = vpop.f32.mrb[0].mxu0
        %v1528 = vadd.f32 %v1379, %v1527
        %v1529 = vpop.f32.mrb[0].mxu0
        %1530 = vmatprep.mubr.f32.mxu0 0.0
        %1531 = vmatmul.mubr.f32.gmra.mrb[0].mxu0 %v455
        %v1532 = vpop.f32.mrb[0].mxu0
        %v1533 = vadd.f32 %v1379, %v1532
        %v1534 = vpop.f32.mrb[0].mxu0
        %1535 = vmatprep.mubr.f32.mxu0 0.0
        %1536 = vmatmul.mubr.f32.gmra.mrb[0].mxu0 %v458
        %v1537 = vpop.f32.mrb[0].mxu0
        %v1538 = vadd.f32 %v1379, %v1537
        %v1539 = vpop.f32.mrb[0].mxu0
        %1540 = vmatprep.mubr.f32.mxu0 0.0
        %1541 = vmatmul.mubr.f32.gmra.mrb[0].mxu0 %v461
        %v1542 = vpop.f32.mrb[0].mxu0
        %v1543 = vadd.f32 %v1379, %v1542
        %v1544 = vpop.f32.mrb[0].mxu0
        %1545 = vmatprep.mubr.f32.mxu0 0.0
        %1546 = vmatmul.mubr.f32.gmra.mrb[0].mxu0 %v464
        %v1547 = vpop.f32.mrb[0].mxu0
        %v1548 = vadd.f32 %v1379, %v1547
        %v1549 = vpop.f32.mrb[0].mxu0
        %1550 = vmatprep.mubr.f32.mxu0 0.0
        %1551 = vmatmul.mubr.f32.gmra.mrb[0].mxu0 %v467
        %v1552 = vpop.f32.mrb[0].mxu0
        %v1553 = vadd.f32 %v1379, %v1552
        %v1554 = vpop.f32.mrb[0].mxu0
        %1555 = vmatprep.mubr.f32.mxu0 0.0
        %1556 = vmatmul.mubr.f32.gmra.mrb[0].mxu0 %v470
        %v1557 = vpop.f32.mrb[0].mxu0
        %v1558 = vadd.f32 %v1379, %v1557
        %v1559 = vpop.f32.mrb[0].mxu0
        %1560 = vmatprep.mubr.f32.mxu0 0.0
        %1561 = vmatmul.mubr.f32.gmra.mrb[0].mxu0 %v473
        %v1562 = vpop.f32.mrb[0].mxu0
        %v1563 = vadd.f32 %v1379, %v1562
        %v1564 = vpop.f32.mrb[0].mxu0
        %1565 = vmatprep.mubr.f32.mxu0 0.0
        %1566 = vmatmul.mubr.f32.gmra.mrb[0].mxu0 %v476
        %v1567 = vpop.f32.mrb[0].mxu0
        %v1568 = vadd.f32 %v1379, %v1567
        %v1569 = vpop.f32.mrb[0].mxu0
        %1570 = vmatprep.mubr.f32.mxu0 0.0
        %1571 = vmatmul.mubr.f32.gmra.mrb[0].mxu0 %v479
        %v1572 = vpop.f32.mrb[0].mxu0
        %v1573 = vadd.f32 %v1379, %v1572
        %v1574 = vpop.f32.mrb[0].mxu0
        %1575 = vmatprep.mubr.f32.mxu0 0.0
        %1576 = vmatmul.mubr.f32.gmra.mrb[0].mxu0 %v482
        %v1577 = vpop.f32.mrb[0].mxu0
        %v1578 = vadd.f32 %v1379, %v1577
        %v1579 = vpop.f32.mrb[0].mxu0
        %1580 = vmatprep.mubr.f32.mxu0 0.0
        %1581 = vmatmul.mubr.f32.gmra.mrb[0].mxu0 %v485
        %v1582 = vpop.f32.mrb[0].mxu0
        %v1583 = vadd.f32 %v1379, %v1582
        %v1584 = vpop.f32.mrb[0].mxu0
        %1585 = vmatprep.mubr.f32.mxu0 0.0
        %1586 = vmatmul.mubr.f32.gmra.mrb[0].mxu0 %v488
        %v1587 = vpop.f32.mrb[0].mxu0
        %v1588 = vadd.f32 %v1379, %v1587
        %v1589 = vpop.f32.mrb[0].mxu0
        %1590 = vmatprep.mubr.f32.mxu0 0.0
        %1591 = vmatmul.mubr.f32.gmra.mrb[0].mxu0 %v491
        %v1592 = vpop.f32.mrb[0].mxu0
        %v1593 = vadd.f32 %v1379, %v1592
        %v1594 = vpop.f32.mrb[0].mxu0
        %1595 = vmatprep.mubr.f32.mxu0 0.0
        %1596 = vmatmul.mubr.f32.gmra.mrb[0].mxu0 %v494
        %v1597 = vpop.f32.mrb[0].mxu0
        %v1598 = vadd.f32 %v1379, %v1597
        %v1599 = vpop.f32.mrb[0].mxu0
        %1600 = vmatprep.mubr.f32.mxu0 0.0
        %1601 = vmatmul.mubr.f32.gmra.mrb[0].mxu0 %v497
        %v1602 = vpop.f32.mrb[0].mxu0
        %v1603 = vadd.f32 %v1379, %v1602
        %v1604 = vpop.f32.mrb[0].mxu0
        %1605 = vdwg.mxu0
        %1606 = vst.msk [vmem:[#allocation3] sm:$0xff] %vm402, %v1448
        %1607 = vst.msk [vmem:[#allocation3 + $0x8] sm:$0xff] %vm402, %v1453
        %1608 = vst.msk [vmem:[#allocation3 + $0x10] sm:$0xff] %vm402, %v1458
        %1609 = vst.msk [vmem:[#allocation3 + $0x18] sm:$0xff] %vm402, %v1463
        %1610 = vst.msk [vmem:[#allocation3 + $0x20] sm:$0xff] %vm402, %v1468
        %1611 = vst.msk [vmem:[#allocation3 + $0x28] sm:$0xff] %vm402, %v1473
        %1612 = vst.msk [vmem:[#allocation3 + $0x30] sm:$0xff] %vm402, %v1478
        %1613 = vst.msk [vmem:[#allocation3 + $0x38] sm:$0xff] %vm402, %v1483
        %1614 = vst.msk [vmem:[#allocation3 + $0x40] sm:$0xff] %vm402, %v1488
        %1615 = vst.msk [vmem:[#allocation3 + $0x48] sm:$0xff] %vm402, %v1493
        %1616 = vst.msk [vmem:[#allocation3 + $0x50] sm:$0xff] %vm402, %v1498
        %1617 = vst.msk [vmem:[#allocation3 + $0x58] sm:$0xff] %vm402, %v1503
        %1618 = vst.msk [vmem:[#allocation3 + $0x60] sm:$0xff] %vm402, %v1508
        %1619 = vst.msk [vmem:[#allocation3 + $0x68] sm:$0xff] %vm402, %v1513
        %1620 = vst.msk [vmem:[#allocation3 + $0x70] sm:$0xff] %vm402, %v1518
        %1621 = vst.msk [vmem:[#allocation3 + $0x78] sm:$0xff] %vm402, %v1523
        %1622 = vst.msk [vmem:[#allocation3 + $0x80] sm:$0xff] %vm402, %v1528
        %1623 = vst.msk [vmem:[#allocation3 + $0x88] sm:$0xff] %vm402, %v1533
        %1624 = vst.msk [vmem:[#allocation3 + $0x90] sm:$0xff] %vm402, %v1538
        %1625 = vst.msk [vmem:[#allocation3 + $0x98] sm:$0xff] %vm402, %v1543
        %1626 = vst.msk [vmem:[#allocation3 + $0xa0] sm:$0xff] %vm402, %v1548
        %1627 = vst.msk [vmem:[#allocation3 + $0xa8] sm:$0xff] %vm402, %v1553
        %1628 = vst.msk [vmem:[#allocation3 + $0xb0] sm:$0xff] %vm402, %v1558
        %1629 = vst.msk [vmem:[#allocation3 + $0xb8] sm:$0xff] %vm402, %v1563
        %1630 = vst.msk [vmem:[#allocation3 + $0xc0] sm:$0xff] %vm402, %v1568
        %1631 = vst.msk [vmem:[#allocation3 + $0xc8] sm:$0xff] %vm402, %v1573
        %1632 = vst.msk [vmem:[#allocation3 + $0xd0] sm:$0xff] %vm402, %v1578
        %1633 = vst.msk [vmem:[#allocation3 + $0xd8] sm:$0xff] %vm402, %v1583
        %1634 = vst.msk [vmem:[#allocation3 + $0xe0] sm:$0xff] %vm402, %v1588
        %1635 = vst.msk [vmem:[#allocation3 + $0xe8] sm:$0xff] %vm402, %v1593
        %1636 = vst.msk [vmem:[#allocation3 + $0xf0] sm:$0xff] %vm402, %v1598
        %1637 = vst.msk [vmem:[#allocation3 + $0xf8] sm:$0xff] %vm402, %v1603
      $region60: #{tpu_custom_call.1} parent=55 // pred_fallthru
        _
      %s1638 = smul.u32 %s25, 256
      %s1639 = scalar_lea.vmem %s345, %s1638
      %v1640 = vld [vmem:[%s1639] sm:$0xff]
      %v1641 = vld [vmem:[%s1639 + $0x8] sm:$0xff]
      %v1642 = vld [vmem:[%s1639 + $0x10] sm:$0xff]
      %v1643 = vld [vmem:[%s1639 + $0x18] sm:$0xff]
      %v1644 = vld [vmem:[%s1639 + $0x20] sm:$0xff]
      %v1645 = vld [vmem:[%s1639 + $0x28] sm:$0xff]
      %v1646 = vld [vmem:[%s1639 + $0x30] sm:$0xff]
      %v1647 = vld [vmem:[%s1639 + $0x38] sm:$0xff]
      %v1648 = vld [vmem:[%s1639 + $0x40] sm:$0xff]
      %v1649 = vld [vmem:[%s1639 + $0x48] sm:$0xff]
      %v1650 = vld [vmem:[%s1639 + $0x50] sm:$0xff]
      %v1651 = vld [vmem:[%s1639 + $0x58] sm:$0xff]
      %v1652 = vld [vmem:[%s1639 + $0x60] sm:$0xff]
      %v1653 = vld [vmem:[%s1639 + $0x68] sm:$0xff]
      %v1654 = vld [vmem:[%s1639 + $0x70] sm:$0xff]
      %v1655 = vld [vmem:[%s1639 + $0x78] sm:$0xff]
      %v1656 = vld [vmem:[%s1639 + $0x80] sm:$0xff]
      %v1657 = vld [vmem:[%s1639 + $0x88] sm:$0xff]
      %v1658 = vld [vmem:[%s1639 + $0x90] sm:$0xff]
      %v1659 = vld [vmem:[%s1639 + $0x98] sm:$0xff]
      %v1660 = vld [vmem:[%s1639 + $0xa0] sm:$0xff]
      %v1661 = vld [vmem:[%s1639 + $0xa8] sm:$0xff]
      %v1662 = vld [vmem:[%s1639 + $0xb0] sm:$0xff]
      %v1663 = vld [vmem:[%s1639 + $0xb8] sm:$0xff]
      %v1664 = vld [vmem:[%s1639 + $0xc0] sm:$0xff]
      %v1665 = vld [vmem:[%s1639 + $0xc8] sm:$0xff]
      %v1666 = vld [vmem:[%s1639 + $0xd0] sm:$0xff]
      %v1667 = vld [vmem:[%s1639 + $0xd8] sm:$0xff]
      %v1668 = vld [vmem:[%s1639 + $0xe0] sm:$0xff]
      %v1669 = vld [vmem:[%s1639 + $0xe8] sm:$0xff]
      %v1670 = vld [vmem:[%s1639 + $0xf0] sm:$0xff]
      %v1671 = vld [vmem:[%s1639 + $0xf8] sm:$0xff]
      %v1672 = vrot.slane %v1640, 7
      %v1673 = vrot.slane %v1641, 7
      %v1674 = vrot.slane %v1642, 7
      %v1675 = vrot.slane %v1643, 7
      %v1676 = vrot.slane %v1644, 7
      %v1677 = vrot.slane %v1645, 7
      %v1678 = vrot.slane %v1646, 7
      %v1679 = vrot.slane %v1647, 7
      %v1680 = vrot.slane %v1648, 7
      %v1681 = vrot.slane %v1649, 7
      %v1682 = vrot.slane %v1650, 7
      %v1683 = vrot.slane %v1651, 7
      %v1684 = vrot.slane %v1652, 7
      %v1685 = vrot.slane %v1653, 7
      %v1686 = vrot.slane %v1654, 7
      %v1687 = vrot.slane %v1655, 7
      %v1688 = vrot.slane %v1656, 7
      %v1689 = vrot.slane %v1657, 7
      %v1690 = vrot.slane %v1658, 7
      %v1691 = vrot.slane %v1659, 7
      %v1692 = vrot.slane %v1660, 7
      %v1693 = vrot.slane %v1661, 7
      %v1694 = vrot.slane %v1662, 7
      %v1695 = vrot.slane %v1663, 7
      %v1696 = vrot.slane %v1664, 7
      %v1697 = vrot.slane %v1665, 7
      %v1698 = vrot.slane %v1666, 7
      %v1699 = vrot.slane %v1667, 7
      %v1700 = vrot.slane %v1668, 7
      %v1701 = vrot.slane %v1669, 7
      %v1702 = vrot.slane %v1670, 7
      %v1703 = vrot.slane %v1671, 7
      %v1704 = vlaneseq
      %v1705 = vshrl.u32 %v1704, 7
      %vm1706 = vcmp.lt.s32.totalorder %v1705, 1
      %v1707 = vsel %vm1706, %v1702, %v1703
      %v1708 = vsel %vm1706, %v1701, %v1702
      %v1709 = vsel %vm1706, %v1700, %v1701
      %v1710 = vsel %vm1706, %v1699, %v1700
      %v1711 = vsel %vm1706, %v1698, %v1699
      %v1712 = vsel %vm1706, %v1697, %v1698
      %v1713 = vsel %vm1706, %v1696, %v1697
      %v1714 = vsel %vm1706, %v1695, %v1696
      %v1715 = vsel %vm1706, %v1694, %v1695
      %v1716 = vsel %vm1706, %v1693, %v1694
      %v1717 = vsel %vm1706, %v1692, %v1693
      %v1718 = vsel %vm1706, %v1691, %v1692
      %v1719 = vsel %vm1706, %v1690, %v1691
      %v1720 = vsel %vm1706, %v1689, %v1690
      %v1721 = vsel %vm1706, %v1688, %v1689
      %v1722 = vsel %vm1706, %v1687, %v1688
      %v1723 = vsel %vm1706, %v1686, %v1687
      %v1724 = vsel %vm1706, %v1685, %v1686
      %v1725 = vsel %vm1706, %v1684, %v1685
      %v1726 = vsel %vm1706, %v1683, %v1684
      %v1727 = vsel %vm1706, %v1682, %v1683
      %v1728 = vsel %vm1706, %v1681, %v1682
      %v1729 = vsel %vm1706, %v1680, %v1681
      %v1730 = vsel %vm1706, %v1679, %v1680
      %v1731 = vsel %vm1706, %v1678, %v1679
      %v1732 = vsel %vm1706, %v1677, %v1678
      %v1733 = vsel %vm1706, %v1676, %v1677
      %v1734 = vsel %vm1706, %v1675, %v1676
      %v1735 = vsel %vm1706, %v1674, %v1675
      %v1736 = vsel %vm1706, %v1673, %v1674
      %v1737 = vsel %vm1706, %v1672, %v1673
      %v1738 = vsel %vm1706, %v1703, %v1672
      %v1739 = vld [vmem:[%s7] sm:$0xff]
      %v1740 = vld [vmem:[%s7 + $0x8] sm:$0xff]
      %v1741 = vld [vmem:[%s7 + $0x10] sm:$0xff]
      %v1742 = vld [vmem:[%s7 + $0x18] sm:$0xff]
      %v1743 = vld [vmem:[%s7 + $0x20] sm:$0xff]
      %v1744 = vld [vmem:[%s7 + $0x28] sm:$0xff]
      %v1745 = vld [vmem:[%s7 + $0x30] sm:$0xff]
      %v1746 = vld [vmem:[%s7 + $0x38] sm:$0xff]
      %v1747 = vld [vmem:[%s7 + $0x40] sm:$0xff]
      %v1748 = vld [vmem:[%s7 + $0x48] sm:$0xff]
      %v1749 = vld [vmem:[%s7 + $0x50] sm:$0xff]
      %v1750 = vld [vmem:[%s7 + $0x58] sm:$0xff]
      %v1751 = vld [vmem:[%s7 + $0x60] sm:$0xff]
      %v1752 = vld [vmem:[%s7 + $0x68] sm:$0xff]
      %v1753 = vld [vmem:[%s7 + $0x70] sm:$0xff]
      %v1754 = vld [vmem:[%s7 + $0x78] sm:$0xff]
      %v1755 = vld [vmem:[%s7 + $0x80] sm:$0xff]
      %v1756 = vld [vmem:[%s7 + $0x88] sm:$0xff]
      %v1757 = vld [vmem:[%s7 + $0x90] sm:$0xff]
      %v1758 = vld [vmem:[%s7 + $0x98] sm:$0xff]
      %v1759 = vld [vmem:[%s7 + $0xa0] sm:$0xff]
      %v1760 = vld [vmem:[%s7 + $0xa8] sm:$0xff]
      %v1761 = vld [vmem:[%s7 + $0xb0] sm:$0xff]
      %v1762 = vld [vmem:[%s7 + $0xb8] sm:$0xff]
      %v1763 = vld [vmem:[%s7 + $0xc0] sm:$0xff]
      %v1764 = vld [vmem:[%s7 + $0xc8] sm:$0xff]
      %v1765 = vld [vmem:[%s7 + $0xd0] sm:$0xff]
      %v1766 = vld [vmem:[%s7 + $0xd8] sm:$0xff]
      %v1767 = vld [vmem:[%s7 + $0xe0] sm:$0xff]
      %v1768 = vld [vmem:[%s7 + $0xe8] sm:$0xff]
      %v1769 = vld [vmem:[%s7 + $0xf0] sm:$0xff]
      %v1770 = vld [vmem:[%s7 + $0xf8] sm:$0xff]
      %1772 = vset.pattern.permute.xlu0 0
      %1773 = vperm.xlu0 %1772, %v1739
      %v1774 = vpop.permute.xlu0 %1773
      %1777 = vset.pattern.permute.xlu0 0
      %1778 = vperm.xlu0 %1777, %v1740
      %v1779 = vpop.permute.xlu0 %1778
      %1782 = vset.pattern.permute.xlu0 0
      %1783 = vperm.xlu0 %1782, %v1741
      %v1784 = vpop.permute.xlu0 %1783
      %1787 = vset.pattern.permute.xlu0 0
      %1788 = vperm.xlu0 %1787, %v1742
      %v1789 = vpop.permute.xlu0 %1788
      %1792 = vset.pattern.permute.xlu0 0
      %1793 = vperm.xlu0 %1792, %v1743
      %v1794 = vpop.permute.xlu0 %1793
      %1797 = vset.pattern.permute.xlu0 0
      %1798 = vperm.xlu0 %1797, %v1744
      %v1799 = vpop.permute.xlu0 %1798
      %1802 = vset.pattern.permute.xlu0 0
      %1803 = vperm.xlu0 %1802, %v1745
      %v1804 = vpop.permute.xlu0 %1803
      %1807 = vset.pattern.permute.xlu0 0
      %1808 = vperm.xlu0 %1807, %v1746
      %v1809 = vpop.permute.xlu0 %1808
      %1812 = vset.pattern.permute.xlu0 0
      %1813 = vperm.xlu0 %1812, %v1747
      %v1814 = vpop.permute.xlu0 %1813
      %1817 = vset.pattern.permute.xlu0 0
      %1818 = vperm.xlu0 %1817, %v1748
      %v1819 = vpop.permute.xlu0 %1818
      %1822 = vset.pattern.permute.xlu0 0
      %1823 = vperm.xlu0 %1822, %v1749
      %v1824 = vpop.permute.xlu0 %1823
      %1827 = vset.pattern.permute.xlu0 0
      %1828 = vperm.xlu0 %1827, %v1750
      %v1829 = vpop.permute.xlu0 %1828
      %1832 = vset.pattern.permute.xlu0 0
      %1833 = vperm.xlu0 %1832, %v1751
      %v1834 = vpop.permute.xlu0 %1833
      %1837 = vset.pattern.permute.xlu0 0
      %1838 = vperm.xlu0 %1837, %v1752
      %v1839 = vpop.permute.xlu0 %1838
      %1842 = vset.pattern.permute.xlu0 0
      %1843 = vperm.xlu0 %1842, %v1753
      %v1844 = vpop.permute.xlu0 %1843
      %1847 = vset.pattern.permute.xlu0 0
      %1848 = vperm.xlu0 %1847, %v1754
      %v1849 = vpop.permute.xlu0 %1848
      %1852 = vset.pattern.permute.xlu0 0
      %1853 = vperm.xlu0 %1852, %v1755
      %v1854 = vpop.permute.xlu0 %1853
      %1857 = vset.pattern.permute.xlu0 0
      %1858 = vperm.xlu0 %1857, %v1756
      %v1859 = vpop.permute.xlu0 %1858
      %1862 = vset.pattern.permute.xlu0 0
      %1863 = vperm.xlu0 %1862, %v1757
      %v1864 = vpop.permute.xlu0 %1863
      %1867 = vset.pattern.permute.xlu0 0
      %1868 = vperm.xlu0 %1867, %v1758
      %v1869 = vpop.permute.xlu0 %1868
      %1872 = vset.pattern.permute.xlu0 0
      %1873 = vperm.xlu0 %1872, %v1759
      %v1874 = vpop.permute.xlu0 %1873
      %1877 = vset.pattern.permute.xlu0 0
      %1878 = vperm.xlu0 %1877, %v1760
      %v1879 = vpop.permute.xlu0 %1878
      %1882 = vset.pattern.permute.xlu0 0
      %1883 = vperm.xlu0 %1882, %v1761
      %v1884 = vpop.permute.xlu0 %1883
      %1887 = vset.pattern.permute.xlu0 0
      %1888 = vperm.xlu0 %1887, %v1762
      %v1889 = vpop.permute.xlu0 %1888
      %1892 = vset.pattern.permute.xlu0 0
      %1893 = vperm.xlu0 %1892, %v1763
      %v1894 = vpop.permute.xlu0 %1893
      %1897 = vset.pattern.permute.xlu0 0
      %1898 = vperm.xlu0 %1897, %v1764
      %v1899 = vpop.permute.xlu0 %1898
      %1902 = vset.pattern.permute.xlu0 0
      %1903 = vperm.xlu0 %1902, %v1765
      %v1904 = vpop.permute.xlu0 %1903
      %1907 = vset.pattern.permute.xlu0 0
      %1908 = vperm.xlu0 %1907, %v1766
      %v1909 = vpop.permute.xlu0 %1908
      %1912 = vset.pattern.permute.xlu0 0
      %1913 = vperm.xlu0 %1912, %v1767
      %v1914 = vpop.permute.xlu0 %1913
      %1917 = vset.pattern.permute.xlu0 0
      %1918 = vperm.xlu0 %1917, %v1768
      %v1919 = vpop.permute.xlu0 %1918
      %1922 = vset.pattern.permute.xlu0 0
      %1923 = vperm.xlu0 %1922, %v1769
      %v1924 = vpop.permute.xlu0 %1923
      %1927 = vset.pattern.permute.xlu0 0
      %1928 = vperm.xlu0 %1927, %v1770
      %v1929 = vpop.permute.xlu0 %1928
      %v1931 = vmul.f32 %v1738, %v1774
      %v1932 = vmul.f32 %v1737, %v1779
      %v1933 = vmul.f32 %v1736, %v1784
      %v1934 = vmul.f32 %v1735, %v1789
      %v1935 = vmul.f32 %v1734, %v1794
      %v1936 = vmul.f32 %v1733, %v1799
      %v1937 = vmul.f32 %v1732, %v1804
      %v1938 = vmul.f32 %v1731, %v1809
      %v1939 = vmul.f32 %v1730, %v1814
      %v1940 = vmul.f32 %v1729, %v1819
      %v1941 = vmul.f32 %v1728, %v1824
      %v1942 = vmul.f32 %v1727, %v1829
      %v1943 = vmul.f32 %v1726, %v1834
      %v1944 = vmul.f32 %v1725, %v1839
      %v1945 = vmul.f32 %v1724, %v1844
      %v1946 = vmul.f32 %v1723, %v1849
      %v1947 = vmul.f32 %v1722, %v1854
      %v1948 = vmul.f32 %v1721, %v1859
      %v1949 = vmul.f32 %v1720, %v1864
      %v1950 = vmul.f32 %v1719, %v1869
      %v1951 = vmul.f32 %v1718, %v1874
      %v1952 = vmul.f32 %v1717, %v1879
      %v1953 = vmul.f32 %v1716, %v1884
      %v1954 = vmul.f32 %v1715, %v1889
      %v1955 = vmul.f32 %v1714, %v1894
      %v1956 = vmul.f32 %v1713, %v1899
      %v1957 = vmul.f32 %v1712, %v1904
      %v1958 = vmul.f32 %v1711, %v1909
      %v1959 = vmul.f32 %v1710, %v1914
      %v1960 = vmul.f32 %v1709, %v1919
      %v1961 = vmul.f32 %v1708, %v1924
      %v1962 = vmul.f32 %v1707, %v1929
      %v1963 = vrot.slane %v1640, 1
      %v1964 = vrot.slane %v1641, 1
      %v1965 = vrot.slane %v1642, 1
      %v1966 = vrot.slane %v1643, 1
      %v1967 = vrot.slane %v1644, 1
      %v1968 = vrot.slane %v1645, 1
      %v1969 = vrot.slane %v1646, 1
      %v1970 = vrot.slane %v1647, 1
      %v1971 = vrot.slane %v1648, 1
      %v1972 = vrot.slane %v1649, 1
      %v1973 = vrot.slane %v1650, 1
      %v1974 = vrot.slane %v1651, 1
      %v1975 = vrot.slane %v1652, 1
      %v1976 = vrot.slane %v1653, 1
      %v1977 = vrot.slane %v1654, 1
      %v1978 = vrot.slane %v1655, 1
      %v1979 = vrot.slane %v1656, 1
      %v1980 = vrot.slane %v1657, 1
      %v1981 = vrot.slane %v1658, 1
      %v1982 = vrot.slane %v1659, 1
      %v1983 = vrot.slane %v1660, 1
      %v1984 = vrot.slane %v1661, 1
      %v1985 = vrot.slane %v1662, 1
      %v1986 = vrot.slane %v1663, 1
      %v1987 = vrot.slane %v1664, 1
      %v1988 = vrot.slane %v1665, 1
      %v1989 = vrot.slane %v1666, 1
      %v1990 = vrot.slane %v1667, 1
      %v1991 = vrot.slane %v1668, 1
      %v1992 = vrot.slane %v1669, 1
      %v1993 = vrot.slane %v1670, 1
      %v1994 = vrot.slane %v1671, 1
      %vm1995 = vcmp.lt.s32.totalorder %v1705, 7
      %v1996 = vsel %vm1995, %v1993, %v1994
      %v1997 = vsel %vm1995, %v1992, %v1993
      %v1998 = vsel %vm1995, %v1991, %v1992
      %v1999 = vsel %vm1995, %v1990, %v1991
      %v2000 = vsel %vm1995, %v1989, %v1990
      %v2001 = vsel %vm1995, %v1988, %v1989
      %v2002 = vsel %vm1995, %v1987, %v1988
      %v2003 = vsel %vm1995, %v1986, %v1987
      %v2004 = vsel %vm1995, %v1985, %v1986
      %v2005 = vsel %vm1995, %v1984, %v1985
      %v2006 = vsel %vm1995, %v1983, %v1984
      %v2007 = vsel %vm1995, %v1982, %v1983
      %v2008 = vsel %vm1995, %v1981, %v1982
      %v2009 = vsel %vm1995, %v1980, %v1981
      %v2010 = vsel %vm1995, %v1979, %v1980
      %v2011 = vsel %vm1995, %v1978, %v1979
      %v2012 = vsel %vm1995, %v1977, %v1978
      %v2013 = vsel %vm1995, %v1976, %v1977
      %v2014 = vsel %vm1995, %v1975, %v1976
      %v2015 = vsel %vm1995, %v1974, %v1975
      %v2016 = vsel %vm1995, %v1973, %v1974
      %v2017 = vsel %vm1995, %v1972, %v1973
      %v2018 = vsel %vm1995, %v1971, %v1972
      %v2019 = vsel %vm1995, %v1970, %v1971
      %v2020 = vsel %vm1995, %v1969, %v1970
      %v2021 = vsel %vm1995, %v1968, %v1969
      %v2022 = vsel %vm1995, %v1967, %v1968
      %v2023 = vsel %vm1995, %v1966, %v1967
      %v2024 = vsel %vm1995, %v1965, %v1966
      %v2025 = vsel %vm1995, %v1964, %v1965
      %v2026 = vsel %vm1995, %v1963, %v1964
      %v2027 = vsel %vm1995, %v1994, %v1963
      %v2028 = vld [vmem:[%s8] sm:$0xff]
      %v2029 = vld [vmem:[%s8 + $0x8] sm:$0xff]
      %v2030 = vld [vmem:[%s8 + $0x10] sm:$0xff]
      %v2031 = vld [vmem:[%s8 + $0x18] sm:$0xff]
      %v2032 = vld [vmem:[%s8 + $0x20] sm:$0xff]
      %v2033 = vld [vmem:[%s8 + $0x28] sm:$0xff]
      %v2034 = vld [vmem:[%s8 + $0x30] sm:$0xff]
      %v2035 = vld [vmem:[%s8 + $0x38] sm:$0xff]
      %v2036 = vld [vmem:[%s8 + $0x40] sm:$0xff]
      %v2037 = vld [vmem:[%s8 + $0x48] sm:$0xff]
      %v2038 = vld [vmem:[%s8 + $0x50] sm:$0xff]
      %v2039 = vld [vmem:[%s8 + $0x58] sm:$0xff]
      %v2040 = vld [vmem:[%s8 + $0x60] sm:$0xff]
      %v2041 = vld [vmem:[%s8 + $0x68] sm:$0xff]
      %v2042 = vld [vmem:[%s8 + $0x70] sm:$0xff]
      %v2043 = vld [vmem:[%s8 + $0x78] sm:$0xff]
      %v2044 = vld [vmem:[%s8 + $0x80] sm:$0xff]
      %v2045 = vld [vmem:[%s8 + $0x88] sm:$0xff]
      %v2046 = vld [vmem:[%s8 + $0x90] sm:$0xff]
      %v2047 = vld [vmem:[%s8 + $0x98] sm:$0xff]
      %v2048 = vld [vmem:[%s8 + $0xa0] sm:$0xff]
      %v2049 = vld [vmem:[%s8 + $0xa8] sm:$0xff]
      %v2050 = vld [vmem:[%s8 + $0xb0] sm:$0xff]
      %v2051 = vld [vmem:[%s8 + $0xb8] sm:$0xff]
      %v2052 = vld [vmem:[%s8 + $0xc0] sm:$0xff]
      %v2053 = vld [vmem:[%s8 + $0xc8] sm:$0xff]
      %v2054 = vld [vmem:[%s8 + $0xd0] sm:$0xff]
      %v2055 = vld [vmem:[%s8 + $0xd8] sm:$0xff]
      %v2056 = vld [vmem:[%s8 + $0xe0] sm:$0xff]
      %v2057 = vld [vmem:[%s8 + $0xe8] sm:$0xff]
      %v2058 = vld [vmem:[%s8 + $0xf0] sm:$0xff]
      %v2059 = vld [vmem:[%s8 + $0xf8] sm:$0xff]
      %2061 = vset.pattern.permute.xlu0 0
      %2062 = vperm.xlu0 %2061, %v2028
      %v2063 = vpop.permute.xlu0 %2062
      %2066 = vset.pattern.permute.xlu0 0
      %2067 = vperm.xlu0 %2066, %v2029
      %v2068 = vpop.permute.xlu0 %2067
      %2071 = vset.pattern.permute.xlu0 0
      %2072 = vperm.xlu0 %2071, %v2030
      %v2073 = vpop.permute.xlu0 %2072
      %2076 = vset.pattern.permute.xlu0 0
      %2077 = vperm.xlu0 %2076, %v2031
      %v2078 = vpop.permute.xlu0 %2077
      %2081 = vset.pattern.permute.xlu0 0
      %2082 = vperm.xlu0 %2081, %v2032
      %v2083 = vpop.permute.xlu0 %2082
      %2086 = vset.pattern.permute.xlu0 0
      %2087 = vperm.xlu0 %2086, %v2033
      %v2088 = vpop.permute.xlu0 %2087
      %2091 = vset.pattern.permute.xlu0 0
      %2092 = vperm.xlu0 %2091, %v2034
      %v2093 = vpop.permute.xlu0 %2092
      %2096 = vset.pattern.permute.xlu0 0
      %2097 = vperm.xlu0 %2096, %v2035
      %v2098 = vpop.permute.xlu0 %2097
      %2101 = vset.pattern.permute.xlu0 0
      %2102 = vperm.xlu0 %2101, %v2036
      %v2103 = vpop.permute.xlu0 %2102
      %2106 = vset.pattern.permute.xlu0 0
      %2107 = vperm.xlu0 %2106, %v2037
      %v2108 = vpop.permute.xlu0 %2107
      %2111 = vset.pattern.permute.xlu0 0
      %2112 = vperm.xlu0 %2111, %v2038
      %v2113 = vpop.permute.xlu0 %2112
      %2116 = vset.pattern.permute.xlu0 0
      %2117 = vperm.xlu0 %2116, %v2039
      %v2118 = vpop.permute.xlu0 %2117
      %2121 = vset.pattern.permute.xlu0 0
      %2122 = vperm.xlu0 %2121, %v2040
      %v2123 = vpop.permute.xlu0 %2122
      %2126 = vset.pattern.permute.xlu0 0
      %2127 = vperm.xlu0 %2126, %v2041
      %v2128 = vpop.permute.xlu0 %2127
      %2131 = vset.pattern.permute.xlu0 0
      %2132 = vperm.xlu0 %2131, %v2042
      %v2133 = vpop.permute.xlu0 %2132
      %2136 = vset.pattern.permute.xlu0 0
      %2137 = vperm.xlu0 %2136, %v2043
      %v2138 = vpop.permute.xlu0 %2137
      %2141 = vset.pattern.permute.xlu0 0
      %2142 = vperm.xlu0 %2141, %v2044
      %v2143 = vpop.permute.xlu0 %2142
      %2146 = vset.pattern.permute.xlu0 0
      %2147 = vperm.xlu0 %2146, %v2045
      %v2148 = vpop.permute.xlu0 %2147
      %2151 = vset.pattern.permute.xlu0 0
      %2152 = vperm.xlu0 %2151, %v2046
      %v2153 = vpop.permute.xlu0 %2152
      %2156 = vset.pattern.permute.xlu0 0
      %2157 = vperm.xlu0 %2156, %v2047
      %v2158 = vpop.permute.xlu0 %2157
      %2161 = vset.pattern.permute.xlu0 0
      %2162 = vperm.xlu0 %2161, %v2048
      %v2163 = vpop.permute.xlu0 %2162
      %2166 = vset.pattern.permute.xlu0 0
      %2167 = vperm.xlu0 %2166, %v2049
      %v2168 = vpop.permute.xlu0 %2167
      %2171 = vset.pattern.permute.xlu0 0
      %2172 = vperm.xlu0 %2171, %v2050
      %v2173 = vpop.permute.xlu0 %2172
      %2176 = vset.pattern.permute.xlu0 0
      %2177 = vperm.xlu0 %2176, %v2051
      %v2178 = vpop.permute.xlu0 %2177
      %2181 = vset.pattern.permute.xlu0 0
      %2182 = vperm.xlu0 %2181, %v2052
      %v2183 = vpop.permute.xlu0 %2182
      %2186 = vset.pattern.permute.xlu0 0
      %2187 = vperm.xlu0 %2186, %v2053
      %v2188 = vpop.permute.xlu0 %2187
      %2191 = vset.pattern.permute.xlu0 0
      %2192 = vperm.xlu0 %2191, %v2054
      %v2193 = vpop.permute.xlu0 %2192
      %2196 = vset.pattern.permute.xlu0 0
      %2197 = vperm.xlu0 %2196, %v2055
      %v2198 = vpop.permute.xlu0 %2197
      %2201 = vset.pattern.permute.xlu0 0
      %2202 = vperm.xlu0 %2201, %v2056
      %v2203 = vpop.permute.xlu0 %2202
      %2206 = vset.pattern.permute.xlu0 0
      %2207 = vperm.xlu0 %2206, %v2057
      %v2208 = vpop.permute.xlu0 %2207
      %2211 = vset.pattern.permute.xlu0 0
      %2212 = vperm.xlu0 %2211, %v2058
      %v2213 = vpop.permute.xlu0 %2212
      %2216 = vset.pattern.permute.xlu0 0
      %2217 = vperm.xlu0 %2216, %v2059
      %v2218 = vpop.permute.xlu0 %2217
      %v2220 = vmul.f32 %v2026, %v2063
      %v2221 = vmul.f32 %v2025, %v2068
      %v2222 = vmul.f32 %v2024, %v2073
      %v2223 = vmul.f32 %v2023, %v2078
      %v2224 = vmul.f32 %v2022, %v2083
      %v2225 = vmul.f32 %v2021, %v2088
      %v2226 = vmul.f32 %v2020, %v2093
      %v2227 = vmul.f32 %v2019, %v2098
      %v2228 = vmul.f32 %v2018, %v2103
      %v2229 = vmul.f32 %v2017, %v2108
      %v2230 = vmul.f32 %v2016, %v2113
      %v2231 = vmul.f32 %v2015, %v2118
      %v2232 = vmul.f32 %v2014, %v2123
      %v2233 = vmul.f32 %v2013, %v2128
      %v2234 = vmul.f32 %v2012, %v2133
      %v2235 = vmul.f32 %v2011, %v2138
      %v2236 = vmul.f32 %v2010, %v2143
      %v2237 = vmul.f32 %v2009, %v2148
      %v2238 = vmul.f32 %v2008, %v2153
      %v2239 = vmul.f32 %v2007, %v2158
      %v2240 = vmul.f32 %v2006, %v2163
      %v2241 = vmul.f32 %v2005, %v2168
      %v2242 = vmul.f32 %v2004, %v2173
      %v2243 = vmul.f32 %v2003, %v2178
      %v2244 = vmul.f32 %v2002, %v2183
      %v2245 = vmul.f32 %v2001, %v2188
      %v2246 = vmul.f32 %v2000, %v2193
      %v2247 = vmul.f32 %v1999, %v2198
      %v2248 = vmul.f32 %v1998, %v2203
      %v2249 = vmul.f32 %v1997, %v2208
      %v2250 = vmul.f32 %v1996, %v2213
      %v2251 = vmul.f32 %v2027, %v2218
      %v2252 = vld [vmem:[%s1] sm:$0xff]
      %v2253 = vld [vmem:[%s1 + $0x8] sm:$0xff]
      %s2254 = scalar_lea.vmem %s1, 16
      %v2255 = vld [vmem:[%s2254] sm:$0xff]
      %v2256 = vld [vmem:[%s2254 + $0x8] sm:$0xff]
      %vm2257 = vcmask 130048
      %v2259 = vsel %vm2257, %v1640, 0
      %v2262 = vsel %vm2257, %v1641, 0
      %v2265 = vsel %vm2257, %v1642, 0
      %v2268 = vsel %vm2257, %v1643, 0
      %v2271 = vsel %vm2257, %v1644, 0
      %v2274 = vsel %vm2257, %v1645, 0
      %v2277 = vsel %vm2257, %v1646, 0
      %v2280 = vsel %vm2257, %v1647, 0
      %v2283 = vsel %vm2257, %v1648, 0
      %v2286 = vsel %vm2257, %v1649, 0
      %v2289 = vsel %vm2257, %v1650, 0
      %v2292 = vsel %vm2257, %v1651, 0
      %v2295 = vsel %vm2257, %v1652, 0
      %v2298 = vsel %vm2257, %v1653, 0
      %v2301 = vsel %vm2257, %v1654, 0
      %v2304 = vsel %vm2257, %v1655, 0
      %v2307 = vsel %vm2257, %v1656, 0
      %v2310 = vsel %vm2257, %v1657, 0
      %v2313 = vsel %vm2257, %v1658, 0
      %v2316 = vsel %vm2257, %v1659, 0
      %v2319 = vsel %vm2257, %v1660, 0
      %v2322 = vsel %vm2257, %v1661, 0
      %v2325 = vsel %vm2257, %v1662, 0
      %v2328 = vsel %vm2257, %v1663, 0
      %v2331 = vsel %vm2257, %v1664, 0
      %v2334 = vsel %vm2257, %v1665, 0
      %v2337 = vsel %vm2257, %v1666, 0
      %v2340 = vsel %vm2257, %v1667, 0
      %v2343 = vsel %vm2257, %v1668, 0
      %v2346 = vsel %vm2257, %v1669, 0
      %v2349 = vsel %vm2257, %v1670, 0
      %v2352 = vsel %vm2257, %v1671, 0
      %2354 = vmatprep.subr.mxu0 0.0
      %2355 = vmatpush1.msra.mxu0 %v2255
      %2356 = vmatprep.subr.mxu0 0.0
      %2357 = vmatpush1.msra.mxu0 %v2256
      %2358 = vmatprep.subr.mxu0 0.0
      %2359 = vmatpush1.msra.mxu0 0.0
      %2360 = vmatprep.subr.mxu0 0.0
      %2361 = vmatpush1.msra.mxu0 0.0
      %2362 = vmatprep.subr.mxu0 0.0
      %2363 = vmatpush1.msra.mxu0 0.0
      %2364 = vmatprep.subr.mxu0 0.0
      %2365 = vmatpush1.msra.mxu0 0.0
      %2366 = vmatprep.subr.mxu0 0.0
      %2367 = vmatpush1.msra.mxu0 0.0
      %2368 = vmatprep.subr.mxu0 0.0
      %2369 = vmatpush1.msra.mxu0 0.0
      %2370 = vmatprep.subr.mxu0 0.0
      %2371 = vmatpush1.msra.mxu0 0.0
      %2372 = vmatprep.subr.mxu0 0.0
      %2373 = vmatpush1.msra.mxu0 0.0
      %2374 = vmatprep.subr.mxu0 0.0
      %2375 = vmatpush1.msra.mxu0 0.0
      %2376 = vmatprep.subr.mxu0 0.0
      %2377 = vmatpush1.msra.mxu0 0.0
      %2378 = vmatprep.subr.mxu0 0.0
      %2379 = vmatpush1.msra.mxu0 0.0
      %2380 = vmatprep.subr.mxu0 0.0
      %2381 = vmatpush1.msra.mxu0 0.0
      %2382 = vmatprep.subr.mxu0 0.0
      %2383 = vmatpush1.msra.mxu0 0.0
      %2384 = vmatprep.subr.mxu0 0.0
      %2385 = vmatpush1.msra.mxu0 0.0
      %2386 = vmatprep.subr.mxu0 0.0
      %2387 = vmatpush1.msra.mxu0 0.0
      %2388 = vmatprep.subr.mxu0 0.0
      %2389 = vmatpush1.msra.mxu0 0.0
      %2390 = vmatprep.subr.mxu0 0.0
      %2391 = vmatpush1.msra.mxu0 0.0
      %2392 = vmatprep.subr.mxu0 0.0
      %2393 = vmatpush1.msra.mxu0 0.0
      %2394 = vmatprep.subr.mxu0 0.0
      %2395 = vmatpush1.msra.mxu0 0.0
      %2396 = vmatprep.subr.mxu0 0.0
      %2397 = vmatpush1.msra.mxu0 0.0
      %2398 = vmatprep.subr.mxu0 0.0
      %2399 = vmatpush1.msra.mxu0 0.0
      %2400 = vmatprep.subr.mxu0 0.0
      %2401 = vmatpush1.msra.mxu0 0.0
      %2402 = vmatprep.subr.mxu0 0.0
      %2403 = vmatpush1.msra.mxu0 0.0
      %2404 = vmatprep.subr.mxu0 0.0
      %2405 = vmatpush1.msra.mxu0 0.0
      %2406 = vmatprep.subr.mxu0 0.0
      %2407 = vmatpush1.msra.mxu0 0.0
      %2408 = vmatprep.subr.mxu0 0.0
      %2409 = vmatpush1.msra.mxu0 0.0
      %2410 = vmatprep.subr.mxu0 0.0
      %2411 = vmatpush1.msra.mxu0 0.0
      %2412 = vmatprep.subr.mxu0 0.0
      %2413 = vmatpush1.msra.mxu0 0.0
      %2414 = vmatprep.subr.mxu0 0.0
      %2415 = vmatpush1.msra.mxu0 0.0
      %2416 = vmatprep.subr.mxu0 0.0
      %2417 = vmatpush1.msra.mxu0 0.0
      %2418 = vmatprep.mubr.f32.mxu0 0.0
      %2419 = vmatmul.mubr.f32.gmra.mrb[0].mxu0 %v2259
      %v2420 = vpop.f32.mrb[0].mxu0
      %v2421 = vadd.f32 0.0, %v2420
      %v2422 = vpop.f32.mrb[0].mxu0
      %2423 = vmatprep.mubr.f32.mxu0 0.0
      %2424 = vmatmul.mubr.f32.gmra.mrb[0].mxu0 %v2262
      %v2425 = vpop.f32.mrb[0].mxu0
      %v2426 = vadd.f32 0.0, %v2425
      %v2427 = vpop.f32.mrb[0].mxu0
      %2428 = vmatprep.mubr.f32.mxu0 0.0
      %2429 = vmatmul.mubr.f32.gmra.mrb[0].mxu0 %v2265
      %v2430 = vpop.f32.mrb[0].mxu0
      %v2431 = vadd.f32 0.0, %v2430
      %v2432 = vpop.f32.mrb[0].mxu0
      %2433 = vmatprep.mubr.f32.mxu0 0.0
      %2434 = vmatmul.mubr.f32.gmra.mrb[0].mxu0 %v2268
      %v2435 = vpop.f32.mrb[0].mxu0
      %v2436 = vadd.f32 0.0, %v2435
      %v2437 = vpop.f32.mrb[0].mxu0
      %2438 = vmatprep.mubr.f32.mxu0 0.0
      %2439 = vmatmul.mubr.f32.gmra.mrb[0].mxu0 %v2271
      %v2440 = vpop.f32.mrb[0].mxu0
      %v2441 = vadd.f32 0.0, %v2440
      %v2442 = vpop.f32.mrb[0].mxu0
      %2443 = vmatprep.mubr.f32.mxu0 0.0
      %2444 = vmatmul.mubr.f32.gmra.mrb[0].mxu0 %v2274
      %v2445 = vpop.f32.mrb[0].mxu0
      %v2446 = vadd.f32 0.0, %v2445
      %v2447 = vpop.f32.mrb[0].mxu0
      %2448 = vmatprep.mubr.f32.mxu0 0.0
      %2449 = vmatmul.mubr.f32.gmra.mrb[0].mxu0 %v2277
      %v2450 = vpop.f32.mrb[0].mxu0
      %v2451 = vadd.f32 0.0, %v2450
      %v2452 = vpop.f32.mrb[0].mxu0
      %2453 = vmatprep.mubr.f32.mxu0 0.0
      %2454 = vmatmul.mubr.f32.gmra.mrb[0].mxu0 %v2280
      %v2455 = vpop.f32.mrb[0].mxu0
      %v2456 = vadd.f32 0.0, %v2455
      %v2457 = vpop.f32.mrb[0].mxu0
      %2458 = vmatprep.mubr.f32.mxu0 0.0
      %2459 = vmatmul.mubr.f32.gmra.mrb[0].mxu0 %v2283
      %v2460 = vpop.f32.mrb[0].mxu0
      %v2461 = vadd.f32 0.0, %v2460
      %v2462 = vpop.f32.mrb[0].mxu0
      %2463 = vmatprep.mubr.f32.mxu0 0.0
      %2464 = vmatmul.mubr.f32.gmra.mrb[0].mxu0 %v2286
      %v2465 = vpop.f32.mrb[0].mxu0
      %v2466 = vadd.f32 0.0, %v2465
      %v2467 = vpop.f32.mrb[0].mxu0
      %2468 = vmatprep.mubr.f32.mxu0 0.0
      %2469 = vmatmul.mubr.f32.gmra.mrb[0].mxu0 %v2289
      %v2470 = vpop.f32.mrb[0].mxu0
      %v2471 = vadd.f32 0.0, %v2470
      %v2472 = vpop.f32.mrb[0].mxu0
      %2473 = vmatprep.mubr.f32.mxu0 0.0
      %2474 = vmatmul.mubr.f32.gmra.mrb[0].mxu0 %v2292
      %v2475 = vpop.f32.mrb[0].mxu0
      %v2476 = vadd.f32 0.0, %v2475
      %v2477 = vpop.f32.mrb[0].mxu0
      %2478 = vmatprep.mubr.f32.mxu0 0.0
      %2479 = vmatmul.mubr.f32.gmra.mrb[0].mxu0 %v2295
      %v2480 = vpop.f32.mrb[0].mxu0
      %v2481 = vadd.f32 0.0, %v2480
      %v2482 = vpop.f32.mrb[0].mxu0
      %2483 = vmatprep.mubr.f32.mxu0 0.0
      %2484 = vmatmul.mubr.f32.gmra.mrb[0].mxu0 %v2298
      %v2485 = vpop.f32.mrb[0].mxu0
      %v2486 = vadd.f32 0.0, %v2485
      %v2487 = vpop.f32.mrb[0].mxu0
      %2488 = vmatprep.mubr.f32.mxu0 0.0
      %2489 = vmatmul.mubr.f32.gmra.mrb[0].mxu0 %v2301
      %v2490 = vpop.f32.mrb[0].mxu0
      %v2491 = vadd.f32 0.0, %v2490
      %v2492 = vpop.f32.mrb[0].mxu0
      %2493 = vmatprep.mubr.f32.mxu0 0.0
      %2494 = vmatmul.mubr.f32.gmra.mrb[0].mxu0 %v2304
      %v2495 = vpop.f32.mrb[0].mxu0
      %v2496 = vadd.f32 0.0, %v2495
      %v2497 = vpop.f32.mrb[0].mxu0
      %2498 = vmatprep.mubr.f32.mxu0 0.0
      %2499 = vmatmul.mubr.f32.gmra.mrb[0].mxu0 %v2307
      %v2500 = vpop.f32.mrb[0].mxu0
      %v2501 = vadd.f32 0.0, %v2500
      %v2502 = vpop.f32.mrb[0].mxu0
      %2503 = vmatprep.mubr.f32.mxu0 0.0
      %2504 = vmatmul.mubr.f32.gmra.mrb[0].mxu0 %v2310
      %v2505 = vpop.f32.mrb[0].mxu0
      %v2506 = vadd.f32 0.0, %v2505
      %v2507 = vpop.f32.mrb[0].mxu0
      %2508 = vmatprep.mubr.f32.mxu0 0.0
      %2509 = vmatmul.mubr.f32.gmra.mrb[0].mxu0 %v2313
      %v2510 = vpop.f32.mrb[0].mxu0
      %v2511 = vadd.f32 0.0, %v2510
      %v2512 = vpop.f32.mrb[0].mxu0
      %2513 = vmatprep.mubr.f32.mxu0 0.0
      %2514 = vmatmul.mubr.f32.gmra.mrb[0].mxu0 %v2316
      %v2515 = vpop.f32.mrb[0].mxu0
      %v2516 = vadd.f32 0.0, %v2515
      %v2517 = vpop.f32.mrb[0].mxu0
      %2518 = vmatprep.mubr.f32.mxu0 0.0
      %2519 = vmatmul.mubr.f32.gmra.mrb[0].mxu0 %v2319
      %v2520 = vpop.f32.mrb[0].mxu0
      %v2521 = vadd.f32 0.0, %v2520
      %v2522 = vpop.f32.mrb[0].mxu0
      %2523 = vmatprep.mubr.f32.mxu0 0.0
      %2524 = vmatmul.mubr.f32.gmra.mrb[0].mxu0 %v2322
      %v2525 = vpop.f32.mrb[0].mxu0
      %v2526 = vadd.f32 0.0, %v2525
      %v2527 = vpop.f32.mrb[0].mxu0
      %2528 = vmatprep.mubr.f32.mxu0 0.0
      %2529 = vmatmul.mubr.f32.gmra.mrb[0].mxu0 %v2325
      %v2530 = vpop.f32.mrb[0].mxu0
      %v2531 = vadd.f32 0.0, %v2530
      %v2532 = vpop.f32.mrb[0].mxu0
      %2533 = vmatprep.mubr.f32.mxu0 0.0
      %2534 = vmatmul.mubr.f32.gmra.mrb[0].mxu0 %v2328
      %v2535 = vpop.f32.mrb[0].mxu0
      %v2536 = vadd.f32 0.0, %v2535
      %v2537 = vpop.f32.mrb[0].mxu0
      %2538 = vmatprep.mubr.f32.mxu0 0.0
      %2539 = vmatmul.mubr.f32.gmra.mrb[0].mxu0 %v2331
      %v2540 = vpop.f32.mrb[0].mxu0
      %v2541 = vadd.f32 0.0, %v2540
      %v2542 = vpop.f32.mrb[0].mxu0
      %2543 = vmatprep.mubr.f32.mxu0 0.0
      %2544 = vmatmul.mubr.f32.gmra.mrb[0].mxu0 %v2334
      %v2545 = vpop.f32.mrb[0].mxu0
      %v2546 = vadd.f32 0.0, %v2545
      %v2547 = vpop.f32.mrb[0].mxu0
      %2548 = vmatprep.mubr.f32.mxu0 0.0
      %2549 = vmatmul.mubr.f32.gmra.mrb[0].mxu0 %v2337
      %v2550 = vpop.f32.mrb[0].mxu0
      %v2551 = vadd.f32 0.0, %v2550
      %v2552 = vpop.f32.mrb[0].mxu0
      %2553 = vmatprep.mubr.f32.mxu0 0.0
      %2554 = vmatmul.mubr.f32.gmra.mrb[0].mxu0 %v2340
      %v2555 = vpop.f32.mrb[0].mxu0
      %v2556 = vadd.f32 0.0, %v2555
      %v2557 = vpop.f32.mrb[0].mxu0
      %2558 = vmatprep.mubr.f32.mxu0 0.0
      %2559 = vmatmul.mubr.f32.gmra.mrb[0].mxu0 %v2343
      %v2560 = vpop.f32.mrb[0].mxu0
      %v2561 = vadd.f32 0.0, %v2560
      %v2562 = vpop.f32.mrb[0].mxu0
      %2563 = vmatprep.mubr.f32.mxu0 0.0
      %2564 = vmatmul.mubr.f32.gmra.mrb[0].mxu0 %v2346
      %v2565 = vpop.f32.mrb[0].mxu0
      %v2566 = vadd.f32 0.0, %v2565
      %v2567 = vpop.f32.mrb[0].mxu0
      %2568 = vmatprep.mubr.f32.mxu0 0.0
      %2569 = vmatmul.mubr.f32.gmra.mrb[0].mxu0 %v2349
      %v2570 = vpop.f32.mrb[0].mxu0
      %v2571 = vadd.f32 0.0, %v2570
      %v2572 = vpop.f32.mrb[0].mxu0
      %2573 = vmatprep.mubr.f32.mxu0 0.0
      %2574 = vmatmul.mubr.f32.gmra.mrb[0].mxu0 %v2352
      %v2575 = vpop.f32.mrb[0].mxu0
      %v2576 = vadd.f32 0.0, %v2575
      %v2577 = vpop.f32.mrb[0].mxu0
      %2578 = vdwg.mxu0
      %v2580 = vsel %vm2257, %v1931, 0
      %v2583 = vsel %vm2257, %v1932, 0
      %v2586 = vsel %vm2257, %v1933, 0
      %v2589 = vsel %vm2257, %v1934, 0
      %v2592 = vsel %vm2257, %v1935, 0
      %v2595 = vsel %vm2257, %v1936, 0
      %v2598 = vsel %vm2257, %v1937, 0
      %v2601 = vsel %vm2257, %v1938, 0
      %v2604 = vsel %vm2257, %v1939, 0
      %v2607 = vsel %vm2257, %v1940, 0
      %v2610 = vsel %vm2257, %v1941, 0
      %v2613 = vsel %vm2257, %v1942, 0
      %v2616 = vsel %vm2257, %v1943, 0
      %v2619 = vsel %vm2257, %v1944, 0
      %v2622 = vsel %vm2257, %v1945, 0
      %v2625 = vsel %vm2257, %v1946, 0
      %v2628 = vsel %vm2257, %v1947, 0
      %v2631 = vsel %vm2257, %v1948, 0
      %v2634 = vsel %vm2257, %v1949, 0
      %v2637 = vsel %vm2257, %v1950, 0
      %v2640 = vsel %vm2257, %v1951, 0
      %v2643 = vsel %vm2257, %v1952, 0
      %v2646 = vsel %vm2257, %v1953, 0
      %v2649 = vsel %vm2257, %v1954, 0
      %v2652 = vsel %vm2257, %v1955, 0
      %v2655 = vsel %vm2257, %v1956, 0
      %v2658 = vsel %vm2257, %v1957, 0
      %v2661 = vsel %vm2257, %v1958, 0
      %v2664 = vsel %vm2257, %v1959, 0
      %v2667 = vsel %vm2257, %v1960, 0
      %v2670 = vsel %vm2257, %v1961, 0
      %v2673 = vsel %vm2257, %v1962, 0
      %2675 = vmatprep.subr.mxu0 0.0
      %2676 = vmatpush1.msra.mxu0 %v2252
      %2677 = vmatprep.subr.mxu0 0.0
      %2678 = vmatpush1.msra.mxu0 %v2253
      %2679 = vmatprep.subr.mxu0 0.0
      %2680 = vmatpush1.msra.mxu0 0.0
      %2681 = vmatprep.subr.mxu0 0.0
      %2682 = vmatpush1.msra.mxu0 0.0
      %2683 = vmatprep.subr.mxu0 0.0
      %2684 = vmatpush1.msra.mxu0 0.0
      %2685 = vmatprep.subr.mxu0 0.0
      %2686 = vmatpush1.msra.mxu0 0.0
      %2687 = vmatprep.subr.mxu0 0.0
      %2688 = vmatpush1.msra.mxu0 0.0
      %2689 = vmatprep.subr.mxu0 0.0
      %2690 = vmatpush1.msra.mxu0 0.0
      %2691 = vmatprep.subr.mxu0 0.0
      %2692 = vmatpush1.msra.mxu0 0.0
      %2693 = vmatprep.subr.mxu0 0.0
      %2694 = vmatpush1.msra.mxu0 0.0
      %2695 = vmatprep.subr.mxu0 0.0
      %2696 = vmatpush1.msra.mxu0 0.0
      %2697 = vmatprep.subr.mxu0 0.0
      %2698 = vmatpush1.msra.mxu0 0.0
      %2699 = vmatprep.subr.mxu0 0.0
      %2700 = vmatpush1.msra.mxu0 0.0
      %2701 = vmatprep.subr.mxu0 0.0
      %2702 = vmatpush1.msra.mxu0 0.0
      %2703 = vmatprep.subr.mxu0 0.0
      %2704 = vmatpush1.msra.mxu0 0.0
      %2705 = vmatprep.subr.mxu0 0.0
      %2706 = vmatpush1.msra.mxu0 0.0
      %2707 = vmatprep.subr.mxu0 0.0
      %2708 = vmatpush1.msra.mxu0 0.0
      %2709 = vmatprep.subr.mxu0 0.0
      %2710 = vmatpush1.msra.mxu0 0.0
      %2711 = vmatprep.subr.mxu0 0.0
      %2712 = vmatpush1.msra.mxu0 0.0
      %2713 = vmatprep.subr.mxu0 0.0
      %2714 = vmatpush1.msra.mxu0 0.0
      %2715 = vmatprep.subr.mxu0 0.0
      %2716 = vmatpush1.msra.mxu0 0.0
      %2717 = vmatprep.subr.mxu0 0.0
      %2718 = vmatpush1.msra.mxu0 0.0
      %2719 = vmatprep.subr.mxu0 0.0
      %2720 = vmatpush1.msra.mxu0 0.0
      %2721 = vmatprep.subr.mxu0 0.0
      %2722 = vmatpush1.msra.mxu0 0.0
      %2723 = vmatprep.subr.mxu0 0.0
      %2724 = vmatpush1.msra.mxu0 0.0
      %2725 = vmatprep.subr.mxu0 0.0
      %2726 = vmatpush1.msra.mxu0 0.0
      %2727 = vmatprep.subr.mxu0 0.0
      %2728 = vmatpush1.msra.mxu0 0.0
      %2729 = vmatprep.subr.mxu0 0.0
      %2730 = vmatpush1.msra.mxu0 0.0
      %2731 = vmatprep.subr.mxu0 0.0
      %2732 = vmatpush1.msra.mxu0 0.0
      %2733 = vmatprep.subr.mxu0 0.0
      %2734 = vmatpush1.msra.mxu0 0.0
      %2735 = vmatprep.subr.mxu0 0.0
      %2736 = vmatpush1.msra.mxu0 0.0
      %2737 = vmatprep.subr.mxu0 0.0
      %2738 = vmatpush1.msra.mxu0 0.0
      %2739 = vmatprep.mubr.f32.mxu0 0.0
      %2740 = vmatmul.mubr.f32.gmra.mrb[0].mxu0 %v2580
      %v2741 = vpop.f32.mrb[0].mxu0
      %v2742 = vadd.f32 %v2421, %v2741
      %v2743 = vpop.f32.mrb[0].mxu0
      %2744 = vmatprep.mubr.f32.mxu0 0.0
      %2745 = vmatmul.mubr.f32.gmra.mrb[0].mxu0 %v2583
      %v2746 = vpop.f32.mrb[0].mxu0
      %v2747 = vadd.f32 %v2426, %v2746
      %v2748 = vpop.f32.mrb[0].mxu0
      %2749 = vmatprep.mubr.f32.mxu0 0.0
      %2750 = vmatmul.mubr.f32.gmra.mrb[0].mxu0 %v2586
      %v2751 = vpop.f32.mrb[0].mxu0
      %v2752 = vadd.f32 %v2431, %v2751
      %v2753 = vpop.f32.mrb[0].mxu0
      %2754 = vmatprep.mubr.f32.mxu0 0.0
      %2755 = vmatmul.mubr.f32.gmra.mrb[0].mxu0 %v2589
      %v2756 = vpop.f32.mrb[0].mxu0
      %v2757 = vadd.f32 %v2436, %v2756
      %v2758 = vpop.f32.mrb[0].mxu0
      %2759 = vmatprep.mubr.f32.mxu0 0.0
      %2760 = vmatmul.mubr.f32.gmra.mrb[0].mxu0 %v2592
      %v2761 = vpop.f32.mrb[0].mxu0
      %v2762 = vadd.f32 %v2441, %v2761
      %v2763 = vpop.f32.mrb[0].mxu0
      %2764 = vmatprep.mubr.f32.mxu0 0.0
      %2765 = vmatmul.mubr.f32.gmra.mrb[0].mxu0 %v2595
      %v2766 = vpop.f32.mrb[0].mxu0
      %v2767 = vadd.f32 %v2446, %v2766
      %v2768 = vpop.f32.mrb[0].mxu0
      %2769 = vmatprep.mubr.f32.mxu0 0.0
      %2770 = vmatmul.mubr.f32.gmra.mrb[0].mxu0 %v2598
      %v2771 = vpop.f32.mrb[0].mxu0
      %v2772 = vadd.f32 %v2451, %v2771
      %v2773 = vpop.f32.mrb[0].mxu0
      %2774 = vmatprep.mubr.f32.mxu0 0.0
      %2775 = vmatmul.mubr.f32.gmra.mrb[0].mxu0 %v2601
      %v2776 = vpop.f32.mrb[0].mxu0
      %v2777 = vadd.f32 %v2456, %v2776
      %v2778 = vpop.f32.mrb[0].mxu0
      %2779 = vmatprep.mubr.f32.mxu0 0.0
      %2780 = vmatmul.mubr.f32.gmra.mrb[0].mxu0 %v2604
      %v2781 = vpop.f32.mrb[0].mxu0
      %v2782 = vadd.f32 %v2461, %v2781
      %v2783 = vpop.f32.mrb[0].mxu0
      %2784 = vmatprep.mubr.f32.mxu0 0.0
      %2785 = vmatmul.mubr.f32.gmra.mrb[0].mxu0 %v2607
      %v2786 = vpop.f32.mrb[0].mxu0
      %v2787 = vadd.f32 %v2466, %v2786
      %v2788 = vpop.f32.mrb[0].mxu0
      %2789 = vmatprep.mubr.f32.mxu0 0.0
      %2790 = vmatmul.mubr.f32.gmra.mrb[0].mxu0 %v2610
      %v2791 = vpop.f32.mrb[0].mxu0
      %v2792 = vadd.f32 %v2471, %v2791
      %v2793 = vpop.f32.mrb[0].mxu0
      %2794 = vmatprep.mubr.f32.mxu0 0.0
      %2795 = vmatmul.mubr.f32.gmra.mrb[0].mxu0 %v2613
      %v2796 = vpop.f32.mrb[0].mxu0
      %v2797 = vadd.f32 %v2476, %v2796
      %v2798 = vpop.f32.mrb[0].mxu0
      %2799 = vmatprep.mubr.f32.mxu0 0.0
      %2800 = vmatmul.mubr.f32.gmra.mrb[0].mxu0 %v2616
      %v2801 = vpop.f32.mrb[0].mxu0
      %v2802 = vadd.f32 %v2481, %v2801
      %v2803 = vpop.f32.mrb[0].mxu0
      %2804 = vmatprep.mubr.f32.mxu0 0.0
      %2805 = vmatmul.mubr.f32.gmra.mrb[0].mxu0 %v2619
      %v2806 = vpop.f32.mrb[0].mxu0
      %v2807 = vadd.f32 %v2486, %v2806
      %v2808 = vpop.f32.mrb[0].mxu0
      %2809 = vmatprep.mubr.f32.mxu0 0.0
      %2810 = vmatmul.mubr.f32.gmra.mrb[0].mxu0 %v2622
      %v2811 = vpop.f32.mrb[0].mxu0
      %v2812 = vadd.f32 %v2491, %v2811
      %v2813 = vpop.f32.mrb[0].mxu0
      %2814 = vmatprep.mubr.f32.mxu0 0.0
      %2815 = vmatmul.mubr.f32.gmra.mrb[0].mxu0 %v2625
      %v2816 = vpop.f32.mrb[0].mxu0
      %v2817 = vadd.f32 %v2496, %v2816
      %v2818 = vpop.f32.mrb[0].mxu0
      %2819 = vmatprep.mubr.f32.mxu0 0.0
      %2820 = vmatmul.mubr.f32.gmra.mrb[0].mxu0 %v2628
      %v2821 = vpop.f32.mrb[0].mxu0
      %v2822 = vadd.f32 %v2501, %v2821
      %v2823 = vpop.f32.mrb[0].mxu0
      %2824 = vmatprep.mubr.f32.mxu0 0.0
      %2825 = vmatmul.mubr.f32.gmra.mrb[0].mxu0 %v2631
      %v2826 = vpop.f32.mrb[0].mxu0
      %v2827 = vadd.f32 %v2506, %v2826
      %v2828 = vpop.f32.mrb[0].mxu0
      %2829 = vmatprep.mubr.f32.mxu0 0.0
      %2830 = vmatmul.mubr.f32.gmra.mrb[0].mxu0 %v2634
      %v2831 = vpop.f32.mrb[0].mxu0
      %v2832 = vadd.f32 %v2511, %v2831
      %v2833 = vpop.f32.mrb[0].mxu0
      %2834 = vmatprep.mubr.f32.mxu0 0.0
      %2835 = vmatmul.mubr.f32.gmra.mrb[0].mxu0 %v2637
      %v2836 = vpop.f32.mrb[0].mxu0
      %v2837 = vadd.f32 %v2516, %v2836
      %v2838 = vpop.f32.mrb[0].mxu0
      %2839 = vmatprep.mubr.f32.mxu0 0.0
      %2840 = vmatmul.mubr.f32.gmra.mrb[0].mxu0 %v2640
      %v2841 = vpop.f32.mrb[0].mxu0
      %v2842 = vadd.f32 %v2521, %v2841
      %v2843 = vpop.f32.mrb[0].mxu0
      %2844 = vmatprep.mubr.f32.mxu0 0.0
      %2845 = vmatmul.mubr.f32.gmra.mrb[0].mxu0 %v2643
      %v2846 = vpop.f32.mrb[0].mxu0
      %v2847 = vadd.f32 %v2526, %v2846
      %v2848 = vpop.f32.mrb[0].mxu0
      %2849 = vmatprep.mubr.f32.mxu0 0.0
      %2850 = vmatmul.mubr.f32.gmra.mrb[0].mxu0 %v2646
      %v2851 = vpop.f32.mrb[0].mxu0
      %v2852 = vadd.f32 %v2531, %v2851
      %v2853 = vpop.f32.mrb[0].mxu0
      %2854 = vmatprep.mubr.f32.mxu0 0.0
      %2855 = vmatmul.mubr.f32.gmra.mrb[0].mxu0 %v2649
      %v2856 = vpop.f32.mrb[0].mxu0
      %v2857 = vadd.f32 %v2536, %v2856
      %v2858 = vpop.f32.mrb[0].mxu0
      %2859 = vmatprep.mubr.f32.mxu0 0.0
      %2860 = vmatmul.mubr.f32.gmra.mrb[0].mxu0 %v2652
      %v2861 = vpop.f32.mrb[0].mxu0
      %v2862 = vadd.f32 %v2541, %v2861
      %v2863 = vpop.f32.mrb[0].mxu0
      %2864 = vmatprep.mubr.f32.mxu0 0.0
      %2865 = vmatmul.mubr.f32.gmra.mrb[0].mxu0 %v2655
      %v2866 = vpop.f32.mrb[0].mxu0
      %v2867 = vadd.f32 %v2546, %v2866
      %v2868 = vpop.f32.mrb[0].mxu0
      %2869 = vmatprep.mubr.f32.mxu0 0.0
      %2870 = vmatmul.mubr.f32.gmra.mrb[0].mxu0 %v2658
      %v2871 = vpop.f32.mrb[0].mxu0
      %v2872 = vadd.f32 %v2551, %v2871
      %v2873 = vpop.f32.mrb[0].mxu0
      %2874 = vmatprep.mubr.f32.mxu0 0.0
      %2875 = vmatmul.mubr.f32.gmra.mrb[0].mxu0 %v2661
      %v2876 = vpop.f32.mrb[0].mxu0
      %v2877 = vadd.f32 %v2556, %v2876
      %v2878 = vpop.f32.mrb[0].mxu0
      %2879 = vmatprep.mubr.f32.mxu0 0.0
      %2880 = vmatmul.mubr.f32.gmra.mrb[0].mxu0 %v2664
      %v2881 = vpop.f32.mrb[0].mxu0
      %v2882 = vadd.f32 %v2561, %v2881
      %v2883 = vpop.f32.mrb[0].mxu0
      %2884 = vmatprep.mubr.f32.mxu0 0.0
      %2885 = vmatmul.mubr.f32.gmra.mrb[0].mxu0 %v2667
      %v2886 = vpop.f32.mrb[0].mxu0
      %v2887 = vadd.f32 %v2566, %v2886
      %v2888 = vpop.f32.mrb[0].mxu0
      %2889 = vmatprep.mubr.f32.mxu0 0.0
      %2890 = vmatmul.mubr.f32.gmra.mrb[0].mxu0 %v2670
      %v2891 = vpop.f32.mrb[0].mxu0
      %v2892 = vadd.f32 %v2571, %v2891
      %v2893 = vpop.f32.mrb[0].mxu0
      %2894 = vmatprep.mubr.f32.mxu0 0.0
      %2895 = vmatmul.mubr.f32.gmra.mrb[0].mxu0 %v2673
      %v2896 = vpop.f32.mrb[0].mxu0
      %v2897 = vadd.f32 %v2576, %v2896
      %v2898 = vpop.f32.mrb[0].mxu0
      %2899 = vdwg.mxu0
      %s2900 = scalar_lea.vmem %s1, 32
      %v2901 = vld [vmem:[%s2900] sm:$0xff]
      %v2902 = vld [vmem:[%s2900 + $0x8] sm:$0xff]
      %v2904 = vsel %vm2257, %v2220, 0
      %v2907 = vsel %vm2257, %v2221, 0
      %v2910 = vsel %vm2257, %v2222, 0
      %v2913 = vsel %vm2257, %v2223, 0
      %v2916 = vsel %vm2257, %v2224, 0
      %v2919 = vsel %vm2257, %v2225, 0
      %v2922 = vsel %vm2257, %v2226, 0
      %v2925 = vsel %vm2257, %v2227, 0
      %v2928 = vsel %vm2257, %v2228, 0
      %v2931 = vsel %vm2257, %v2229, 0
      %v2934 = vsel %vm2257, %v2230, 0
      %v2937 = vsel %vm2257, %v2231, 0
      %v2940 = vsel %vm2257, %v2232, 0
      %v2943 = vsel %vm2257, %v2233, 0
      %v2946 = vsel %vm2257, %v2234, 0
      %v2949 = vsel %vm2257, %v2235, 0
      %v2952 = vsel %vm2257, %v2236, 0
      %v2955 = vsel %vm2257, %v2237, 0
      %v2958 = vsel %vm2257, %v2238, 0
      %v2961 = vsel %vm2257, %v2239, 0
      %v2964 = vsel %vm2257, %v2240, 0
      %v2967 = vsel %vm2257, %v2241, 0
      %v2970 = vsel %vm2257, %v2242, 0
      %v2973 = vsel %vm2257, %v2243, 0
      %v2976 = vsel %vm2257, %v2244, 0
      %v2979 = vsel %vm2257, %v2245, 0
      %v2982 = vsel %vm2257, %v2246, 0
      %v2985 = vsel %vm2257, %v2247, 0
      %v2988 = vsel %vm2257, %v2248, 0
      %v2991 = vsel %vm2257, %v2249, 0
      %v2994 = vsel %vm2257, %v2250, 0
      %v2997 = vsel %vm2257, %v2251, 0
      %2999 = vmatprep.subr.mxu0 0.0
      %3000 = vmatpush1.msra.mxu0 %v2901
      %3001 = vmatprep.subr.mxu0 0.0
      %3002 = vmatpush1.msra.mxu0 %v2902
      %3003 = vmatprep.subr.mxu0 0.0
      %3004 = vmatpush1.msra.mxu0 0.0
      %3005 = vmatprep.subr.mxu0 0.0
      %3006 = vmatpush1.msra.mxu0 0.0
      %3007 = vmatprep.subr.mxu0 0.0
      %3008 = vmatpush1.msra.mxu0 0.0
      %3009 = vmatprep.subr.mxu0 0.0
      %3010 = vmatpush1.msra.mxu0 0.0
      %3011 = vmatprep.subr.mxu0 0.0
      %3012 = vmatpush1.msra.mxu0 0.0
      %3013 = vmatprep.subr.mxu0 0.0
      %3014 = vmatpush1.msra.mxu0 0.0
      %3015 = vmatprep.subr.mxu0 0.0
      %3016 = vmatpush1.msra.mxu0 0.0
      %3017 = vmatprep.subr.mxu0 0.0
      %3018 = vmatpush1.msra.mxu0 0.0
      %3019 = vmatprep.subr.mxu0 0.0
      %3020 = vmatpush1.msra.mxu0 0.0
      %3021 = vmatprep.subr.mxu0 0.0
      %3022 = vmatpush1.msra.mxu0 0.0
      %3023 = vmatprep.subr.mxu0 0.0
      %3024 = vmatpush1.msra.mxu0 0.0
      %3025 = vmatprep.subr.mxu0 0.0
      %3026 = vmatpush1.msra.mxu0 0.0
      %3027 = vmatprep.subr.mxu0 0.0
      %3028 = vmatpush1.msra.mxu0 0.0
      %3029 = vmatprep.subr.mxu0 0.0
      %3030 = vmatpush1.msra.mxu0 0.0
      %3031 = vmatprep.subr.mxu0 0.0
      %3032 = vmatpush1.msra.mxu0 0.0
      %3033 = vmatprep.subr.mxu0 0.0
      %3034 = vmatpush1.msra.mxu0 0.0
      %3035 = vmatprep.subr.mxu0 0.0
      %3036 = vmatpush1.msra.mxu0 0.0
      %3037 = vmatprep.subr.mxu0 0.0
      %3038 = vmatpush1.msra.mxu0 0.0
      %3039 = vmatprep.subr.mxu0 0.0
      %3040 = vmatpush1.msra.mxu0 0.0
      %3041 = vmatprep.subr.mxu0 0.0
      %3042 = vmatpush1.msra.mxu0 0.0
      %3043 = vmatprep.subr.mxu0 0.0
      %3044 = vmatpush1.msra.mxu0 0.0
      %3045 = vmatprep.subr.mxu0 0.0
      %3046 = vmatpush1.msra.mxu0 0.0
      %3047 = vmatprep.subr.mxu0 0.0
      %3048 = vmatpush1.msra.mxu0 0.0
      %3049 = vmatprep.subr.mxu0 0.0
      %3050 = vmatpush1.msra.mxu0 0.0
      %3051 = vmatprep.subr.mxu0 0.0
      %3052 = vmatpush1.msra.mxu0 0.0
      %3053 = vmatprep.subr.mxu0 0.0
      %3054 = vmatpush1.msra.mxu0 0.0
      %3055 = vmatprep.subr.mxu0 0.0
      %3056 = vmatpush1.msra.mxu0 0.0
      %3057 = vmatprep.subr.mxu0 0.0
      %3058 = vmatpush1.msra.mxu0 0.0
      %3059 = vmatprep.subr.mxu0 0.0
      %3060 = vmatpush1.msra.mxu0 0.0
      %3061 = vmatprep.subr.mxu0 0.0
      %3062 = vmatpush1.msra.mxu0 0.0
      %3063 = vmatprep.mubr.f32.mxu0 0.0
      %3064 = vmatmul.mubr.f32.gmra.mrb[0].mxu0 %v2904
      %v3065 = vpop.f32.mrb[0].mxu0
      %v3066 = vadd.f32 0.0, %v3065
      %v3067 = vpop.f32.mrb[0].mxu0
      %3068 = vmatprep.mubr.f32.mxu0 0.0
      %3069 = vmatmul.mubr.f32.gmra.mrb[0].mxu0 %v2907
      %v3070 = vpop.f32.mrb[0].mxu0
      %v3071 = vadd.f32 0.0, %v3070
      %v3072 = vpop.f32.mrb[0].mxu0
      %3073 = vmatprep.mubr.f32.mxu0 0.0
      %3074 = vmatmul.mubr.f32.gmra.mrb[0].mxu0 %v2910
      %v3075 = vpop.f32.mrb[0].mxu0
      %v3076 = vadd.f32 0.0, %v3075
      %v3077 = vpop.f32.mrb[0].mxu0
      %3078 = vmatprep.mubr.f32.mxu0 0.0
      %3079 = vmatmul.mubr.f32.gmra.mrb[0].mxu0 %v2913
      %v3080 = vpop.f32.mrb[0].mxu0
      %v3081 = vadd.f32 0.0, %v3080
      %v3082 = vpop.f32.mrb[0].mxu0
      %3083 = vmatprep.mubr.f32.mxu0 0.0
      %3084 = vmatmul.mubr.f32.gmra.mrb[0].mxu0 %v2916
      %v3085 = vpop.f32.mrb[0].mxu0
      %v3086 = vadd.f32 0.0, %v3085
      %v3087 = vpop.f32.mrb[0].mxu0
      %3088 = vmatprep.mubr.f32.mxu0 0.0
      %3089 = vmatmul.mubr.f32.gmra.mrb[0].mxu0 %v2919
      %v3090 = vpop.f32.mrb[0].mxu0
      %v3091 = vadd.f32 0.0, %v3090
      %v3092 = vpop.f32.mrb[0].mxu0
      %3093 = vmatprep.mubr.f32.mxu0 0.0
      %3094 = vmatmul.mubr.f32.gmra.mrb[0].mxu0 %v2922
      %v3095 = vpop.f32.mrb[0].mxu0
      %v3096 = vadd.f32 0.0, %v3095
      %v3097 = vpop.f32.mrb[0].mxu0
      %3098 = vmatprep.mubr.f32.mxu0 0.0
      %3099 = vmatmul.mubr.f32.gmra.mrb[0].mxu0 %v2925
      %v3100 = vpop.f32.mrb[0].mxu0
      %v3101 = vadd.f32 0.0, %v3100
      %v3102 = vpop.f32.mrb[0].mxu0
      %3103 = vmatprep.mubr.f32.mxu0 0.0
      %3104 = vmatmul.mubr.f32.gmra.mrb[0].mxu0 %v2928
      %v3105 = vpop.f32.mrb[0].mxu0
      %v3106 = vadd.f32 0.0, %v3105
      %v3107 = vpop.f32.mrb[0].mxu0
      %3108 = vmatprep.mubr.f32.mxu0 0.0
      %3109 = vmatmul.mubr.f32.gmra.mrb[0].mxu0 %v2931
      %v3110 = vpop.f32.mrb[0].mxu0
      %v3111 = vadd.f32 0.0, %v3110
      %v3112 = vpop.f32.mrb[0].mxu0
      %3113 = vmatprep.mubr.f32.mxu0 0.0
      %3114 = vmatmul.mubr.f32.gmra.mrb[0].mxu0 %v2934
      %v3115 = vpop.f32.mrb[0].mxu0
      %v3116 = vadd.f32 0.0, %v3115
      %v3117 = vpop.f32.mrb[0].mxu0
      %3118 = vmatprep.mubr.f32.mxu0 0.0
      %3119 = vmatmul.mubr.f32.gmra.mrb[0].mxu0 %v2937
      %v3120 = vpop.f32.mrb[0].mxu0
      %v3121 = vadd.f32 0.0, %v3120
      %v3122 = vpop.f32.mrb[0].mxu0
      %3123 = vmatprep.mubr.f32.mxu0 0.0
      %3124 = vmatmul.mubr.f32.gmra.mrb[0].mxu0 %v2940
      %v3125 = vpop.f32.mrb[0].mxu0
      %v3126 = vadd.f32 0.0, %v3125
      %v3127 = vpop.f32.mrb[0].mxu0
      %3128 = vmatprep.mubr.f32.mxu0 0.0
      %3129 = vmatmul.mubr.f32.gmra.mrb[0].mxu0 %v2943
      %v3130 = vpop.f32.mrb[0].mxu0
      %v3131 = vadd.f32 0.0, %v3130
      %v3132 = vpop.f32.mrb[0].mxu0
      %3133 = vmatprep.mubr.f32.mxu0 0.0
      %3134 = vmatmul.mubr.f32.gmra.mrb[0].mxu0 %v2946
      %v3135 = vpop.f32.mrb[0].mxu0
      %v3136 = vadd.f32 0.0, %v3135
      %v3137 = vpop.f32.mrb[0].mxu0
      %3138 = vmatprep.mubr.f32.mxu0 0.0
      %3139 = vmatmul.mubr.f32.gmra.mrb[0].mxu0 %v2949
      %v3140 = vpop.f32.mrb[0].mxu0
      %v3141 = vadd.f32 0.0, %v3140
      %v3142 = vpop.f32.mrb[0].mxu0
      %3143 = vmatprep.mubr.f32.mxu0 0.0
      %3144 = vmatmul.mubr.f32.gmra.mrb[0].mxu0 %v2952
      %v3145 = vpop.f32.mrb[0].mxu0
      %v3146 = vadd.f32 0.0, %v3145
      %v3147 = vpop.f32.mrb[0].mxu0
      %3148 = vmatprep.mubr.f32.mxu0 0.0
      %3149 = vmatmul.mubr.f32.gmra.mrb[0].mxu0 %v2955
      %v3150 = vpop.f32.mrb[0].mxu0
      %v3151 = vadd.f32 0.0, %v3150
      %v3152 = vpop.f32.mrb[0].mxu0
      %3153 = vmatprep.mubr.f32.mxu0 0.0
      %3154 = vmatmul.mubr.f32.gmra.mrb[0].mxu0 %v2958
      %v3155 = vpop.f32.mrb[0].mxu0
      %v3156 = vadd.f32 0.0, %v3155
      %v3157 = vpop.f32.mrb[0].mxu0
      %3158 = vmatprep.mubr.f32.mxu0 0.0
      %3159 = vmatmul.mubr.f32.gmra.mrb[0].mxu0 %v2961
      %v3160 = vpop.f32.mrb[0].mxu0
      %v3161 = vadd.f32 0.0, %v3160
      %v3162 = vpop.f32.mrb[0].mxu0
      %3163 = vmatprep.mubr.f32.mxu0 0.0
      %3164 = vmatmul.mubr.f32.gmra.mrb[0].mxu0 %v2964
      %v3165 = vpop.f32.mrb[0].mxu0
      %v3166 = vadd.f32 0.0, %v3165
      %v3167 = vpop.f32.mrb[0].mxu0
      %3168 = vmatprep.mubr.f32.mxu0 0.0
      %3169 = vmatmul.mubr.f32.gmra.mrb[0].mxu0 %v2967
      %v3170 = vpop.f32.mrb[0].mxu0
      %v3171 = vadd.f32 0.0, %v3170
      %v3172 = vpop.f32.mrb[0].mxu0
      %3173 = vmatprep.mubr.f32.mxu0 0.0
      %3174 = vmatmul.mubr.f32.gmra.mrb[0].mxu0 %v2970
      %v3175 = vpop.f32.mrb[0].mxu0
      %v3176 = vadd.f32 0.0, %v3175
      %v3177 = vpop.f32.mrb[0].mxu0
      %3178 = vmatprep.mubr.f32.mxu0 0.0
      %3179 = vmatmul.mubr.f32.gmra.mrb[0].mxu0 %v2973
      %v3180 = vpop.f32.mrb[0].mxu0
      %v3181 = vadd.f32 0.0, %v3180
      %v3182 = vpop.f32.mrb[0].mxu0
      %3183 = vmatprep.mubr.f32.mxu0 0.0
      %3184 = vmatmul.mubr.f32.gmra.mrb[0].mxu0 %v2976
      %v3185 = vpop.f32.mrb[0].mxu0
      %v3186 = vadd.f32 0.0, %v3185
      %v3187 = vpop.f32.mrb[0].mxu0
      %3188 = vmatprep.mubr.f32.mxu0 0.0
      %3189 = vmatmul.mubr.f32.gmra.mrb[0].mxu0 %v2979
      %v3190 = vpop.f32.mrb[0].mxu0
      %v3191 = vadd.f32 0.0, %v3190
      %v3192 = vpop.f32.mrb[0].mxu0
      %3193 = vmatprep.mubr.f32.mxu0 0.0
      %3194 = vmatmul.mubr.f32.gmra.mrb[0].mxu0 %v2982
      %v3195 = vpop.f32.mrb[0].mxu0
      %v3196 = vadd.f32 0.0, %v3195
      %v3197 = vpop.f32.mrb[0].mxu0
      %3198 = vmatprep.mubr.f32.mxu0 0.0
      %3199 = vmatmul.mubr.f32.gmra.mrb[0].mxu0 %v2985
      %v3200 = vpop.f32.mrb[0].mxu0
      %v3201 = vadd.f32 0.0, %v3200
      %v3202 = vpop.f32.mrb[0].mxu0
      %3203 = vmatprep.mubr.f32.mxu0 0.0
      %3204 = vmatmul.mubr.f32.gmra.mrb[0].mxu0 %v2988
      %v3205 = vpop.f32.mrb[0].mxu0
      %v3206 = vadd.f32 0.0, %v3205
      %v3207 = vpop.f32.mrb[0].mxu0
      %3208 = vmatprep.mubr.f32.mxu0 0.0
      %3209 = vmatmul.mubr.f32.gmra.mrb[0].mxu0 %v2991
      %v3210 = vpop.f32.mrb[0].mxu0
      %v3211 = vadd.f32 0.0, %v3210
      %v3212 = vpop.f32.mrb[0].mxu0
      %3213 = vmatprep.mubr.f32.mxu0 0.0
      %3214 = vmatmul.mubr.f32.gmra.mrb[0].mxu0 %v2994
      %v3215 = vpop.f32.mrb[0].mxu0
      %v3216 = vadd.f32 0.0, %v3215
      %v3217 = vpop.f32.mrb[0].mxu0
      %3218 = vmatprep.mubr.f32.mxu0 0.0
      %3219 = vmatmul.mubr.f32.gmra.mrb[0].mxu0 %v2997
      %v3220 = vpop.f32.mrb[0].mxu0
      %v3221 = vadd.f32 0.0, %v3220
      %v3222 = vpop.f32.mrb[0].mxu0
      %3223 = vdwg.mxu0
      %v3224 = vadd.f32 %v2742, %v3066
      %v3225 = vadd.f32 %v2747, %v3071
      %v3226 = vadd.f32 %v2752, %v3076
      %v3227 = vadd.f32 %v2757, %v3081
      %v3228 = vadd.f32 %v2762, %v3086
      %v3229 = vadd.f32 %v2767, %v3091
      %v3230 = vadd.f32 %v2772, %v3096
      %v3231 = vadd.f32 %v2777, %v3101
      %v3232 = vadd.f32 %v2782, %v3106
      %v3233 = vadd.f32 %v2787, %v3111
      %v3234 = vadd.f32 %v2792, %v3116
      %v3235 = vadd.f32 %v2797, %v3121
      %v3236 = vadd.f32 %v2802, %v3126
      %v3237 = vadd.f32 %v2807, %v3131
      %v3238 = vadd.f32 %v2812, %v3136
      %v3239 = vadd.f32 %v2817, %v3141
      %v3240 = vadd.f32 %v2822, %v3146
      %v3241 = vadd.f32 %v2827, %v3151
      %v3242 = vadd.f32 %v2832, %v3156
      %v3243 = vadd.f32 %v2837, %v3161
      %v3244 = vadd.f32 %v2842, %v3166
      %v3245 = vadd.f32 %v2847, %v3171
      %v3246 = vadd.f32 %v2852, %v3176
      %v3247 = vadd.f32 %v2857, %v3181
      %v3248 = vadd.f32 %v2862, %v3186
      %v3249 = vadd.f32 %v2867, %v3191
      %v3250 = vadd.f32 %v2872, %v3196
      %v3251 = vadd.f32 %v2877, %v3201
      %v3252 = vadd.f32 %v2882, %v3206
      %v3253 = vadd.f32 %v2887, %v3211
      %v3254 = vadd.f32 %v2892, %v3216
      %v3255 = vadd.f32 %v2897, %v3221
      %v3256 = vld [vmem:[%s2] sm:$0x1]
      %v3258 = vlaneseq
      %v3259 = vshrl.u32 %v3258, 7
      %v3260 = vsub.s32 0, %v3259
      %v3261 = vrot.slane %v3256, %v3260
      %v3263 = vadd.f32 %v3224, %v3261
      %v3264 = vadd.f32 %v3225, %v3261
      %v3265 = vadd.f32 %v3226, %v3261
      %v3266 = vadd.f32 %v3227, %v3261
      %v3267 = vadd.f32 %v3228, %v3261
      %v3268 = vadd.f32 %v3229, %v3261
      %v3269 = vadd.f32 %v3230, %v3261
      %v3270 = vadd.f32 %v3231, %v3261
      %v3271 = vadd.f32 %v3232, %v3261
      %v3272 = vadd.f32 %v3233, %v3261
      %v3273 = vadd.f32 %v3234, %v3261
      %v3274 = vadd.f32 %v3235, %v3261
      %v3275 = vadd.f32 %v3236, %v3261
      %v3276 = vadd.f32 %v3237, %v3261
      %v3277 = vadd.f32 %v3238, %v3261
      %v3278 = vadd.f32 %v3239, %v3261
      %v3279 = vadd.f32 %v3240, %v3261
      %v3280 = vadd.f32 %v3241, %v3261
      %v3281 = vadd.f32 %v3242, %v3261
      %v3282 = vadd.f32 %v3243, %v3261
      %v3283 = vadd.f32 %v3244, %v3261
      %v3284 = vadd.f32 %v3245, %v3261
      %v3285 = vadd.f32 %v3246, %v3261
      %v3286 = vadd.f32 %v3247, %v3261
      %v3287 = vadd.f32 %v3248, %v3261
      %v3288 = vadd.f32 %v3249, %v3261
      %v3289 = vadd.f32 %v3250, %v3261
      %v3290 = vadd.f32 %v3251, %v3261
      %v3291 = vadd.f32 %v3252, %v3261
      %v3292 = vadd.f32 %v3253, %v3261
      %v3293 = vadd.f32 %v3254, %v3261
      %v3294 = vadd.f32 %v3255, %v3261
      %v3295 = vld [vmem:[#allocation2] sm:$0xff]
      %v3296 = vld [vmem:[#allocation2 + $0x8] sm:$0xff]
      %v3297 = vld [vmem:[#allocation2 + $0x10] sm:$0xff]
      %v3298 = vld [vmem:[#allocation2 + $0x18] sm:$0xff]
      %v3299 = vld [vmem:[#allocation2 + $0x20] sm:$0xff]
      %v3300 = vld [vmem:[#allocation2 + $0x28] sm:$0xff]
      %v3301 = vld [vmem:[#allocation2 + $0x30] sm:$0xff]
      %v3302 = vld [vmem:[#allocation2 + $0x38] sm:$0xff]
      %v3303 = vld [vmem:[#allocation2 + $0x40] sm:$0xff]
      %v3304 = vld [vmem:[#allocation2 + $0x48] sm:$0xff]
      %v3305 = vld [vmem:[#allocation2 + $0x50] sm:$0xff]
      %v3306 = vld [vmem:[#allocation2 + $0x58] sm:$0xff]
      %v3307 = vld [vmem:[#allocation2 + $0x60] sm:$0xff]
      %v3308 = vld [vmem:[#allocation2 + $0x68] sm:$0xff]
      %v3309 = vld [vmem:[#allocation2 + $0x70] sm:$0xff]
      %v3310 = vld [vmem:[#allocation2 + $0x78] sm:$0xff]
      %v3311 = vld [vmem:[#allocation2 + $0x80] sm:$0xff]
      %v3312 = vld [vmem:[#allocation2 + $0x88] sm:$0xff]
      %v3313 = vld [vmem:[#allocation2 + $0x90] sm:$0xff]
      %v3314 = vld [vmem:[#allocation2 + $0x98] sm:$0xff]
      %v3315 = vld [vmem:[#allocation2 + $0xa0] sm:$0xff]
      %v3316 = vld [vmem:[#allocation2 + $0xa8] sm:$0xff]
      %v3317 = vld [vmem:[#allocation2 + $0xb0] sm:$0xff]
      %v3318 = vld [vmem:[#allocation2 + $0xb8] sm:$0xff]
      %v3319 = vld [vmem:[#allocation2 + $0xc0] sm:$0xff]
      %v3320 = vld [vmem:[#allocation2 + $0xc8] sm:$0xff]
      %v3321 = vld [vmem:[#allocation2 + $0xd0] sm:$0xff]
      %v3322 = vld [vmem:[#allocation2 + $0xd8] sm:$0xff]
      %v3323 = vld [vmem:[#allocation2 + $0xe0] sm:$0xff]
      %v3324 = vld [vmem:[#allocation2 + $0xe8] sm:$0xff]
      %v3325 = vld [vmem:[#allocation2 + $0xf0] sm:$0xff]
      %v3326 = vld [vmem:[#allocation2 + $0xf8] sm:$0xff]
      %vm3327 = vcmask 15360
      %v3329 = vsel %vm3327, %v3263, 0
      %v3332 = vsel %vm3327, %v3264, 0
      %v3335 = vsel %vm3327, %v3265, 0
      %v3338 = vsel %vm3327, %v3266, 0
      %v3341 = vsel %vm3327, %v3267, 0
      %v3344 = vsel %vm3327, %v3268, 0
      %v3347 = vsel %vm3327, %v3269, 0
      %v3350 = vsel %vm3327, %v3270, 0
      %v3353 = vsel %vm3327, %v3271, 0
      %v3356 = vsel %vm3327, %v3272, 0
      %v3359 = vsel %vm3327, %v3273, 0
      %v3362 = vsel %vm3327, %v3274, 0
      %v3365 = vsel %vm3327, %v3275, 0
      %v3368 = vsel %vm3327, %v3276, 0
      %v3371 = vsel %vm3327, %v3277, 0
      %v3374 = vsel %vm3327, %v3278, 0
      %v3377 = vsel %vm3327, %v3279, 0
      %v3380 = vsel %vm3327, %v3280, 0
      %v3383 = vsel %vm3327, %v3281, 0
      %v3386 = vsel %vm3327, %v3282, 0
      %v3389 = vsel %vm3327, %v3283, 0
      %v3392 = vsel %vm3327, %v3284, 0
      %v3395 = vsel %vm3327, %v3285, 0
      %v3398 = vsel %vm3327, %v3286, 0
      %v3401 = vsel %vm3327, %v3287, 0
      %v3404 = vsel %vm3327, %v3288, 0
      %v3407 = vsel %vm3327, %v3289, 0
      %v3410 = vsel %vm3327, %v3290, 0
      %v3413 = vsel %vm3327, %v3291, 0
      %v3416 = vsel %vm3327, %v3292, 0
      %v3419 = vsel %vm3327, %v3293, 0
      %v3422 = vsel %vm3327, %v3294, 0
      %v3425 = vsel %vm3327, %v3295, 0
      %v3428 = vsel %vm3327, %v3296, 0
      %v3431 = vsel %vm3327, %v3297, 0
      %v3434 = vsel %vm3327, %v3298, 0
      %v3437 = vsel %vm3327, %v3299, 0
      %v3440 = vsel %vm3327, %v3300, 0
      %v3443 = vsel %vm3327, %v3301, 0
      %v3446 = vsel %vm3327, %v3302, 0
      %v3449 = vsel %vm3327, %v3303, 0
      %v3452 = vsel %vm3327, %v3304, 0
      %v3455 = vsel %vm3327, %v3305, 0
      %v3458 = vsel %vm3327, %v3306, 0
      %v3461 = vsel %vm3327, %v3307, 0
      %v3464 = vsel %vm3327, %v3308, 0
      %v3467 = vsel %vm3327, %v3309, 0
      %v3470 = vsel %vm3327, %v3310, 0
      %v3473 = vsel %vm3327, %v3311, 0
      %v3476 = vsel %vm3327, %v3312, 0
      %v3479 = vsel %vm3327, %v3313, 0
      %v3482 = vsel %vm3327, %v3314, 0
      %v3485 = vsel %vm3327, %v3315, 0
      %v3488 = vsel %vm3327, %v3316, 0
      %v3491 = vsel %vm3327, %v3317, 0
      %v3494 = vsel %vm3327, %v3318, 0
      %v3497 = vsel %vm3327, %v3319, 0
      %v3500 = vsel %vm3327, %v3320, 0
      %v3503 = vsel %vm3327, %v3321, 0
      %v3506 = vsel %vm3327, %v3322, 0
      %v3509 = vsel %vm3327, %v3323, 0
      %v3512 = vsel %vm3327, %v3324, 0
      %v3515 = vsel %vm3327, %v3325, 0
      %v3518 = vsel %vm3327, %v3326, 0
      %3520 = vmatprep.subr.mxu0 0.0
      %3521 = vmatpush1.xpose.msra.mxu0 %v3425
      %3522 = vmatprep.subr.mxu0 0.0
      %3523 = vmatpush1.xpose.msra.mxu0 %v3428
      %3524 = vmatprep.subr.mxu0 0.0
      %3525 = vmatpush1.xpose.msra.mxu0 %v3431
      %3526 = vmatprep.subr.mxu0 0.0
      %3527 = vmatpush1.xpose.msra.mxu0 %v3434
      %3528 = vmatprep.subr.mxu0 0.0
      %3529 = vmatpush1.xpose.msra.mxu0 %v3437
      %3530 = vmatprep.subr.mxu0 0.0
      %3531 = vmatpush1.xpose.msra.mxu0 %v3440
      %3532 = vmatprep.subr.mxu0 0.0
      %3533 = vmatpush1.xpose.msra.mxu0 %v3443
      %3534 = vmatprep.subr.mxu0 0.0
      %3535 = vmatpush1.xpose.msra.mxu0 %v3446
      %3536 = vmatprep.subr.mxu0 0.0
      %3537 = vmatpush1.xpose.msra.mxu0 %v3449
      %3538 = vmatprep.subr.mxu0 0.0
      %3539 = vmatpush1.xpose.msra.mxu0 %v3452
      %3540 = vmatprep.subr.mxu0 0.0
      %3541 = vmatpush1.xpose.msra.mxu0 %v3455
      %3542 = vmatprep.subr.mxu0 0.0
      %3543 = vmatpush1.xpose.msra.mxu0 %v3458
      %3544 = vmatprep.subr.mxu0 0.0
      %3545 = vmatpush1.xpose.msra.mxu0 %v3461
      %3546 = vmatprep.subr.mxu0 0.0
      %3547 = vmatpush1.xpose.msra.mxu0 %v3464
      %3548 = vmatprep.subr.mxu0 0.0
      %3549 = vmatpush1.xpose.msra.mxu0 %v3467
      %3550 = vmatprep.subr.mxu0 0.0
      %3551 = vmatpush1.xpose.msra.mxu0 %v3470
      %3552 = vmatprep.subr.mxu0 0.0
      %3553 = vmatpush1.xpose.msra.mxu0 %v3473
      %3554 = vmatprep.subr.mxu0 0.0
      %3555 = vmatpush1.xpose.msra.mxu0 %v3476
      %3556 = vmatprep.subr.mxu0 0.0
      %3557 = vmatpush1.xpose.msra.mxu0 %v3479
      %3558 = vmatprep.subr.mxu0 0.0
      %3559 = vmatpush1.xpose.msra.mxu0 %v3482
      %3560 = vmatprep.subr.mxu0 0.0
      %3561 = vmatpush1.xpose.msra.mxu0 %v3485
      %3562 = vmatprep.subr.mxu0 0.0
      %3563 = vmatpush1.xpose.msra.mxu0 %v3488
      %3564 = vmatprep.subr.mxu0 0.0
      %3565 = vmatpush1.xpose.msra.mxu0 %v3491
      %3566 = vmatprep.subr.mxu0 0.0
      %3567 = vmatpush1.xpose.msra.mxu0 %v3494
      %3568 = vmatprep.subr.mxu0 0.0
      %3569 = vmatpush1.xpose.msra.mxu0 %v3497
      %3570 = vmatprep.subr.mxu0 0.0
      %3571 = vmatpush1.xpose.msra.mxu0 %v3500
      %3572 = vmatprep.subr.mxu0 0.0
      %3573 = vmatpush1.xpose.msra.mxu0 %v3503
      %3574 = vmatprep.subr.mxu0 0.0
      %3575 = vmatpush1.xpose.msra.mxu0 %v3506
      %3576 = vmatprep.subr.mxu0 0.0
      %3577 = vmatpush1.xpose.msra.mxu0 %v3509
      %3578 = vmatprep.subr.mxu0 0.0
      %3579 = vmatpush1.xpose.msra.mxu0 %v3512
      %3580 = vmatprep.subr.mxu0 0.0
      %3581 = vmatpush1.xpose.msra.mxu0 %v3515
      %3582 = vmatprep.subr.mxu0 0.0
      %3583 = vmatpush1.xpose.msra.mxu0 %v3518
      %3584 = vmatprep.mubr.f32.mxu0 0.0
      %3585 = vmatmul.mubr.f32.gmra.mrb[0].mxu0 %v3329
      %v3586 = vpop.f32.mrb[0].mxu0
      %v3587 = vadd.f32 0.0, %v3586
      %v3588 = vpop.f32.mrb[0].mxu0
      %v3589 = vadd.f32 0.0, %v3588
      %3590 = vmatprep.mubr.f32.mxu0 0.0
      %3591 = vmatmul.mubr.f32.gmra.mrb[0].mxu0 %v3332
      %v3592 = vpop.f32.mrb[0].mxu0
      %v3593 = vadd.f32 0.0, %v3592
      %v3594 = vpop.f32.mrb[0].mxu0
      %v3595 = vadd.f32 0.0, %v3594
      %3596 = vmatprep.mubr.f32.mxu0 0.0
      %3597 = vmatmul.mubr.f32.gmra.mrb[0].mxu0 %v3335
      %v3598 = vpop.f32.mrb[0].mxu0
      %v3599 = vadd.f32 0.0, %v3598
      %v3600 = vpop.f32.mrb[0].mxu0
      %v3601 = vadd.f32 0.0, %v3600
      %3602 = vmatprep.mubr.f32.mxu0 0.0
      %3603 = vmatmul.mubr.f32.gmra.mrb[0].mxu0 %v3338
      %v3604 = vpop.f32.mrb[0].mxu0
      %v3605 = vadd.f32 0.0, %v3604
      %v3606 = vpop.f32.mrb[0].mxu0
      %v3607 = vadd.f32 0.0, %v3606
      %3608 = vmatprep.mubr.f32.mxu0 0.0
      %3609 = vmatmul.mubr.f32.gmra.mrb[0].mxu0 %v3341
      %v3610 = vpop.f32.mrb[0].mxu0
      %v3611 = vadd.f32 0.0, %v3610
      %v3612 = vpop.f32.mrb[0].mxu0
      %v3613 = vadd.f32 0.0, %v3612
      %3614 = vmatprep.mubr.f32.mxu0 0.0
      %3615 = vmatmul.mubr.f32.gmra.mrb[0].mxu0 %v3344
      %v3616 = vpop.f32.mrb[0].mxu0
      %v3617 = vadd.f32 0.0, %v3616
      %v3618 = vpop.f32.mrb[0].mxu0
      %v3619 = vadd.f32 0.0, %v3618
      %3620 = vmatprep.mubr.f32.mxu0 0.0
      %3621 = vmatmul.mubr.f32.gmra.mrb[0].mxu0 %v3347
      %v3622 = vpop.f32.mrb[0].mxu0
      %v3623 = vadd.f32 0.0, %v3622
      %v3624 = vpop.f32.mrb[0].mxu0
      %v3625 = vadd.f32 0.0, %v3624
      %3626 = vmatprep.mubr.f32.mxu0 0.0
      %3627 = vmatmul.mubr.f32.gmra.mrb[0].mxu0 %v3350
      %v3628 = vpop.f32.mrb[0].mxu0
      %v3629 = vadd.f32 0.0, %v3628
      %v3630 = vpop.f32.mrb[0].mxu0
      %v3631 = vadd.f32 0.0, %v3630
      %3632 = vmatprep.mubr.f32.mxu0 0.0
      %3633 = vmatmul.mubr.f32.gmra.mrb[0].mxu0 %v3353
      %v3634 = vpop.f32.mrb[0].mxu0
      %v3635 = vadd.f32 0.0, %v3634
      %v3636 = vpop.f32.mrb[0].mxu0
      %v3637 = vadd.f32 0.0, %v3636
      %3638 = vmatprep.mubr.f32.mxu0 0.0
      %3639 = vmatmul.mubr.f32.gmra.mrb[0].mxu0 %v3356
      %v3640 = vpop.f32.mrb[0].mxu0
      %v3641 = vadd.f32 0.0, %v3640
      %v3642 = vpop.f32.mrb[0].mxu0
      %v3643 = vadd.f32 0.0, %v3642
      %3644 = vmatprep.mubr.f32.mxu0 0.0
      %3645 = vmatmul.mubr.f32.gmra.mrb[0].mxu0 %v3359
      %v3646 = vpop.f32.mrb[0].mxu0
      %v3647 = vadd.f32 0.0, %v3646
      %v3648 = vpop.f32.mrb[0].mxu0
      %v3649 = vadd.f32 0.0, %v3648
      %3650 = vmatprep.mubr.f32.mxu0 0.0
      %3651 = vmatmul.mubr.f32.gmra.mrb[0].mxu0 %v3362
      %v3652 = vpop.f32.mrb[0].mxu0
      %v3653 = vadd.f32 0.0, %v3652
      %v3654 = vpop.f32.mrb[0].mxu0
      %v3655 = vadd.f32 0.0, %v3654
      %3656 = vmatprep.mubr.f32.mxu0 0.0
      %3657 = vmatmul.mubr.f32.gmra.mrb[0].mxu0 %v3365
      %v3658 = vpop.f32.mrb[0].mxu0
      %v3659 = vadd.f32 0.0, %v3658
      %v3660 = vpop.f32.mrb[0].mxu0
      %v3661 = vadd.f32 0.0, %v3660
      %3662 = vmatprep.mubr.f32.mxu0 0.0
      %3663 = vmatmul.mubr.f32.gmra.mrb[0].mxu0 %v3368
      %v3664 = vpop.f32.mrb[0].mxu0
      %v3665 = vadd.f32 0.0, %v3664
      %v3666 = vpop.f32.mrb[0].mxu0
      %v3667 = vadd.f32 0.0, %v3666
      %3668 = vmatprep.mubr.f32.mxu0 0.0
      %3669 = vmatmul.mubr.f32.gmra.mrb[0].mxu0 %v3371
      %v3670 = vpop.f32.mrb[0].mxu0
      %v3671 = vadd.f32 0.0, %v3670
      %v3672 = vpop.f32.mrb[0].mxu0
      %v3673 = vadd.f32 0.0, %v3672
      %3674 = vmatprep.mubr.f32.mxu0 0.0
      %3675 = vmatmul.mubr.f32.gmra.mrb[0].mxu0 %v3374
      %v3676 = vpop.f32.mrb[0].mxu0
      %v3677 = vadd.f32 0.0, %v3676
      %v3678 = vpop.f32.mrb[0].mxu0
      %v3679 = vadd.f32 0.0, %v3678
      %3680 = vmatprep.mubr.f32.mxu0 0.0
      %3681 = vmatmul.mubr.f32.gmra.mrb[0].mxu0 %v3377
      %v3682 = vpop.f32.mrb[0].mxu0
      %v3683 = vadd.f32 0.0, %v3682
      %v3684 = vpop.f32.mrb[0].mxu0
      %v3685 = vadd.f32 0.0, %v3684
      %3686 = vmatprep.mubr.f32.mxu0 0.0
      %3687 = vmatmul.mubr.f32.gmra.mrb[0].mxu0 %v3380
      %v3688 = vpop.f32.mrb[0].mxu0
      %v3689 = vadd.f32 0.0, %v3688
      %v3690 = vpop.f32.mrb[0].mxu0
      %v3691 = vadd.f32 0.0, %v3690
      %3692 = vmatprep.mubr.f32.mxu0 0.0
      %3693 = vmatmul.mubr.f32.gmra.mrb[0].mxu0 %v3383
      %v3694 = vpop.f32.mrb[0].mxu0
      %v3695 = vadd.f32 0.0, %v3694
      %v3696 = vpop.f32.mrb[0].mxu0
      %v3697 = vadd.f32 0.0, %v3696
      %3698 = vmatprep.mubr.f32.mxu0 0.0
      %3699 = vmatmul.mubr.f32.gmra.mrb[0].mxu0 %v3386
      %v3700 = vpop.f32.mrb[0].mxu0
      %v3701 = vadd.f32 0.0, %v3700
      %v3702 = vpop.f32.mrb[0].mxu0
      %v3703 = vadd.f32 0.0, %v3702
      %3704 = vmatprep.mubr.f32.mxu0 0.0
      %3705 = vmatmul.mubr.f32.gmra.mrb[0].mxu0 %v3389
      %v3706 = vpop.f32.mrb[0].mxu0
      %v3707 = vadd.f32 0.0, %v3706
      %v3708 = vpop.f32.mrb[0].mxu0
      %v3709 = vadd.f32 0.0, %v3708
      %3710 = vmatprep.mubr.f32.mxu0 0.0
      %3711 = vmatmul.mubr.f32.gmra.mrb[0].mxu0 %v3392
      %v3712 = vpop.f32.mrb[0].mxu0
      %v3713 = vadd.f32 0.0, %v3712
      %v3714 = vpop.f32.mrb[0].mxu0
      %v3715 = vadd.f32 0.0, %v3714
      %3716 = vmatprep.mubr.f32.mxu0 0.0
      %3717 = vmatmul.mubr.f32.gmra.mrb[0].mxu0 %v3395
      %v3718 = vpop.f32.mrb[0].mxu0
      %v3719 = vadd.f32 0.0, %v3718
      %v3720 = vpop.f32.mrb[0].mxu0
      %v3721 = vadd.f32 0.0, %v3720
      %3722 = vmatprep.mubr.f32.mxu0 0.0
      %3723 = vmatmul.mubr.f32.gmra.mrb[0].mxu0 %v3398
      %v3724 = vpop.f32.mrb[0].mxu0
      %v3725 = vadd.f32 0.0, %v3724
      %v3726 = vpop.f32.mrb[0].mxu0
      %v3727 = vadd.f32 0.0, %v3726
      %3728 = vmatprep.mubr.f32.mxu0 0.0
      %3729 = vmatmul.mubr.f32.gmra.mrb[0].mxu0 %v3401
      %v3730 = vpop.f32.mrb[0].mxu0
      %v3731 = vadd.f32 0.0, %v3730
      %v3732 = vpop.f32.mrb[0].mxu0
      %v3733 = vadd.f32 0.0, %v3732
      %3734 = vmatprep.mubr.f32.mxu0 0.0
      %3735 = vmatmul.mubr.f32.gmra.mrb[0].mxu0 %v3404
      %v3736 = vpop.f32.mrb[0].mxu0
      %v3737 = vadd.f32 0.0, %v3736
      %v3738 = vpop.f32.mrb[0].mxu0
      %v3739 = vadd.f32 0.0, %v3738
      %3740 = vmatprep.mubr.f32.mxu0 0.0
      %3741 = vmatmul.mubr.f32.gmra.mrb[0].mxu0 %v3407
      %v3742 = vpop.f32.mrb[0].mxu0
      %v3743 = vadd.f32 0.0, %v3742
      %v3744 = vpop.f32.mrb[0].mxu0
      %v3745 = vadd.f32 0.0, %v3744
      %3746 = vmatprep.mubr.f32.mxu0 0.0
      %3747 = vmatmul.mubr.f32.gmra.mrb[0].mxu0 %v3410
      %v3748 = vpop.f32.mrb[0].mxu0
      %v3749 = vadd.f32 0.0, %v3748
      %v3750 = vpop.f32.mrb[0].mxu0
      %v3751 = vadd.f32 0.0, %v3750
      %3752 = vmatprep.mubr.f32.mxu0 0.0
      %3753 = vmatmul.mubr.f32.gmra.mrb[0].mxu0 %v3413
      %v3754 = vpop.f32.mrb[0].mxu0
      %v3755 = vadd.f32 0.0, %v3754
      %v3756 = vpop.f32.mrb[0].mxu0
      %v3757 = vadd.f32 0.0, %v3756
      %3758 = vmatprep.mubr.f32.mxu0 0.0
      %3759 = vmatmul.mubr.f32.gmra.mrb[0].mxu0 %v3416
      %v3760 = vpop.f32.mrb[0].mxu0
      %v3761 = vadd.f32 0.0, %v3760
      %v3762 = vpop.f32.mrb[0].mxu0
      %v3763 = vadd.f32 0.0, %v3762
      %3764 = vmatprep.mubr.f32.mxu0 0.0
      %3765 = vmatmul.mubr.f32.gmra.mrb[0].mxu0 %v3419
      %v3766 = vpop.f32.mrb[0].mxu0
      %v3767 = vadd.f32 0.0, %v3766
      %v3768 = vpop.f32.mrb[0].mxu0
      %v3769 = vadd.f32 0.0, %v3768
      %3770 = vmatprep.mubr.f32.mxu0 0.0
      %3771 = vmatmul.mubr.f32.gmra.mrb[0].mxu0 %v3422
      %v3772 = vpop.f32.mrb[0].mxu0
      %v3773 = vadd.f32 0.0, %v3772
      %v3774 = vpop.f32.mrb[0].mxu0
      %v3775 = vadd.f32 0.0, %v3774
      %3776 = vdwg.mxu0
      %v3777 = vmax.f32 %v3587, %v3589
      %3778 = vmax.xlane.f32.xlu0 %v3777
      %v3779 = vpop.xlane.xlu0 %3778
      %v3780 = vmax.f32 %v3593, %v3595
      %3781 = vmax.xlane.f32.xlu0 %v3780
      %v3782 = vpop.xlane.xlu0 %3781
      %v3783 = vmax.f32 %v3599, %v3601
      %3784 = vmax.xlane.f32.xlu0 %v3783
      %v3785 = vpop.xlane.xlu0 %3784
      %v3786 = vmax.f32 %v3605, %v3607
      %3787 = vmax.xlane.f32.xlu0 %v3786
      %v3788 = vpop.xlane.xlu0 %3787
      %v3789 = vmax.f32 %v3611, %v3613
      %3790 = vmax.xlane.f32.xlu0 %v3789
      %v3791 = vpop.xlane.xlu0 %3790
      %v3792 = vmax.f32 %v3617, %v3619
      %3793 = vmax.xlane.f32.xlu0 %v3792
      %v3794 = vpop.xlane.xlu0 %3793
      %v3795 = vmax.f32 %v3623, %v3625
      %3796 = vmax.xlane.f32.xlu0 %v3795
      %v3797 = vpop.xlane.xlu0 %3796
      %v3798 = vmax.f32 %v3629, %v3631
      %3799 = vmax.xlane.f32.xlu0 %v3798
      %v3800 = vpop.xlane.xlu0 %3799
      %v3801 = vmax.f32 %v3635, %v3637
      %3802 = vmax.xlane.f32.xlu0 %v3801
      %v3803 = vpop.xlane.xlu0 %3802
      %v3804 = vmax.f32 %v3641, %v3643
      %3805 = vmax.xlane.f32.xlu0 %v3804
      %v3806 = vpop.xlane.xlu0 %3805
      %v3807 = vmax.f32 %v3647, %v3649
      %3808 = vmax.xlane.f32.xlu0 %v3807
      %v3809 = vpop.xlane.xlu0 %3808
      %v3810 = vmax.f32 %v3653, %v3655
      %3811 = vmax.xlane.f32.xlu0 %v3810
      %v3812 = vpop.xlane.xlu0 %3811
      %v3813 = vmax.f32 %v3659, %v3661
      %3814 = vmax.xlane.f32.xlu0 %v3813
      %v3815 = vpop.xlane.xlu0 %3814
      %v3816 = vmax.f32 %v3665, %v3667
      %3817 = vmax.xlane.f32.xlu0 %v3816
      %v3818 = vpop.xlane.xlu0 %3817
      %v3819 = vmax.f32 %v3671, %v3673
      %3820 = vmax.xlane.f32.xlu0 %v3819
      %v3821 = vpop.xlane.xlu0 %3820
      %v3822 = vmax.f32 %v3677, %v3679
      %3823 = vmax.xlane.f32.xlu0 %v3822
      %v3824 = vpop.xlane.xlu0 %3823
      %v3825 = vmax.f32 %v3683, %v3685
      %3826 = vmax.xlane.f32.xlu0 %v3825
      %v3827 = vpop.xlane.xlu0 %3826
      %v3828 = vmax.f32 %v3689, %v3691
      %3829 = vmax.xlane.f32.xlu0 %v3828
      %v3830 = vpop.xlane.xlu0 %3829
      %v3831 = vmax.f32 %v3695, %v3697
      %3832 = vmax.xlane.f32.xlu0 %v3831
      %v3833 = vpop.xlane.xlu0 %3832
      %v3834 = vmax.f32 %v3701, %v3703
      %3835 = vmax.xlane.f32.xlu0 %v3834
      %v3836 = vpop.xlane.xlu0 %3835
      %v3837 = vmax.f32 %v3707, %v3709
      %3838 = vmax.xlane.f32.xlu0 %v3837
      %v3839 = vpop.xlane.xlu0 %3838
      %v3840 = vmax.f32 %v3713, %v3715
      %3841 = vmax.xlane.f32.xlu0 %v3840
      %v3842 = vpop.xlane.xlu0 %3841
      %v3843 = vmax.f32 %v3719, %v3721
      %3844 = vmax.xlane.f32.xlu0 %v3843
      %v3845 = vpop.xlane.xlu0 %3844
      %v3846 = vmax.f32 %v3725, %v3727
      %3847 = vmax.xlane.f32.xlu0 %v3846
      %v3848 = vpop.xlane.xlu0 %3847
      %v3849 = vmax.f32 %v3731, %v3733
      %3850 = vmax.xlane.f32.xlu0 %v3849
      %v3851 = vpop.xlane.xlu0 %3850
      %v3852 = vmax.f32 %v3737, %v3739
      %3853 = vmax.xlane.f32.xlu0 %v3852
      %v3854 = vpop.xlane.xlu0 %3853
      %v3855 = vmax.f32 %v3743, %v3745
      %3856 = vmax.xlane.f32.xlu0 %v3855
      %v3857 = vpop.xlane.xlu0 %3856
      %v3858 = vmax.f32 %v3749, %v3751
      %3859 = vmax.xlane.f32.xlu0 %v3858
      %v3860 = vpop.xlane.xlu0 %3859
      %v3861 = vmax.f32 %v3755, %v3757
      %3862 = vmax.xlane.f32.xlu0 %v3861
      %v3863 = vpop.xlane.xlu0 %3862
      %v3864 = vmax.f32 %v3761, %v3763
      %3865 = vmax.xlane.f32.xlu0 %v3864
      %v3866 = vpop.xlane.xlu0 %3865
      %v3867 = vmax.f32 %v3767, %v3769
      %3868 = vmax.xlane.f32.xlu0 %v3867
      %v3869 = vpop.xlane.xlu0 %3868
      %v3870 = vmax.f32 %v3773, %v3775
      %3871 = vmax.xlane.f32.xlu0 %v3870
      %v3872 = vpop.xlane.xlu0 %3871
      %v3873 = vsub.f32 %v3587, %v3779
      %v3874 = vsub.f32 %v3589, %v3779
      %v3875 = vsub.f32 %v3593, %v3782
      %v3876 = vsub.f32 %v3595, %v3782
      %v3877 = vsub.f32 %v3599, %v3785
      %v3878 = vsub.f32 %v3601, %v3785
      %v3879 = vsub.f32 %v3605, %v3788
      %v3880 = vsub.f32 %v3607, %v3788
      %v3881 = vsub.f32 %v3611, %v3791
      %v3882 = vsub.f32 %v3613, %v3791
      %v3883 = vsub.f32 %v3617, %v3794
      %v3884 = vsub.f32 %v3619, %v3794
      %v3885 = vsub.f32 %v3623, %v3797
      %v3886 = vsub.f32 %v3625, %v3797
      %v3887 = vsub.f32 %v3629, %v3800
      %v3888 = vsub.f32 %v3631, %v3800
      %v3889 = vsub.f32 %v3635, %v3803
      %v3890 = vsub.f32 %v3637, %v3803
      %v3891 = vsub.f32 %v3641, %v3806
      %v3892 = vsub.f32 %v3643, %v3806
      %v3893 = vsub.f32 %v3647, %v3809
      %v3894 = vsub.f32 %v3649, %v3809
      %v3895 = vsub.f32 %v3653, %v3812
      %v3896 = vsub.f32 %v3655, %v3812
      %v3897 = vsub.f32 %v3659, %v3815
      %v3898 = vsub.f32 %v3661, %v3815
      %v3899 = vsub.f32 %v3665, %v3818
      %v3900 = vsub.f32 %v3667, %v3818
      %v3901 = vsub.f32 %v3671, %v3821
      %v3902 = vsub.f32 %v3673, %v3821
      %v3903 = vsub.f32 %v3677, %v3824
      %v3904 = vsub.f32 %v3679, %v3824
      %v3905 = vsub.f32 %v3683, %v3827
      %v3906 = vsub.f32 %v3685, %v3827
      %v3907 = vsub.f32 %v3689, %v3830
      %v3908 = vsub.f32 %v3691, %v3830
      %v3909 = vsub.f32 %v3695, %v3833
      %v3910 = vsub.f32 %v3697, %v3833
      %v3911 = vsub.f32 %v3701, %v3836
      %v3912 = vsub.f32 %v3703, %v3836
      %v3913 = vsub.f32 %v3707, %v3839
      %v3914 = vsub.f32 %v3709, %v3839
      %v3915 = vsub.f32 %v3713, %v3842
      %v3916 = vsub.f32 %v3715, %v3842
      %v3917 = vsub.f32 %v3719, %v3845
      %v3918 = vsub.f32 %v3721, %v3845
      %v3919 = vsub.f32 %v3725, %v3848
      %v3920 = vsub.f32 %v3727, %v3848
      %v3921 = vsub.f32 %v3731, %v3851
      %v3922 = vsub.f32 %v3733, %v3851
      %v3923 = vsub.f32 %v3737, %v3854
      %v3924 = vsub.f32 %v3739, %v3854
      %v3925 = vsub.f32 %v3743, %v3857
      %v3926 = vsub.f32 %v3745, %v3857
      %v3927 = vsub.f32 %v3749, %v3860
      %v3928 = vsub.f32 %v3751, %v3860
      %v3929 = vsub.f32 %v3755, %v3863
      %v3930 = vsub.f32 %v3757, %v3863
      %v3931 = vsub.f32 %v3761, %v3866
      %v3932 = vsub.f32 %v3763, %v3866
      %v3933 = vsub.f32 %v3767, %v3869
      %v3934 = vsub.f32 %v3769, %v3869
      %v3935 = vsub.f32 %v3773, %v3872
      %v3936 = vsub.f32 %v3775, %v3872
      %v3937 = vmul.f32 %v3873, 1.442695
      %v3938 = vpow.pop %v3937
      %v3939 = vmul.f32 %v3874, 1.442695
      %v3940 = vpow.pop %v3939
      %v3941 = vmul.f32 %v3875, 1.442695
      %v3942 = vpow.pop %v3941
      %v3943 = vmul.f32 %v3876, 1.442695
      %v3944 = vpow.pop %v3943
      %v3945 = vmul.f32 %v3877, 1.442695
      %v3946 = vpow.pop %v3945
      %v3947 = vmul.f32 %v3878, 1.442695
      %v3948 = vpow.pop %v3947
      %v3949 = vmul.f32 %v3879, 1.442695
      %v3950 = vpow.pop %v3949
      %v3951 = vmul.f32 %v3880, 1.442695
      %v3952 = vpow.pop %v3951
      %v3953 = vmul.f32 %v3881, 1.442695
      %v3954 = vpow.pop %v3953
      %v3955 = vmul.f32 %v3882, 1.442695
      %v3956 = vpow.pop %v3955
      %v3957 = vmul.f32 %v3883, 1.442695
      %v3958 = vpow.pop %v3957
      %v3959 = vmul.f32 %v3884, 1.442695
      %v3960 = vpow.pop %v3959
      %v3961 = vmul.f32 %v3885, 1.442695
      %v3962 = vpow.pop %v3961
      %v3963 = vmul.f32 %v3886, 1.442695
      %v3964 = vpow.pop %v3963
      %v3965 = vmul.f32 %v3887, 1.442695
      %v3966 = vpow.pop %v3965
      %v3967 = vmul.f32 %v3888, 1.442695
      %v3968 = vpow.pop %v3967
      %v3969 = vmul.f32 %v3889, 1.442695
      %v3970 = vpow.pop %v3969
      %v3971 = vmul.f32 %v3890, 1.442695
      %v3972 = vpow.pop %v3971
      %v3973 = vmul.f32 %v3891, 1.442695
      %v3974 = vpow.pop %v3973
      %v3975 = vmul.f32 %v3892, 1.442695
      %v3976 = vpow.pop %v3975
      %v3977 = vmul.f32 %v3893, 1.442695
      %v3978 = vpow.pop %v3977
      %v3979 = vmul.f32 %v3894, 1.442695
      %v3980 = vpow.pop %v3979
      %v3981 = vmul.f32 %v3895, 1.442695
      %v3982 = vpow.pop %v3981
      %v3983 = vmul.f32 %v3896, 1.442695
      %v3984 = vpow.pop %v3983
      %v3985 = vmul.f32 %v3897, 1.442695
      %v3986 = vpow.pop %v3985
      %v3987 = vmul.f32 %v3898, 1.442695
      %v3988 = vpow.pop %v3987
      %v3989 = vmul.f32 %v3899, 1.442695
      %v3990 = vpow.pop %v3989
      %v3991 = vmul.f32 %v3900, 1.442695
      %v3992 = vpow.pop %v3991
      %v3993 = vmul.f32 %v3901, 1.442695
      %v3994 = vpow.pop %v3993
      %v3995 = vmul.f32 %v3902, 1.442695
      %v3996 = vpow.pop %v3995
      %v3997 = vmul.f32 %v3903, 1.442695
      %v3998 = vpow.pop %v3997
      %v3999 = vmul.f32 %v3904, 1.442695
      %v4000 = vpow.pop %v3999
      %v4001 = vmul.f32 %v3905, 1.442695
      %v4002 = vpow.pop %v4001
      %v4003 = vmul.f32 %v3906, 1.442695
      %v4004 = vpow.pop %v4003
      %v4005 = vmul.f32 %v3907, 1.442695
      %v4006 = vpow.pop %v4005
      %v4007 = vmul.f32 %v3908, 1.442695
      %v4008 = vpow.pop %v4007
      %v4009 = vmul.f32 %v3909, 1.442695
      %v4010 = vpow.pop %v4009
      %v4011 = vmul.f32 %v3910, 1.442695
      %v4012 = vpow.pop %v4011
      %v4013 = vmul.f32 %v3911, 1.442695
      %v4014 = vpow.pop %v4013
      %v4015 = vmul.f32 %v3912, 1.442695
      %v4016 = vpow.pop %v4015
      %v4017 = vmul.f32 %v3913, 1.442695
      %v4018 = vpow.pop %v4017
      %v4019 = vmul.f32 %v3914, 1.442695
      %v4020 = vpow.pop %v4019
      %v4021 = vmul.f32 %v3915, 1.442695
      %v4022 = vpow.pop %v4021
      %v4023 = vmul.f32 %v3916, 1.442695
      %v4024 = vpow.pop %v4023
      %v4025 = vmul.f32 %v3917, 1.442695
      %v4026 = vpow.pop %v4025
      %v4027 = vmul.f32 %v3918, 1.442695
      %v4028 = vpow.pop %v4027
      %v4029 = vmul.f32 %v3919, 1.442695
      %v4030 = vpow.pop %v4029
      %v4031 = vmul.f32 %v3920, 1.442695
      %v4032 = vpow.pop %v4031
      %v4033 = vmul.f32 %v3921, 1.442695
      %v4034 = vpow.pop %v4033
      %v4035 = vmul.f32 %v3922, 1.442695
      %v4036 = vpow.pop %v4035
      %v4037 = vmul.f32 %v3923, 1.442695
      %v4038 = vpow.pop %v4037
      %v4039 = vmul.f32 %v3924, 1.442695
      %v4040 = vpow.pop %v4039
      %v4041 = vmul.f32 %v3925, 1.442695
      %v4042 = vpow.pop %v4041
      %v4043 = vmul.f32 %v3926, 1.442695
      %v4044 = vpow.pop %v4043
      %v4045 = vmul.f32 %v3927, 1.442695
      %v4046 = vpow.pop %v4045
      %v4047 = vmul.f32 %v3928, 1.442695
      %v4048 = vpow.pop %v4047
      %v4049 = vmul.f32 %v3929, 1.442695
      %v4050 = vpow.pop %v4049
      %v4051 = vmul.f32 %v3930, 1.442695
      %v4052 = vpow.pop %v4051
      %v4053 = vmul.f32 %v3931, 1.442695
      %v4054 = vpow.pop %v4053
      %v4055 = vmul.f32 %v3932, 1.442695
      %v4056 = vpow.pop %v4055
      %v4057 = vmul.f32 %v3933, 1.442695
      %v4058 = vpow.pop %v4057
      %v4059 = vmul.f32 %v3934, 1.442695
      %v4060 = vpow.pop %v4059
      %v4061 = vmul.f32 %v3935, 1.442695
      %v4062 = vpow.pop %v4061
      %v4063 = vmul.f32 %v3936, 1.442695
      %v4064 = vpow.pop %v4063
      %v4065 = vadd.f32 %v3938, %v3940
      %4066 = vadd.xlane.f32.xlu0 %v4065
      %v4067 = vpop.xlane.xlu0 %4066
      %v4068 = vadd.f32 %v3942, %v3944
      %4069 = vadd.xlane.f32.xlu0 %v4068
      %v4070 = vpop.xlane.xlu0 %4069
      %v4071 = vadd.f32 %v3946, %v3948
      %4072 = vadd.xlane.f32.xlu0 %v4071
      %v4073 = vpop.xlane.xlu0 %4072
      %v4074 = vadd.f32 %v3950, %v3952
      %4075 = vadd.xlane.f32.xlu0 %v4074
      %v4076 = vpop.xlane.xlu0 %4075
      %v4077 = vadd.f32 %v3954, %v3956
      %4078 = vadd.xlane.f32.xlu0 %v4077
      %v4079 = vpop.xlane.xlu0 %4078
      %v4080 = vadd.f32 %v3958, %v3960
      %4081 = vadd.xlane.f32.xlu0 %v4080
      %v4082 = vpop.xlane.xlu0 %4081
      %v4083 = vadd.f32 %v3962, %v3964
      %4084 = vadd.xlane.f32.xlu0 %v4083
      %v4085 = vpop.xlane.xlu0 %4084
      %v4086 = vadd.f32 %v3966, %v3968
      %4087 = vadd.xlane.f32.xlu0 %v4086
      %v4088 = vpop.xlane.xlu0 %4087
      %v4089 = vadd.f32 %v3970, %v3972
      %4090 = vadd.xlane.f32.xlu0 %v4089
      %v4091 = vpop.xlane.xlu0 %4090
      %v4092 = vadd.f32 %v3974, %v3976
      %4093 = vadd.xlane.f32.xlu0 %v4092
      %v4094 = vpop.xlane.xlu0 %4093
      %v4095 = vadd.f32 %v3978, %v3980
      %4096 = vadd.xlane.f32.xlu0 %v4095
      %v4097 = vpop.xlane.xlu0 %4096
      %v4098 = vadd.f32 %v3982, %v3984
      %4099 = vadd.xlane.f32.xlu0 %v4098
      %v4100 = vpop.xlane.xlu0 %4099
      %v4101 = vadd.f32 %v3986, %v3988
      %4102 = vadd.xlane.f32.xlu0 %v4101
      %v4103 = vpop.xlane.xlu0 %4102
      %v4104 = vadd.f32 %v3990, %v3992
      %4105 = vadd.xlane.f32.xlu0 %v4104
      %v4106 = vpop.xlane.xlu0 %4105
      %v4107 = vadd.f32 %v3994, %v3996
      %4108 = vadd.xlane.f32.xlu0 %v4107
      %v4109 = vpop.xlane.xlu0 %4108
      %v4110 = vadd.f32 %v3998, %v4000
      %4111 = vadd.xlane.f32.xlu0 %v4110
      %v4112 = vpop.xlane.xlu0 %4111
      %v4113 = vadd.f32 %v4002, %v4004
      %4114 = vadd.xlane.f32.xlu0 %v4113
      %v4115 = vpop.xlane.xlu0 %4114
      %v4116 = vadd.f32 %v4006, %v4008
      %4117 = vadd.xlane.f32.xlu0 %v4116
      %v4118 = vpop.xlane.xlu0 %4117
      %v4119 = vadd.f32 %v4010, %v4012
      %4120 = vadd.xlane.f32.xlu0 %v4119
      %v4121 = vpop.xlane.xlu0 %4120
      %v4122 = vadd.f32 %v4014, %v4016
      %4123 = vadd.xlane.f32.xlu0 %v4122
      %v4124 = vpop.xlane.xlu0 %4123
      %v4125 = vadd.f32 %v4018, %v4020
      %4126 = vadd.xlane.f32.xlu0 %v4125
      %v4127 = vpop.xlane.xlu0 %4126
      %v4128 = vadd.f32 %v4022, %v4024
      %4129 = vadd.xlane.f32.xlu0 %v4128
      %v4130 = vpop.xlane.xlu0 %4129
      %v4131 = vadd.f32 %v4026, %v4028
      %4132 = vadd.xlane.f32.xlu0 %v4131
      %v4133 = vpop.xlane.xlu0 %4132
      %v4134 = vadd.f32 %v4030, %v4032
      %4135 = vadd.xlane.f32.xlu0 %v4134
      %v4136 = vpop.xlane.xlu0 %4135
      %v4137 = vadd.f32 %v4034, %v4036
      %4138 = vadd.xlane.f32.xlu0 %v4137
      %v4139 = vpop.xlane.xlu0 %4138
      %v4140 = vadd.f32 %v4038, %v4040
      %4141 = vadd.xlane.f32.xlu0 %v4140
      %v4142 = vpop.xlane.xlu0 %4141
      %v4143 = vadd.f32 %v4042, %v4044
      %4144 = vadd.xlane.f32.xlu0 %v4143
      %v4145 = vpop.xlane.xlu0 %4144
      %v4146 = vadd.f32 %v4046, %v4048
      %4147 = vadd.xlane.f32.xlu0 %v4146
      %v4148 = vpop.xlane.xlu0 %4147
      %v4149 = vadd.f32 %v4050, %v4052
      %4150 = vadd.xlane.f32.xlu0 %v4149
      %v4151 = vpop.xlane.xlu0 %4150
      %v4152 = vadd.f32 %v4054, %v4056
      %4153 = vadd.xlane.f32.xlu0 %v4152
      %v4154 = vpop.xlane.xlu0 %4153
      %v4155 = vadd.f32 %v4058, %v4060
      %4156 = vadd.xlane.f32.xlu0 %v4155
      %v4157 = vpop.xlane.xlu0 %4156
      %v4158 = vadd.f32 %v4062, %v4064
      %4159 = vadd.xlane.f32.xlu0 %v4158
      %v4160 = vpop.xlane.xlu0 %4159
      %v4161 = vld [vmem:[#allocation3] sm:$0xff]
      %v4162 = vld [vmem:[#allocation3 + $0x8] sm:$0xff]
      %v4163 = vld [vmem:[#allocation3 + $0x10] sm:$0xff]
      %v4164 = vld [vmem:[#allocation3 + $0x18] sm:$0xff]
      %v4165 = vld [vmem:[#allocation3 + $0x20] sm:$0xff]
      %v4166 = vld [vmem:[#allocation3 + $0x28] sm:$0xff]
      %v4167 = vld [vmem:[#allocation3 + $0x30] sm:$0xff]
      %v4168 = vld [vmem:[#allocation3 + $0x38] sm:$0xff]
      %v4169 = vld [vmem:[#allocation3 + $0x40] sm:$0xff]
      %v4170 = vld [vmem:[#allocation3 + $0x48] sm:$0xff]
      %v4171 = vld [vmem:[#allocation3 + $0x50] sm:$0xff]
      %v4172 = vld [vmem:[#allocation3 + $0x58] sm:$0xff]
      %v4173 = vld [vmem:[#allocation3 + $0x60] sm:$0xff]
      %v4174 = vld [vmem:[#allocation3 + $0x68] sm:$0xff]
      %v4175 = vld [vmem:[#allocation3 + $0x70] sm:$0xff]
      %v4176 = vld [vmem:[#allocation3 + $0x78] sm:$0xff]
      %v4177 = vld [vmem:[#allocation3 + $0x80] sm:$0xff]
      %v4178 = vld [vmem:[#allocation3 + $0x88] sm:$0xff]
      %v4179 = vld [vmem:[#allocation3 + $0x90] sm:$0xff]
      %v4180 = vld [vmem:[#allocation3 + $0x98] sm:$0xff]
      %v4181 = vld [vmem:[#allocation3 + $0xa0] sm:$0xff]
      %v4182 = vld [vmem:[#allocation3 + $0xa8] sm:$0xff]
      %v4183 = vld [vmem:[#allocation3 + $0xb0] sm:$0xff]
      %v4184 = vld [vmem:[#allocation3 + $0xb8] sm:$0xff]
      %v4185 = vld [vmem:[#allocation3 + $0xc0] sm:$0xff]
      %v4186 = vld [vmem:[#allocation3 + $0xc8] sm:$0xff]
      %v4187 = vld [vmem:[#allocation3 + $0xd0] sm:$0xff]
      %v4188 = vld [vmem:[#allocation3 + $0xd8] sm:$0xff]
      %v4189 = vld [vmem:[#allocation3 + $0xe0] sm:$0xff]
      %v4190 = vld [vmem:[#allocation3 + $0xe8] sm:$0xff]
      %v4191 = vld [vmem:[#allocation3 + $0xf0] sm:$0xff]
      %v4192 = vld [vmem:[#allocation3 + $0xf8] sm:$0xff]
      %4193 = vmatprep.subr.mxu0 0.0
      %4194 = vmatpush1.msra.mxu0 %v4161
      %4195 = vmatprep.subr.mxu0 0.0
      %4196 = vmatpush1.msra.mxu0 %v4162
      %4197 = vmatprep.subr.mxu0 0.0
      %4198 = vmatpush1.msra.mxu0 %v4163
      %4199 = vmatprep.subr.mxu0 0.0
      %4200 = vmatpush1.msra.mxu0 %v4164
      %4201 = vmatprep.subr.mxu0 0.0
      %4202 = vmatpush1.msra.mxu0 %v4165
      %4203 = vmatprep.subr.mxu0 0.0
      %4204 = vmatpush1.msra.mxu0 %v4166
      %4205 = vmatprep.subr.mxu0 0.0
      %4206 = vmatpush1.msra.mxu0 %v4167
      %4207 = vmatprep.subr.mxu0 0.0
      %4208 = vmatpush1.msra.mxu0 %v4168
      %4209 = vmatprep.subr.mxu0 0.0
      %4210 = vmatpush1.msra.mxu0 %v4169
      %4211 = vmatprep.subr.mxu0 0.0
      %4212 = vmatpush1.msra.mxu0 %v4170
      %4213 = vmatprep.subr.mxu0 0.0
      %4214 = vmatpush1.msra.mxu0 %v4171
      %4215 = vmatprep.subr.mxu0 0.0
      %4216 = vmatpush1.msra.mxu0 %v4172
      %4217 = vmatprep.subr.mxu0 0.0
      %4218 = vmatpush1.msra.mxu0 %v4173
      %4219 = vmatprep.subr.mxu0 0.0
      %4220 = vmatpush1.msra.mxu0 %v4174
      %4221 = vmatprep.subr.mxu0 0.0
      %4222 = vmatpush1.msra.mxu0 %v4175
      %4223 = vmatprep.subr.mxu0 0.0
      %4224 = vmatpush1.msra.mxu0 %v4176
      %4225 = vmatprep.subr.mxu0 0.0
      %4226 = vmatpush1.msra.mxu0 %v4177
      %4227 = vmatprep.subr.mxu0 0.0
      %4228 = vmatpush1.msra.mxu0 %v4178
      %4229 = vmatprep.subr.mxu0 0.0
      %4230 = vmatpush1.msra.mxu0 %v4179
      %4231 = vmatprep.subr.mxu0 0.0
      %4232 = vmatpush1.msra.mxu0 %v4180
      %4233 = vmatprep.subr.mxu0 0.0
      %4234 = vmatpush1.msra.mxu0 %v4181
      %4235 = vmatprep.subr.mxu0 0.0
      %4236 = vmatpush1.msra.mxu0 %v4182
      %4237 = vmatprep.subr.mxu0 0.0
      %4238 = vmatpush1.msra.mxu0 %v4183
      %4239 = vmatprep.subr.mxu0 0.0
      %4240 = vmatpush1.msra.mxu0 %v4184
      %4241 = vmatprep.subr.mxu0 0.0
      %4242 = vmatpush1.msra.mxu0 %v4185
      %4243 = vmatprep.subr.mxu0 0.0
      %4244 = vmatpush1.msra.mxu0 %v4186
      %4245 = vmatprep.subr.mxu0 0.0
      %4246 = vmatpush1.msra.mxu0 %v4187
      %4247 = vmatprep.subr.mxu0 0.0
      %4248 = vmatpush1.msra.mxu0 %v4188
      %4249 = vmatprep.subr.mxu0 0.0
      %4250 = vmatpush1.msra.mxu0 %v4189
      %4251 = vmatprep.subr.mxu0 0.0
      %4252 = vmatpush1.msra.mxu0 %v4190
      %4253 = vmatprep.subr.mxu0 0.0
      %4254 = vmatpush1.msra.mxu0 %v4191
      %4255 = vmatprep.subr.mxu0 0.0
      %4256 = vmatpush1.msra.mxu0 %v4192
      %4257 = vmatprep.mubr.f32.mxu0 %v3940
      %4258 = vmatmul.mubr.f32.gmra.mrb[0].mxu0 %v3938
      %v4259 = vpop.f32.mrb[0].mxu0
      %v4260 = vadd.f32 0.0, %v4259
      %v4261 = vpop.f32.mrb[0].mxu0
      %4262 = vmatprep.mubr.f32.mxu0 %v3944
      %4263 = vmatmul.mubr.f32.gmra.mrb[0].mxu0 %v3942
      %v4264 = vpop.f32.mrb[0].mxu0
      %v4265 = vadd.f32 0.0, %v4264
      %v4266 = vpop.f32.mrb[0].mxu0
      %4267 = vmatprep.mubr.f32.mxu0 %v3948
      %4268 = vmatmul.mubr.f32.gmra.mrb[0].mxu0 %v3946
      %v4269 = vpop.f32.mrb[0].mxu0
      %v4270 = vadd.f32 0.0, %v4269
      %v4271 = vpop.f32.mrb[0].mxu0
      %4272 = vmatprep.mubr.f32.mxu0 %v3952
      %4273 = vmatmul.mubr.f32.gmra.mrb[0].mxu0 %v3950
      %v4274 = vpop.f32.mrb[0].mxu0
      %v4275 = vadd.f32 0.0, %v4274
      %v4276 = vpop.f32.mrb[0].mxu0
      %4277 = vmatprep.mubr.f32.mxu0 %v3956
      %4278 = vmatmul.mubr.f32.gmra.mrb[0].mxu0 %v3954
      %v4279 = vpop.f32.mrb[0].mxu0
      %v4280 = vadd.f32 0.0, %v4279
      %v4281 = vpop.f32.mrb[0].mxu0
      %4282 = vmatprep.mubr.f32.mxu0 %v3960
      %4283 = vmatmul.mubr.f32.gmra.mrb[0].mxu0 %v3958
      %v4284 = vpop.f32.mrb[0].mxu0
      %v4285 = vadd.f32 0.0, %v4284
      %v4286 = vpop.f32.mrb[0].mxu0
      %4287 = vmatprep.mubr.f32.mxu0 %v3964
      %4288 = vmatmul.mubr.f32.gmra.mrb[0].mxu0 %v3962
      %v4289 = vpop.f32.mrb[0].mxu0
      %v4290 = vadd.f32 0.0, %v4289
      %v4291 = vpop.f32.mrb[0].mxu0
      %4292 = vmatprep.mubr.f32.mxu0 %v3968
      %4293 = vmatmul.mubr.f32.gmra.mrb[0].mxu0 %v3966
      %v4294 = vpop.f32.mrb[0].mxu0
      %v4295 = vadd.f32 0.0, %v4294
      %v4296 = vpop.f32.mrb[0].mxu0
      %4297 = vmatprep.mubr.f32.mxu0 %v3972
      %4298 = vmatmul.mubr.f32.gmra.mrb[0].mxu0 %v3970
      %v4299 = vpop.f32.mrb[0].mxu0
      %v4300 = vadd.f32 0.0, %v4299
      %v4301 = vpop.f32.mrb[0].mxu0
      %4302 = vmatprep.mubr.f32.mxu0 %v3976
      %4303 = vmatmul.mubr.f32.gmra.mrb[0].mxu0 %v3974
      %v4304 = vpop.f32.mrb[0].mxu0
      %v4305 = vadd.f32 0.0, %v4304
      %v4306 = vpop.f32.mrb[0].mxu0
      %4307 = vmatprep.mubr.f32.mxu0 %v3980
      %4308 = vmatmul.mubr.f32.gmra.mrb[0].mxu0 %v3978
      %v4309 = vpop.f32.mrb[0].mxu0
      %v4310 = vadd.f32 0.0, %v4309
      %v4311 = vpop.f32.mrb[0].mxu0
      %4312 = vmatprep.mubr.f32.mxu0 %v3984
      %4313 = vmatmul.mubr.f32.gmra.mrb[0].mxu0 %v3982
      %v4314 = vpop.f32.mrb[0].mxu0
      %v4315 = vadd.f32 0.0, %v4314
      %v4316 = vpop.f32.mrb[0].mxu0
      %4317 = vmatprep.mubr.f32.mxu0 %v3988
      %4318 = vmatmul.mubr.f32.gmra.mrb[0].mxu0 %v3986
      %v4319 = vpop.f32.mrb[0].mxu0
      %v4320 = vadd.f32 0.0, %v4319
      %v4321 = vpop.f32.mrb[0].mxu0
      %4322 = vmatprep.mubr.f32.mxu0 %v3992
      %4323 = vmatmul.mubr.f32.gmra.mrb[0].mxu0 %v3990
      %v4324 = vpop.f32.mrb[0].mxu0
      %v4325 = vadd.f32 0.0, %v4324
      %v4326 = vpop.f32.mrb[0].mxu0
      %4327 = vmatprep.mubr.f32.mxu0 %v3996
      %4328 = vmatmul.mubr.f32.gmra.mrb[0].mxu0 %v3994
      %v4329 = vpop.f32.mrb[0].mxu0
      %v4330 = vadd.f32 0.0, %v4329
      %v4331 = vpop.f32.mrb[0].mxu0
      %4332 = vmatprep.mubr.f32.mxu0 %v4000
      %4333 = vmatmul.mubr.f32.gmra.mrb[0].mxu0 %v3998
      %v4334 = vpop.f32.mrb[0].mxu0
      %v4335 = vadd.f32 0.0, %v4334
      %v4336 = vpop.f32.mrb[0].mxu0
      %4337 = vmatprep.mubr.f32.mxu0 %v4004
      %4338 = vmatmul.mubr.f32.gmra.mrb[0].mxu0 %v4002
      %v4339 = vpop.f32.mrb[0].mxu0
      %v4340 = vadd.f32 0.0, %v4339
      %v4341 = vpop.f32.mrb[0].mxu0
      %4342 = vmatprep.mubr.f32.mxu0 %v4008
      %4343 = vmatmul.mubr.f32.gmra.mrb[0].mxu0 %v4006
      %v4344 = vpop.f32.mrb[0].mxu0
      %v4345 = vadd.f32 0.0, %v4344
      %v4346 = vpop.f32.mrb[0].mxu0
      %4347 = vmatprep.mubr.f32.mxu0 %v4012
      %4348 = vmatmul.mubr.f32.gmra.mrb[0].mxu0 %v4010
      %v4349 = vpop.f32.mrb[0].mxu0
      %v4350 = vadd.f32 0.0, %v4349
      %v4351 = vpop.f32.mrb[0].mxu0
      %4352 = vmatprep.mubr.f32.mxu0 %v4016
      %4353 = vmatmul.mubr.f32.gmra.mrb[0].mxu0 %v4014
      %v4354 = vpop.f32.mrb[0].mxu0
      %v4355 = vadd.f32 0.0, %v4354
      %v4356 = vpop.f32.mrb[0].mxu0
      %4357 = vmatprep.mubr.f32.mxu0 %v4020
      %4358 = vmatmul.mubr.f32.gmra.mrb[0].mxu0 %v4018
      %v4359 = vpop.f32.mrb[0].mxu0
      %v4360 = vadd.f32 0.0, %v4359
      %v4361 = vpop.f32.mrb[0].mxu0
      %4362 = vmatprep.mubr.f32.mxu0 %v4024
      %4363 = vmatmul.mubr.f32.gmra.mrb[0].mxu0 %v4022
      %v4364 = vpop.f32.mrb[0].mxu0
      %v4365 = vadd.f32 0.0, %v4364
      %v4366 = vpop.f32.mrb[0].mxu0
      %4367 = vmatprep.mubr.f32.mxu0 %v4028
      %4368 = vmatmul.mubr.f32.gmra.mrb[0].mxu0 %v4026
      %v4369 = vpop.f32.mrb[0].mxu0
      %v4370 = vadd.f32 0.0, %v4369
      %v4371 = vpop.f32.mrb[0].mxu0
      %4372 = vmatprep.mubr.f32.mxu0 %v4032
      %4373 = vmatmul.mubr.f32.gmra.mrb[0].mxu0 %v4030
      %v4374 = vpop.f32.mrb[0].mxu0
      %v4375 = vadd.f32 0.0, %v4374
      %v4376 = vpop.f32.mrb[0].mxu0
      %4377 = vmatprep.mubr.f32.mxu0 %v4036
      %4378 = vmatmul.mubr.f32.gmra.mrb[0].mxu0 %v4034
      %v4379 = vpop.f32.mrb[0].mxu0
      %v4380 = vadd.f32 0.0, %v4379
      %v4381 = vpop.f32.mrb[0].mxu0
      %4382 = vmatprep.mubr.f32.mxu0 %v4040
      %4383 = vmatmul.mubr.f32.gmra.mrb[0].mxu0 %v4038
      %v4384 = vpop.f32.mrb[0].mxu0
      %v4385 = vadd.f32 0.0, %v4384
      %v4386 = vpop.f32.mrb[0].mxu0
      %4387 = vmatprep.mubr.f32.mxu0 %v4044
      %4388 = vmatmul.mubr.f32.gmra.mrb[0].mxu0 %v4042
      %v4389 = vpop.f32.mrb[0].mxu0
      %v4390 = vadd.f32 0.0, %v4389
      %v4391 = vpop.f32.mrb[0].mxu0
      %4392 = vmatprep.mubr.f32.mxu0 %v4048
      %4393 = vmatmul.mubr.f32.gmra.mrb[0].mxu0 %v4046
      %v4394 = vpop.f32.mrb[0].mxu0
      %v4395 = vadd.f32 0.0, %v4394
      %v4396 = vpop.f32.mrb[0].mxu0
      %4397 = vmatprep.mubr.f32.mxu0 %v4052
      %4398 = vmatmul.mubr.f32.gmra.mrb[0].mxu0 %v4050
      %v4399 = vpop.f32.mrb[0].mxu0
      %v4400 = vadd.f32 0.0, %v4399
      %v4401 = vpop.f32.mrb[0].mxu0
      %4402 = vmatprep.mubr.f32.mxu0 %v4056
      %4403 = vmatmul.mubr.f32.gmra.mrb[0].mxu0 %v4054
      %v4404 = vpop.f32.mrb[0].mxu0
      %v4405 = vadd.f32 0.0, %v4404
      %v4406 = vpop.f32.mrb[0].mxu0
      %4407 = vmatprep.mubr.f32.mxu0 %v4060
      %4408 = vmatmul.mubr.f32.gmra.mrb[0].mxu0 %v4058
      %v4409 = vpop.f32.mrb[0].mxu0
      %v4410 = vadd.f32 0.0, %v4409
      %v4411 = vpop.f32.mrb[0].mxu0
      %4412 = vmatprep.mubr.f32.mxu0 %v4064
      %4413 = vmatmul.mubr.f32.gmra.mrb[0].mxu0 %v4062
      %v4414 = vpop.f32.mrb[0].mxu0
      %v4415 = vadd.f32 0.0, %v4414
      %v4416 = vpop.f32.mrb[0].mxu0
      %4417 = vdwg.mxu0
      %v4418 = vrcp.pop %v4067
      %v4419 = vrcp.pop %v4070
      %v4420 = vrcp.pop %v4073
      %v4421 = vrcp.pop %v4076
      %v4422 = vrcp.pop %v4079
      %v4423 = vrcp.pop %v4082
      %v4424 = vrcp.pop %v4085
      %v4425 = vrcp.pop %v4088
      %v4426 = vrcp.pop %v4091
      %v4427 = vrcp.pop %v4094
      %v4428 = vrcp.pop %v4097
      %v4429 = vrcp.pop %v4100
      %v4430 = vrcp.pop %v4103
      %v4431 = vrcp.pop %v4106
      %v4432 = vrcp.pop %v4109
      %v4433 = vrcp.pop %v4112
      %v4434 = vrcp.pop %v4115
      %v4435 = vrcp.pop %v4118
      %v4436 = vrcp.pop %v4121
      %v4437 = vrcp.pop %v4124
      %v4438 = vrcp.pop %v4127
      %v4439 = vrcp.pop %v4130
      %v4440 = vrcp.pop %v4133
      %v4441 = vrcp.pop %v4136
      %v4442 = vrcp.pop %v4139
      %v4443 = vrcp.pop %v4142
      %v4444 = vrcp.pop %v4145
      %v4445 = vrcp.pop %v4148
      %v4446 = vrcp.pop %v4151
      %v4447 = vrcp.pop %v4154
      %v4448 = vrcp.pop %v4157
      %v4449 = vrcp.pop %v4160
      %v4450 = vmul.f32 %v4260, %v4418
      %v4451 = vmul.f32 %v4265, %v4419
      %v4452 = vmul.f32 %v4270, %v4420
      %v4453 = vmul.f32 %v4275, %v4421
      %v4454 = vmul.f32 %v4280, %v4422
      %v4455 = vmul.f32 %v4285, %v4423
      %v4456 = vmul.f32 %v4290, %v4424
      %v4457 = vmul.f32 %v4295, %v4425
      %v4458 = vmul.f32 %v4300, %v4426
      %v4459 = vmul.f32 %v4305, %v4427
      %v4460 = vmul.f32 %v4310, %v4428
      %v4461 = vmul.f32 %v4315, %v4429
      %v4462 = vmul.f32 %v4320, %v4430
      %v4463 = vmul.f32 %v4325, %v4431
      %v4464 = vmul.f32 %v4330, %v4432
      %v4465 = vmul.f32 %v4335, %v4433
      %v4466 = vmul.f32 %v4340, %v4434
      %v4467 = vmul.f32 %v4345, %v4435
      %v4468 = vmul.f32 %v4350, %v4436
      %v4469 = vmul.f32 %v4355, %v4437
      %v4470 = vmul.f32 %v4360, %v4438
      %v4471 = vmul.f32 %v4365, %v4439
      %v4472 = vmul.f32 %v4370, %v4440
      %v4473 = vmul.f32 %v4375, %v4441
      %v4474 = vmul.f32 %v4380, %v4442
      %v4475 = vmul.f32 %v4385, %v4443
      %v4476 = vmul.f32 %v4390, %v4444
      %v4477 = vmul.f32 %v4395, %v4445
      %v4478 = vmul.f32 %v4400, %v4446
      %v4479 = vmul.f32 %v4405, %v4447
      %v4480 = vmul.f32 %v4410, %v4448
      %v4481 = vmul.f32 %v4415, %v4449
      %v4482 = vadd.f32 %v1640, %v4450
      %v4483 = vadd.f32 %v1641, %v4451
      %v4484 = vadd.f32 %v1642, %v4452
      %v4485 = vadd.f32 %v1643, %v4453
      %v4486 = vadd.f32 %v1644, %v4454
      %v4487 = vadd.f32 %v1645, %v4455
      %v4488 = vadd.f32 %v1646, %v4456
      %v4489 = vadd.f32 %v1647, %v4457
      %v4490 = vadd.f32 %v1648, %v4458
      %v4491 = vadd.f32 %v1649, %v4459
      %v4492 = vadd.f32 %v1650, %v4460
      %v4493 = vadd.f32 %v1651, %v4461
      %v4494 = vadd.f32 %v1652, %v4462
      %v4495 = vadd.f32 %v1653, %v4463
      %v4496 = vadd.f32 %v1654, %v4464
      %v4497 = vadd.f32 %v1655, %v4465
      %v4498 = vadd.f32 %v1656, %v4466
      %v4499 = vadd.f32 %v1657, %v4467
      %v4500 = vadd.f32 %v1658, %v4468
      %v4501 = vadd.f32 %v1659, %v4469
      %v4502 = vadd.f32 %v1660, %v4470
      %v4503 = vadd.f32 %v1661, %v4471
      %v4504 = vadd.f32 %v1662, %v4472
      %v4505 = vadd.f32 %v1663, %v4473
      %v4506 = vadd.f32 %v1664, %v4474
      %v4507 = vadd.f32 %v1665, %v4475
      %v4508 = vadd.f32 %v1666, %v4476
      %v4509 = vadd.f32 %v1667, %v4477
      %v4510 = vadd.f32 %v1668, %v4478
      %v4511 = vadd.f32 %v1669, %v4479
      %v4512 = vadd.f32 %v1670, %v4480
      %v4513 = vadd.f32 %v1671, %v4481
      %4514 = vst.msk [vmem:[%s354] sm:$0xff] %vm2257, %v4482
      %4515 = vst.msk [vmem:[%s354 + $0x8] sm:$0xff] %vm2257, %v4483
      %4516 = vst.msk [vmem:[%s354 + $0x10] sm:$0xff] %vm2257, %v4484
      %4517 = vst.msk [vmem:[%s354 + $0x18] sm:$0xff] %vm2257, %v4485
      %4518 = vst.msk [vmem:[%s354 + $0x20] sm:$0xff] %vm2257, %v4486
      %4519 = vst.msk [vmem:[%s354 + $0x28] sm:$0xff] %vm2257, %v4487
      %4520 = vst.msk [vmem:[%s354 + $0x30] sm:$0xff] %vm2257, %v4488
      %4521 = vst.msk [vmem:[%s354 + $0x38] sm:$0xff] %vm2257, %v4489
      %4522 = vst.msk [vmem:[%s354 + $0x40] sm:$0xff] %vm2257, %v4490
      %4523 = vst.msk [vmem:[%s354 + $0x48] sm:$0xff] %vm2257, %v4491
      %4524 = vst.msk [vmem:[%s354 + $0x50] sm:$0xff] %vm2257, %v4492
      %4525 = vst.msk [vmem:[%s354 + $0x58] sm:$0xff] %vm2257, %v4493
      %4526 = vst.msk [vmem:[%s354 + $0x60] sm:$0xff] %vm2257, %v4494
      %4527 = vst.msk [vmem:[%s354 + $0x68] sm:$0xff] %vm2257, %v4495
      %4528 = vst.msk [vmem:[%s354 + $0x70] sm:$0xff] %vm2257, %v4496
      %4529 = vst.msk [vmem:[%s354 + $0x78] sm:$0xff] %vm2257, %v4497
      %4530 = vst.msk [vmem:[%s354 + $0x80] sm:$0xff] %vm2257, %v4498
      %4531 = vst.msk [vmem:[%s354 + $0x88] sm:$0xff] %vm2257, %v4499
      %4532 = vst.msk [vmem:[%s354 + $0x90] sm:$0xff] %vm2257, %v4500
      %4533 = vst.msk [vmem:[%s354 + $0x98] sm:$0xff] %vm2257, %v4501
      %4534 = vst.msk [vmem:[%s354 + $0xa0] sm:$0xff] %vm2257, %v4502
      %4535 = vst.msk [vmem:[%s354 + $0xa8] sm:$0xff] %vm2257, %v4503
      %4536 = vst.msk [vmem:[%s354 + $0xb0] sm:$0xff] %vm2257, %v4504
      %4537 = vst.msk [vmem:[%s354 + $0xb8] sm:$0xff] %vm2257, %v4505
      %4538 = vst.msk [vmem:[%s354 + $0xc0] sm:$0xff] %vm2257, %v4506
      %4539 = vst.msk [vmem:[%s354 + $0xc8] sm:$0xff] %vm2257, %v4507
      %4540 = vst.msk [vmem:[%s354 + $0xd0] sm:$0xff] %vm2257, %v4508
      %4541 = vst.msk [vmem:[%s354 + $0xd8] sm:$0xff] %vm2257, %v4509
      %4542 = vst.msk [vmem:[%s354 + $0xe0] sm:$0xff] %vm2257, %v4510
      %4543 = vst.msk [vmem:[%s354 + $0xe8] sm:$0xff] %vm2257, %v4511
      %4544 = vst.msk [vmem:[%s354 + $0xf0] sm:$0xff] %vm2257, %v4512
      %4545 = vst.msk [vmem:[%s354 + $0xf8] sm:$0xff] %vm2257, %v4513
      %s4546 = smul.u32 32, %s25
      %p4547 = scmp.lt.s32.totalorder %s24, 1
      %s4548 = scalar_select %p4547, %s24, 1
      %p4549 = scmp.lt.s32.totalorder %s4546, 31
      %s4550 = scalar_select %p4549, %s4546, 31
      %s4551 = smul.addr %s4548, 32
      %s4552 = sadd.s32 %s4550, %s4551
      %s4553 = smul.addr %s4552, 8
      %s4554 = scalar_lea.vmem %s9, %s4553
      // Predicated region
      $region61: #{tpu_custom_call.1} parent=55 // pred_check
        %p4555 = pneg %p246
      $region62: #{tpu_custom_call.1} parent=55 // pred_check_branch
        %4557 = sbr.rel (%p4555) target = $region64
      $region63: #{tpu_custom_call.1} parent=55 // pred_region
        %s4558 = smul.u32 32, %s25
      $region64: #{tpu_custom_call.1} parent=55 // pred_fallthru
        _
    $region56: #{tpu_custom_call.1} parent=5 // pred_fallthru
      _
    %p4559 = scmp.le.s32.totalorder 2, %s15
    // Predicated region
    $region65: #{tpu_custom_call.1} parent=5 // pred_check
      %p4560 = pneg %p4559
    $region66: #{tpu_custom_call.1} parent=5 // pred_check_branch
      %4562 = sbr.rel (%p4560) target = $region68
    $region67: #{tpu_custom_call.1} parent=5 // pred_region
      %s4563 = ssub.s32 %s15, 2
      // Predicated region
      $region69: #{tpu_custom_call.1} parent=67 // pred_check
        %p4564 = pneg %p252
      $region70: #{tpu_custom_call.1} parent=67 // pred_check_branch
        %4566 = sbr.rel (%p4564) target = $region72
      $region71: #{tpu_custom_call.1} parent=67 // pred_region
        %s4567 = smul.u32 32, %s27
        %p4568 = scmp.lt.s32.totalorder %s26, 1
        %s4569 = scalar_select %p4568, %s26, 1
        %p4570 = scmp.lt.s32.totalorder %s4567, 31
        %s4571 = scalar_select %p4570, %s4567, 31
        %s4572 = smul.addr %s4569, 32
        %s4573 = sadd.s32 %s4571, %s4572
        %s4574 = smul.addr %s4573, 8
        %s4575 = scalar_lea.vmem %s9, %s4574
      $region72: #{tpu_custom_call.1} parent=67 // pred_fallthru
        _
    $region68: #{tpu_custom_call.1} parent=5 // pred_fallthru
      _
  $region6: #{tpu_custom_call.1} parent=0 // loop_footer
    %s19 = sadd.s32 1, %s15
  $region7: #{tpu_custom_call.1} parent=0 // loop_footer_branch
    %14 = sbr.rel target = $region3
  $region8: #{tpu_custom_call.1} parent=0 // loop_exit
    _

</llo_original>
